<compile_context>
chip_gen: v6e
topology: v6e:2x2x1
jax: 0.10.0
libtpu: 0.0.40
codegen_flags: <defaults>
</compile_context>

<pallas_src>
import functools

import jax
import jax.numpy as jnp
from jax.experimental import pallas as pl
from jax.experimental.pallas import tpu as pltpu


# MXU operand dtype (accumulation is always f32). bf16 gives peak MXU
# throughput on v5e/v6e/v7x; use jnp.float32 for exact-f32 reference parity.
MXU_DTYPE = jnp.bfloat16

# Scoped VMEM request: safe on all generations (v5e/v6e 128 MiB, v7x 64 MiB
# physical) while leaving headroom for double-buffered BlockSpec pipelines.
VMEM_LIMIT = 32 * 1024 * 1024

LN_EPS = 1e-5


def _pick_tile(dim, preferred, align):
    """Largest tile <= preferred that divides `dim` and is `align`-aligned;
    falls back to the full dim (always legal as a single block)."""
    if dim <= preferred:
        return dim
    t = (preferred // align) * align
    while t >= align:
        if dim % t == 0:
            return t
        t -= align
    return dim


def _layer_norm(y, g, b, eps):
    """y: (R, D) f32, g/b: (1, D). Returns f32 (R, D)."""
    mean = jnp.mean(y, axis=-1, keepdims=True)
    yc = y - mean
    var = jnp.mean(yc * yc, axis=-1, keepdims=True)
    inv = jax.lax.rsqrt(var + eps)
    return yc * inv * g.astype(jnp.float32) + b.astype(jnp.float32)


# ----------------------------------------------------------------------------
# Tiled linear (+bias), bias applied on the final K step only
# ----------------------------------------------------------------------------
def _linear_kernel(x_ref, w_ref, b_ref, o_ref, acc_ref):
    k = pl.program_id(2)

    @pl.when(k == 0)
    def _():
        acc_ref[...] = jnp.zeros_like(acc_ref)

    acc_ref[...] += jnp.dot(
        x_ref[...].astype(MXU_DTYPE),
        w_ref[...].astype(MXU_DTYPE),
        preferred_element_type=jnp.float32,
    )

    @pl.when(k == pl.num_programs(2) - 1)
    def _():
        o_ref[...] = (acc_ref[...] + b_ref[...].astype(jnp.float32)).astype(o_ref.dtype)


def linear2d(x2d, w, b, tm=256, tn=256, tk=512):
    """x2d: (M, K), w: (K, N), b: (1, N) -> (M, N)."""
    M, K = x2d.shape
    _, N = w.shape
    tm = _pick_tile(M, tm, 8)
    tn = _pick_tile(N, tn, 128)
    tk = _pick_tile(K, tk, 128)
    grid = (M // tm, N // tn, K // tk)
    return pl.pallas_call(
        _linear_kernel,
        out_shape=jax.ShapeDtypeStruct((M, N), x2d.dtype),
        grid=grid,
        in_specs=[
            pl.BlockSpec((tm, tk), lambda i, j, k: (i, k)),
            pl.BlockSpec((tk, tn), lambda i, j, k: (k, j)),
            pl.BlockSpec((1, tn), lambda i, j, k: (0, j)),
        ],
        out_specs=pl.BlockSpec((tm, tn), lambda i, j, k: (i, j)),
        scratch_shapes=[pltpu.VMEM((tm, tn), jnp.float32)],
        compiler_params=pltpu.CompilerParams(
            dimension_semantics=("parallel", "parallel", "arbitrary"),
            vmem_limit_bytes=VMEM_LIMIT,
        ),
    )(x2d, w, b)


def dense(x, w, b):
    B, S, D = x.shape
    y = linear2d(x.reshape(B * S, D), w, b)
    return y.reshape(B, S, w.shape[1])


# ----------------------------------------------------------------------------
# Fused FFN block: LN(x + (relu(x @ W1 + b1) @ W2 + b2))
# ----------------------------------------------------------------------------
def _ffn_ln_kernel(x_ref, w1_ref, b1_ref, w2_ref, b2_ref, g_ref, bln_ref, o_ref,
                   *, eps):
    x = x_ref[...]
    h = jnp.dot(
        x.astype(MXU_DTYPE),
        w1_ref[...].astype(MXU_DTYPE),
        preferred_element_type=jnp.float32,
    )
    h = jnp.maximum(h + b1_ref[...].astype(jnp.float32), 0.0)
    y = jnp.dot(
        h.astype(MXU_DTYPE),
        w2_ref[...].astype(MXU_DTYPE),
        preferred_element_type=jnp.float32,
    )
    y = y + b2_ref[...].astype(jnp.float32) + x.astype(jnp.float32)
    o_ref[...] = _layer_norm(y, g_ref[...], bln_ref[...], eps).astype(o_ref.dtype)


def ffn_ln_block(x, w1, b1, w2, b2, gamma, beta, tm=256, eps=LN_EPS):
    B, S, D = x.shape
    M = B * S
    Dff = w1.shape[1]
    x2d = x.reshape(M, D)
    tm = _pick_tile(M, tm, 8)
    y = pl.pallas_call(
        functools.partial(_ffn_ln_kernel, eps=eps),
        out_shape=jax.ShapeDtypeStruct((M, D), x.dtype),
        grid=(M // tm,),
        in_specs=[
            pl.BlockSpec((tm, D), lambda i: (i, 0)),
            pl.BlockSpec((D, Dff), lambda i: (0, 0)),
            pl.BlockSpec((1, Dff), lambda i: (0, 0)),
            pl.BlockSpec((Dff, D), lambda i: (0, 0)),
            pl.BlockSpec((1, D), lambda i: (0, 0)),
            pl.BlockSpec((1, D), lambda i: (0, 0)),
            pl.BlockSpec((1, D), lambda i: (0, 0)),
        ],
        out_specs=pl.BlockSpec((tm, D), lambda i: (i, 0)),
        compiler_params=pltpu.CompilerParams(
            dimension_semantics=("parallel",),
            vmem_limit_bytes=VMEM_LIMIT,
        ),
    )(x2d, w1, b1, w2, b2, gamma, beta)
    return y.reshape(B, S, D)


# ----------------------------------------------------------------------------
# Fused attention block: LN(x + MHA(qkv) @ Wo + bo)
# Grid over batch only; lane-dense (1, S, *) blocks; heads sliced in VMEM;
# masks broadcast in-kernel.
# ----------------------------------------------------------------------------
def _mha_core(q, k, v, mask, n_heads, scale):
    """q: (Sq, D), k/v: (Sk, D), mask: (1 or Sq, Sk) additive -> (Sq, D) f32."""
    d_model = q.shape[1]
    dh = d_model // n_heads
    mask = mask.astype(jnp.float32)
    outs = []
    for h in range(n_heads):
        sl = slice(h * dh, (h + 1) * dh)
        qh = q[:, sl].astype(MXU_DTYPE)
        kh = k[:, sl].astype(MXU_DTYPE)
        vh = v[:, sl].astype(MXU_DTYPE)
        # scores = qh @ kh^T (contract the head dim directly, no transpose op)
        s = jax.lax.dot_general(
            qh, kh, (((1,), (1,)), ((), ())), preferred_element_type=jnp.float32
        ) * scale
        s = s + mask                      # broadcasts (1,Sk) or (Sq,Sk)
        s_max = jnp.max(s, axis=-1, keepdims=True)
        p = jnp.exp(s - s_max)
        denom = jnp.sum(p, axis=-1, keepdims=True)
        p = p * pl.reciprocal(denom, approx=True)
        outs.append(
            jnp.dot(p.astype(MXU_DTYPE), vh, preferred_element_type=jnp.float32)
        )
    return jnp.concatenate(outs, axis=-1)


def _proj_res_ln(attn, x_res, wo, bo, g, b, eps):
    proj = jnp.dot(
        attn.astype(MXU_DTYPE), wo.astype(MXU_DTYPE),
        preferred_element_type=jnp.float32,
    ) + bo.astype(jnp.float32)
    y = x_res.astype(jnp.float32) + proj
    return _layer_norm(y, g, b, eps)


def _self_attn_block_kernel(qkv_ref, x_ref, m_ref, wo_ref, bo_ref, g_ref, b_ref,
                            o_ref, *, n_heads, scale, d_model, eps):
    q = qkv_ref[0, :, 0:d_model]
    k = qkv_ref[0, :, d_model:2 * d_model]
    v = qkv_ref[0, :, 2 * d_model:3 * d_model]
    attn = _mha_core(q, k, v, m_ref[0], n_heads, scale)
    y = _proj_res_ln(attn, x_ref[0], wo_ref[...], bo_ref[...],
                     g_ref[...], b_ref[...], eps)
    o_ref[0] = y.astype(o_ref.dtype)


def _cross_attn_block_kernel(q_ref, kv_ref, x_ref, m_ref, wo_ref, bo_ref, g_ref,
                             b_ref, o_ref, *, n_heads, scale, d_model, eps):
    q = q_ref[0]
    k = kv_ref[0, :, 0:d_model]
    v = kv_ref[0, :, d_model:2 * d_model]
    attn = _mha_core(q, k, v, m_ref[0], n_heads, scale)
    y = _proj_res_ln(attn, x_ref[0], wo_ref[...], bo_ref[...],
                     g_ref[...], b_ref[...], eps)
    o_ref[0] = y.astype(o_ref.dtype)


def self_attn_block(qkv, x, mask_add, wo, bo, gamma, beta, n_heads, d_model,
                    eps=LN_EPS):
    """qkv: (B, S, 3D) fused; x: (B, S, D) residual; mask_add: (B, 1|S, S)."""
    B, Sq, _ = qkv.shape
    Mq = mask_add.shape[1]
    scale = 1.0 / float(d_model // n_heads) ** 0.5
    return pl.pallas_call(
        functools.partial(_self_attn_block_kernel, n_heads=n_heads, scale=scale,
                          d_model=d_model, eps=eps),
        out_shape=jax.ShapeDtypeStruct((B, Sq, d_model), x.dtype),
        grid=(B,),
        in_specs=[
            pl.BlockSpec((1, Sq, 3 * d_model), lambda b: (b, 0, 0)),
            pl.BlockSpec((1, Sq, d_model), lambda b: (b, 0, 0)),
            pl.BlockSpec((1, Mq, Sq), lambda b: (b, 0, 0)),
            pl.BlockSpec((d_model, d_model), lambda b: (0, 0)),
            pl.BlockSpec((1, d_model), lambda b: (0, 0)),
            pl.BlockSpec((1, d_model), lambda b: (0, 0)),
            pl.BlockSpec((1, d_model), lambda b: (0, 0)),
        ],
        out_specs=pl.BlockSpec((1, Sq, d_model), lambda b: (b, 0, 0)),
        compiler_params=pltpu.CompilerParams(
            dimension_semantics=("parallel",),
            vmem_limit_bytes=VMEM_LIMIT,
        ),
    )(qkv, x, mask_add, wo, bo, gamma, beta)


def cross_attn_block(q, kv, x, mask_add, wo, bo, gamma, beta, n_heads, d_model,
                     eps=LN_EPS):
    """q/x: (B, Sq, D); kv: (B, Sk, 2D) fused; mask_add: (B, 1, Sk)."""
    B, Sq, _ = q.shape
    Sk = kv.shape[1]
    Mq = mask_add.shape[1]
    scale = 1.0 / float(d_model // n_heads) ** 0.5
    return pl.pallas_call(
        functools.partial(_cross_attn_block_kernel, n_heads=n_heads, scale=scale,
                          d_model=d_model, eps=eps),
        out_shape=jax.ShapeDtypeStruct((B, Sq, d_model), x.dtype),
        grid=(B,),
        in_specs=[
            pl.BlockSpec((1, Sq, d_model), lambda b: (b, 0, 0)),
            pl.BlockSpec((1, Sk, 2 * d_model), lambda b: (b, 0, 0)),
            pl.BlockSpec((1, Sq, d_model), lambda b: (b, 0, 0)),
            pl.BlockSpec((1, Mq, Sk), lambda b: (b, 0, 0)),
            pl.BlockSpec((d_model, d_model), lambda b: (0, 0)),
            pl.BlockSpec((1, d_model), lambda b: (0, 0)),
            pl.BlockSpec((1, d_model), lambda b: (0, 0)),
            pl.BlockSpec((1, d_model), lambda b: (0, 0)),
        ],
        out_specs=pl.BlockSpec((1, Sq, d_model), lambda b: (b, 0, 0)),
        compiler_params=pltpu.CompilerParams(
            dimension_semantics=("parallel",),
            vmem_limit_bytes=VMEM_LIMIT,
        ),
    )(q, kv, x, mask_add, wo, bo, gamma, beta)


# ----------------------------------------------------------------------------
# Transformer layers (glue in JAX, hot paths in the kernels above)
# ----------------------------------------------------------------------------
def encoder_layer(p, x, src_mask_add, n_heads, d_model):
    qkv = dense(x, p["sa_wqkv"], p["sa_bqkv"])                 # fused QKV
    x = self_attn_block(qkv, x, src_mask_add, p["sa_wo"], p["sa_bo"],
                        p["ln1_g"], p["ln1_b"], n_heads, d_model)
    x = ffn_ln_block(x, p["w1"], p["b1"], p["w2"], p["b2"],
                     p["ln2_g"], p["ln2_b"])
    return x


def decoder_layer(p, x, memory, tgt_mask_add, src_mask_add, n_heads, d_model):
    qkv = dense(x, p["sa_wqkv"], p["sa_bqkv"])                 # fused QKV
    x = self_attn_block(qkv, x, tgt_mask_add, p["sa_wo"], p["sa_bo"],
                        p["ln1_g"], p["ln1_b"], n_heads, d_model)

    q = dense(x, p["ca_wq"], p["ca_bq"])
    kv = dense(memory, p["ca_wkv"], p["ca_bkv"])               # fused K|V
    x = cross_attn_block(q, kv, x, src_mask_add, p["ca_wo"], p["ca_bo"],
                         p["ln2_g"], p["ln2_b"], n_heads, d_model)

    x = ffn_ln_block(x, p["w1"], p["b1"], p["w2"], p["b2"],
                     p["ln3_g"], p["ln3_b"])
    return x


def transformer_forward(params, src, tgt, mask_source, mask_target,
                        n_heads, d_model):
    """src: (B,Ss,Fs), tgt: (B,St,Ft), mask_source: (B,Ss) bool (True=keep),
    mask_target: (B,St,St) bool (True=attend). Returns decoder output (B,St,D)."""
    neg = jnp.float32(-1e9)
    # No HBM broadcast of masks: (B,1,Ss) and (B,St,St), expanded in-kernel.
    src_add = jnp.where(mask_source[:, None, :], 0.0, neg).astype(jnp.float32)
    tgt_add = jnp.where(mask_target, 0.0, neg).astype(jnp.float32)

    x = dense(src, params["embed_w"], params["embed_b"])           # embeding(src)
    for lp in params["encoder"]:
        x = encoder_layer(lp, x, src_add, n_heads, d_model)
    memory = x

    y = dense(tgt, params["tgt_embed_w"], params["tgt_embed_b"])   # target_embed(tgt)
    for lp in params["decoder"]:
        y = decoder_layer(lp, y, memory, tgt_add, src_add, n_heads, d_model)
    return y


# ----------------------------------------------------------------------------
# Deterministic parameter init (fused QKV / fused KV layouts)
# ----------------------------------------------------------------------------
def _lin(key, din, dout, scale=0.05):
    w = scale * jax.random.normal(key, (din, dout), jnp.float32)
    b = jnp.zeros((1, dout), jnp.float32)
    return w, b


def _enc_layer_params(key, d, d_ff):
    ks = jax.random.split(key, 4)
    p = {}
    p["sa_wqkv"], p["sa_bqkv"] = _lin(ks[0], d, 3 * d)
    p["sa_wo"], p["sa_bo"] = _lin(ks[1], d, d)
    p["w1"], p["b1"] = _lin(ks[2], d, d_ff)
    p["w2"], p["b2"] = _lin(ks[3], d_ff, d)
    for n in ("ln1", "ln2"):
        p[f"{n}_g"] = jnp.ones((1, d), jnp.float32)
        p[f"{n}_b"] = jnp.zeros((1, d), jnp.float32)
    return p


def _dec_layer_params(key, d, d_ff):
    ks = jax.random.split(key, 7)
    p = {}
    p["sa_wqkv"], p["sa_bqkv"] = _lin(ks[0], d, 3 * d)
    p["sa_wo"], p["sa_bo"] = _lin(ks[1], d, d)
    p["ca_wq"], p["ca_bq"] = _lin(ks[2], d, d)
    p["ca_wkv"], p["ca_bkv"] = _lin(ks[3], d, 2 * d)
    p["ca_wo"], p["ca_bo"] = _lin(ks[4], d, d)
    p["w1"], p["b1"] = _lin(ks[5], d, d_ff)
    p["w2"], p["b2"] = _lin(ks[6], d_ff, d)
    for n in ("ln1", "ln2", "ln3"):
        p[f"{n}_g"] = jnp.ones((1, d), jnp.float32)
        p[f"{n}_b"] = jnp.zeros((1, d), jnp.float32)
    return p


def init_params(key, f_src, f_tgt, d_model, d_ff, n_enc, n_dec):
    keys = jax.random.split(key, 2 + n_enc + n_dec)
    params = {}
    params["embed_w"], params["embed_b"] = _lin(keys[0], f_src, d_model)
    params["tgt_embed_w"], params["tgt_embed_b"] = _lin(keys[1], f_tgt, d_model)
    params["encoder"] = [_enc_layer_params(k, d_model, d_ff)
                         for k in keys[2:2 + n_enc]]
    params["decoder"] = [_dec_layer_params(k, d_model, d_ff)
                         for k in keys[2 + n_enc:]]
    return params


# ----------------------------------------------------------------------------
if __name__ == "__main__":
    B, S_src, S_tgt = 2, 8, 8
    F_src, F_tgt = 4, 4
    d_model, n_heads, d_ff = 32, 4, 64
    n_enc_layers, n_dec_layers = 2, 2

    params = init_params(jax.random.PRNGKey(42), F_src, F_tgt,
                         d_model, d_ff, n_enc_layers, n_dec_layers)

    key = jax.random.PRNGKey(0)
    k_src, k_tgt = jax.random.split(key)
    src = jax.random.normal(k_src, (B, S_src, F_src), jnp.float32)
    tgt = jax.random.normal(k_tgt, (B, S_tgt, F_tgt), jnp.float32)

    # source key-padding mask (True = valid); batch item 1 has 2 padded steps
    mask_source = jnp.ones((B, S_src), dtype=bool).at[1, 6:].set(False)
    # target mask: causal (True = may attend)
    causal = jnp.tril(jnp.ones((S_tgt, S_tgt), dtype=bool))
    mask_target = jnp.broadcast_to(causal, (B, S_tgt, S_tgt))

    fwd = jax.jit(functools.partial(transformer_forward,
                                    n_heads=n_heads, d_model=d_model))
    out = fwd(params, src, tgt, mask_source, mask_target)
    jax.block_until_ready(out)
    assert out.shape == (B, S_tgt, d_model)
    assert bool(jnp.all(jnp.isfinite(out)))
    print("KERNEL_OK")
</pallas_src>

<mosaic_0001>
module attributes {stable_mosaic.version = 11 : i64} {
  func.func @_linear_kernel(%arg0: i32, %arg1: i32, %arg2: i32, %arg3: memref<16x32xf32, #tpu.memory_space<vmem>>, %arg4: memref<32x96xf32, #tpu.memory_space<vmem>>, %arg5: memref<1x96xf32, #tpu.memory_space<vmem>>, %arg6: memref<16x96xf32, #tpu.memory_space<vmem>>, %arg7: memref<16x96xf32, #tpu.memory_space<vmem>>) attributes {dimension_semantics = [#tpu.dimension_semantics<parallel>, #tpu.dimension_semantics<parallel>, #tpu.dimension_semantics<arbitrary>], iteration_bounds = array<i64: 1, 1, 1>, scalar_prefetch = 0 : i64, scratch_operands = 1 : i64, tpu.core_type = #tpu.core_type<tc>, window_params = [{transform_indices = @transform_0, window_bounds = array<i64: 16, 32>}, {transform_indices = @transform_1, window_bounds = array<i64: 32, 96>}, {transform_indices = @transform_2, window_bounds = array<i64: 1, 96>}, {transform_indices = @transform_3, window_bounds = array<i64: 16, 96>}]} {
    %c0_i32 = arith.constant 0 : i32
    %0 = arith.cmpi eq, %arg2, %c0_i32 : i32
    %1 = arith.extui %0 : i1 to i32
    %c0_i32_0 = arith.constant 0 : i32
    %2 = arith.cmpi ne, %1, %c0_i32_0 : i32
    scf.if %2 {
      %cst_10 = arith.constant 0.000000e+00 : f32
      %14 = vector.broadcast %cst_10 : f32 to vector<16x96xf32>
      %c0_11 = arith.constant 0 : index
      %c0_12 = arith.constant 0 : index
      %15 = vector.load %arg7[%c0_11, %c0_12] : memref<16x96xf32, #tpu.memory_space<vmem>>, vector<16x96xf32>
      tpu.vector_store %arg7[%c0_11, %c0_12], %14 {strides = array<i32>} : memref<16x96xf32, #tpu.memory_space<vmem>>, vector<16x96xf32>,
    } else {
    }
    %c0 = arith.constant 0 : index
    %c0_1 = arith.constant 0 : index
    %3 = vector.load %arg7[%c0, %c0_1] : memref<16x96xf32, #tpu.memory_space<vmem>>, vector<16x96xf32>
    %c0_2 = arith.constant 0 : index
    %c0_3 = arith.constant 0 : index
    %4 = vector.load %arg3[%c0_2, %c0_3] : memref<16x32xf32, #tpu.memory_space<vmem>>, vector<16x32xf32>
    %5 = arith.truncf %4 : vector<16x32xf32> to vector<16x32xbf16>
    %c0_4 = arith.constant 0 : index
    %c0_5 = arith.constant 0 : index
    %6 = vector.load %arg4[%c0_4, %c0_5] : memref<32x96xf32, #tpu.memory_space<vmem>>, vector<32x96xf32>
    %7 = arith.truncf %6 : vector<32x96xf32> to vector<32x96xbf16>
    %cst = arith.constant dense<0.000000e+00> : vector<16x96xf32>
    %8 = tpu.matmul %5, %7, %cst {dimension_numbers = #tpu.dot_dimension_numbers<[1], [0], [0], [1], [0, 0, 1, 1], [], []>} : vector<16x32xbf16>, vector<32x96xbf16>, vector<16x96xf32> -> vector<16x96xf32>
    %9 = arith.addf %3, %8 : vector<16x96xf32>
    %c0_6 = arith.constant 0 : index
    %c0_7 = arith.constant 0 : index
    %10 = vector.load %arg7[%c0_6, %c0_7] : memref<16x96xf32, #tpu.memory_space<vmem>>, vector<16x96xf32>
    tpu.vector_store %arg7[%c0_6, %c0_7], %9 {strides = array<i32>} : memref<16x96xf32, #tpu.memory_space<vmem>>, vector<16x96xf32>,
    %c0_i32_8 = arith.constant 0 : i32
    %11 = arith.cmpi eq, %arg2, %c0_i32_8 : i32
    %12 = arith.extui %11 : i1 to i32
    %c0_i32_9 = arith.constant 0 : i32
    %13 = arith.cmpi ne, %12, %c0_i32_9 : i32
    scf.if %13 {
      %c0_10 = arith.constant 0 : index
      %c0_11 = arith.constant 0 : index
      %14 = vector.load %arg7[%c0_10, %c0_11] : memref<16x96xf32, #tpu.memory_space<vmem>>, vector<16x96xf32>
      %c0_12 = arith.constant 0 : index
      %c0_13 = arith.constant 0 : index
      %15 = vector.load %arg5[%c0_12, %c0_13] : memref<1x96xf32, #tpu.memory_space<vmem>>, vector<1x96xf32>
      %16 = vector.broadcast %15 : vector<1x96xf32> to vector<16x96xf32>
      %17 = arith.addf %14, %16 : vector<16x96xf32>
      %c0_14 = arith.constant 0 : index
      %c0_15 = arith.constant 0 : index
      %18 = vector.load %arg6[%c0_14, %c0_15] : memref<16x96xf32, #tpu.memory_space<vmem>>, vector<16x96xf32>
      tpu.vector_store %arg6[%c0_14, %c0_15], %17 {strides = array<i32>} : memref<16x96xf32, #tpu.memory_space<vmem>>, vector<16x96xf32>,
    } else {
    }
    return
  }
  func.func @transform_0(%arg0: i32, %arg1: i32, %arg2: i32) -> (i32, i32) {
    %c0_i32 = arith.constant 0 : i32
    return %arg0, %arg2 : i32, i32
  }
  func.func @transform_1(%arg0: i32, %arg1: i32, %arg2: i32) -> (i32, i32) {
    %c0_i32 = arith.constant 0 : i32
    return %arg2, %arg1 : i32, i32
  }
  func.func @transform_2(%arg0: i32, %arg1: i32, %arg2: i32) -> (i32, i32) {
    %c0_i32 = arith.constant 0 : i32
    %c0_i32_0 = arith.constant 0 : i32
    return %c0_i32, %arg1 : i32, i32
  }
  func.func @transform_3(%arg0: i32, %arg1: i32, %arg2: i32) -> (i32, i32) {
    %c0_i32 = arith.constant 0 : i32
    return %arg0, %arg1 : i32, i32
  }
}

module attributes {stable_mosaic.version = 11 : i64} {
  func.func @_linear_kernel(%arg0: i32, %arg1: i32, %arg2: i32, %arg3: memref<16x4xf32, #tpu.memory_space<vmem>>, %arg4: memref<4x32xf32, #tpu.memory_space<vmem>>, %arg5: memref<1x32xf32, #tpu.memory_space<vmem>>, %arg6: memref<16x32xf32, #tpu.memory_space<vmem>>, %arg7: memref<16x32xf32, #tpu.memory_space<vmem>>) attributes {dimension_semantics = [#tpu.dimension_semantics<parallel>, #tpu.dimension_semantics<parallel>, #tpu.dimension_semantics<arbitrary>], iteration_bounds = array<i64: 1, 1, 1>, scalar_prefetch = 0 : i64, scratch_operands = 1 : i64, tpu.core_type = #tpu.core_type<tc>, window_params = [{transform_indices = @transform_0, window_bounds = array<i64: 16, 4>}, {transform_indices = @transform_1, window_bounds = array<i64: 4, 32>}, {transform_indices = @transform_2, window_bounds = array<i64: 1, 32>}, {transform_indices = @transform_3, window_bounds = array<i64: 16, 32>}]} {
    %c0_i32 = arith.constant 0 : i32
    %0 = arith.cmpi eq, %arg2, %c0_i32 : i32
    %1 = arith.extui %0 : i1 to i32
    %c0_i32_0 = arith.constant 0 : i32
    %2 = arith.cmpi ne, %1, %c0_i32_0 : i32
    scf.if %2 {
      %cst_10 = arith.constant 0.000000e+00 : f32
      %14 = vector.broadcast %cst_10 : f32 to vector<16x32xf32>
      %c0_11 = arith.constant 0 : index
      %c0_12 = arith.constant 0 : index
      %15 = vector.load %arg7[%c0_11, %c0_12] : memref<16x32xf32, #tpu.memory_space<vmem>>, vector<16x32xf32>
      tpu.vector_store %arg7[%c0_11, %c0_12], %14 {strides = array<i32>} : memref<16x32xf32, #tpu.memory_space<vmem>>, vector<16x32xf32>,
    } else {
    }
    %c0 = arith.constant 0 : index
    %c0_1 = arith.constant 0 : index
    %3 = vector.load %arg7[%c0, %c0_1] : memref<16x32xf32, #tpu.memory_space<vmem>>, vector<16x32xf32>
    %c0_2 = arith.constant 0 : index
    %c0_3 = arith.constant 0 : index
    %4 = vector.load %arg3[%c0_2, %c0_3] : memref<16x4xf32, #tpu.memory_space<vmem>>, vector<16x4xf32>
    %5 = arith.truncf %4 : vector<16x4xf32> to vector<16x4xbf16>
    %c0_4 = arith.constant 0 : index
    %c0_5 = arith.constant 0 : index
    %6 = vector.load %arg4[%c0_4, %c0_5] : memref<4x32xf32, #tpu.memory_space<vmem>>, vector<4x32xf32>
    %7 = arith.truncf %6 : vector<4x32xf32> to vector<4x32xbf16>
    %cst = arith.constant dense<0.000000e+00> : vector<16x32xf32>
    %8 = tpu.matmul %5, %7, %cst {dimension_numbers = #tpu.dot_dimension_numbers<[1], [0], [0], [1], [0, 0, 1, 1], [], []>} : vector<16x4xbf16>, vector<4x32xbf16>, vector<16x32xf32> -> vector<16x32xf32>
    %9 = arith.addf %3, %8 : vector<16x32xf32>
    %c0_6 = arith.constant 0 : index
    %c0_7 = arith.constant 0 : index
    %10 = vector.load %arg7[%c0_6, %c0_7] : memref<16x32xf32, #tpu.memory_space<vmem>>, vector<16x32xf32>
    tpu.vector_store %arg7[%c0_6, %c0_7], %9 {strides = array<i32>} : memref<16x32xf32, #tpu.memory_space<vmem>>, vector<16x32xf32>,
    %c0_i32_8 = arith.constant 0 : i32
    %11 = arith.cmpi eq, %arg2, %c0_i32_8 : i32
    %12 = arith.extui %11 : i1 to i32
    %c0_i32_9 = arith.constant 0 : i32
    %13 = arith.cmpi ne, %12, %c0_i32_9 : i32
    scf.if %13 {
      %c0_10 = arith.constant 0 : index
      %c0_11 = arith.constant 0 : index
      %14 = vector.load %arg7[%c0_10, %c0_11] : memref<16x32xf32, #tpu.memory_space<vmem>>, vector<16x32xf32>
      %c0_12 = arith.constant 0 : index
      %c0_13 = arith.constant 0 : index
      %15 = vector.load %arg5[%c0_12, %c0_13] : memref<1x32xf32, #tpu.memory_space<vmem>>, vector<1x32xf32>
      %16 = vector.broadcast %15 : vector<1x32xf32> to vector<16x32xf32>
      %17 = arith.addf %14, %16 : vector<16x32xf32>
      %c0_14 = arith.constant 0 : index
      %c0_15 = arith.constant 0 : index
      %18 = vector.load %arg6[%c0_14, %c0_15] : memref<16x32xf32, #tpu.memory_space<vmem>>, vector<16x32xf32>
      tpu.vector_store %arg6[%c0_14, %c0_15], %17 {strides = array<i32>} : memref<16x32xf32, #tpu.memory_space<vmem>>, vector<16x32xf32>,
    } else {
    }
    return
  }
  func.func @transform_0(%arg0: i32, %arg1: i32, %arg2: i32) -> (i32, i32) {
    %c0_i32 = arith.constant 0 : i32
    return %arg0, %arg2 : i32, i32
  }
  func.func @transform_1(%arg0: i32, %arg1: i32, %arg2: i32) -> (i32, i32) {
    %c0_i32 = arith.constant 0 : i32
    return %arg2, %arg1 : i32, i32
  }
  func.func @transform_2(%arg0: i32, %arg1: i32, %arg2: i32) -> (i32, i32) {
    %c0_i32 = arith.constant 0 : i32
    %c0_i32_0 = arith.constant 0 : i32
    return %c0_i32, %arg1 : i32, i32
  }
  func.func @transform_3(%arg0: i32, %arg1: i32, %arg2: i32) -> (i32, i32) {
    %c0_i32 = arith.constant 0 : i32
    return %arg0, %arg1 : i32, i32
  }
}

module attributes {stable_mosaic.version = 11 : i64} {
  func.func @_self_attn_block_kernel(%arg0: i32, %arg1: memref<1x8x96xf32, #tpu.memory_space<vmem>>, %arg2: memref<1x8x32xf32, #tpu.memory_space<vmem>>, %arg3: memref<1x1x8xf32, #tpu.memory_space<vmem>>, %arg4: memref<32x32xf32, #tpu.memory_space<vmem>>, %arg5: memref<1x32xf32, #tpu.memory_space<vmem>>, %arg6: memref<1x32xf32, #tpu.memory_space<vmem>>, %arg7: memref<1x32xf32, #tpu.memory_space<vmem>>, %arg8: memref<1x8x32xf32, #tpu.memory_space<vmem>>) attributes {dimension_semantics = [#tpu.dimension_semantics<parallel>], iteration_bounds = array<i64: 2>, scalar_prefetch = 0 : i64, scratch_operands = 0 : i64, tpu.core_type = #tpu.core_type<tc>, window_params = [{transform_indices = @transform_0, window_bounds = array<i64: 1, 8, 96>}, {transform_indices = @transform_1, window_bounds = array<i64: 1, 8, 32>}, {transform_indices = @transform_2, window_bounds = array<i64: 1, 1, 8>}, {pipeline_mode = #tpu.pipeline_mode<synchronous>, transform_indices = @transform_3, window_bounds = array<i64: 32, 32>}, {pipeline_mode = #tpu.pipeline_mode<synchronous>, transform_indices = @transform_4, window_bounds = array<i64: 1, 32>}, {pipeline_mode = #tpu.pipeline_mode<synchronous>, transform_indices = @transform_5, window_bounds = array<i64: 1, 32>}, {pipeline_mode = #tpu.pipeline_mode<synchronous>, transform_indices = @transform_6, window_bounds = array<i64: 1, 32>}, {transform_indices = @transform_7, window_bounds = array<i64: 1, 8, 32>}]} {
    %c0 = arith.constant 0 : index
    %c0_0 = arith.constant 0 : index
    %c0_1 = arith.constant 0 : index
    %0 = vector.load %arg1[%c0, %c0_0, %c0_1] : memref<1x8x96xf32, #tpu.memory_space<vmem>>, vector<1x8x32xf32>
    %1 = vector.shape_cast %0 : vector<1x8x32xf32> to vector<8x32xf32>
    %c0_2 = arith.constant 0 : index
    %c0_3 = arith.constant 0 : index
    %c32 = arith.constant 32 : index
    %2 = vector.load %arg1[%c0_2, %c0_3, %c32] : memref<1x8x96xf32, #tpu.memory_space<vmem>>, vector<1x8x32xf32>
    %3 = vector.shape_cast %2 : vector<1x8x32xf32> to vector<8x32xf32>
    %c0_4 = arith.constant 0 : index
    %c0_5 = arith.constant 0 : index
    %c64 = arith.constant 64 : index
    %4 = vector.load %arg1[%c0_4, %c0_5, %c64] : memref<1x8x96xf32, #tpu.memory_space<vmem>>, vector<1x8x32xf32>
    %5 = vector.shape_cast %4 : vector<1x8x32xf32> to vector<8x32xf32>
    %c0_6 = arith.constant 0 : index
    %c0_7 = arith.constant 0 : index
    %c0_8 = arith.constant 0 : index
    %6 = vector.load %arg3[%c0_6, %c0_7, %c0_8] : memref<1x1x8xf32, #tpu.memory_space<vmem>>, vector<1x1x8xf32>
    %7 = vector.shape_cast %6 : vector<1x1x8xf32> to vector<1x8xf32>
    %8 = vector.extract_strided_slice %1 {offsets = [0, 0], sizes = [8, 8], strides = [1, 1]} : vector<8x32xf32> to vector<8x8xf32>
    %9 = arith.truncf %8 : vector<8x8xf32> to vector<8x8xbf16>
    %10 = vector.extract_strided_slice %3 {offsets = [0, 0], sizes = [8, 8], strides = [1, 1]} : vector<8x32xf32> to vector<8x8xf32>
    %11 = arith.truncf %10 : vector<8x8xf32> to vector<8x8xbf16>
    %12 = vector.extract_strided_slice %5 {offsets = [0, 0], sizes = [8, 8], strides = [1, 1]} : vector<8x32xf32> to vector<8x8xf32>
    %13 = arith.truncf %12 : vector<8x8xf32> to vector<8x8xbf16>
    %cst = arith.constant dense<0.000000e+00> : vector<8x8xf32>
    %14 = tpu.matmul %9, %11, %cst {dimension_numbers = #tpu.dot_dimension_numbers<[1], [1], [0], [0], [0, 0, 1, 0], [], []>} : vector<8x8xbf16>, vector<8x8xbf16>, vector<8x8xf32> -> vector<8x8xf32>
    %cst_9 = arith.constant 0.353553385 : f32
    %15 = vector.broadcast %cst_9 : f32 to vector<8x8xf32>
    %16 = arith.mulf %14, %15 : vector<8x8xf32>
    %17 = vector.broadcast %7 : vector<1x8xf32> to vector<8x8xf32>
    %18 = arith.addf %16, %17 : vector<8x8xf32>
    %cst_10 = arith.constant dense<0xFF800000> : vector<8xf32>
    %19 = vector.multi_reduction <maximumf>, %18, %cst_10 [1] : vector<8x8xf32> to vector<8xf32>
    %20 = vector.shape_cast %19 : vector<8xf32> to vector<8x1xf32>
    %21 = vector.broadcast %20 : vector<8x1xf32> to vector<8x8xf32>
    %22 = arith.subf %18, %21 : vector<8x8xf32>
    %23 = math.exp %22 : vector<8x8xf32>
    %cst_11 = arith.constant dense<0.000000e+00> : vector<8xf32>
    %24 = vector.multi_reduction <add>, %23, %cst_11 [1] : vector<8x8xf32> to vector<8xf32>
    %25 = vector.shape_cast %24 : vector<8xf32> to vector<8x1xf32>
    %26 = tpu.reciprocal %25 {approx = true} : vector<8x1xf32> -> vector<8x1xf32>
    %27 = vector.broadcast %26 : vector<8x1xf32> to vector<8x8xf32>
    %28 = arith.mulf %23, %27 : vector<8x8xf32>
    %29 = arith.truncf %28 : vector<8x8xf32> to vector<8x8xbf16>
    %cst_12 = arith.constant dense<0.000000e+00> : vector<8x8xf32>
    %30 = tpu.matmul %29, %13, %cst_12 {dimension_numbers = #tpu.dot_dimension_numbers<[1], [0], [0], [1], [0, 0, 1, 1], [], []>} : vector<8x8xbf16>, vector<8x8xbf16>, vector<8x8xf32> -> vector<8x8xf32>
    %31 = vector.extract_strided_slice %1 {offsets = [0, 8], sizes = [8, 8], strides = [1, 1]} : vector<8x32xf32> to vector<8x8xf32>
    %32 = arith.truncf %31 : vector<8x8xf32> to vector<8x8xbf16>
    %33 = vector.extract_strided_slice %3 {offsets = [0, 8], sizes = [8, 8], strides = [1, 1]} : vector<8x32xf32> to vector<8x8xf32>
    %34 = arith.truncf %33 : vector<8x8xf32> to vector<8x8xbf16>
    %35 = vector.extract_strided_slice %5 {offsets = [0, 8], sizes = [8, 8], strides = [1, 1]} : vector<8x32xf32> to vector<8x8xf32>
    %36 = arith.truncf %35 : vector<8x8xf32> to vector<8x8xbf16>
    %cst_13 = arith.constant dense<0.000000e+00> : vector<8x8xf32>
    %37 = tpu.matmul %32, %34, %cst_13 {dimension_numbers = #tpu.dot_dimension_numbers<[1], [1], [0], [0], [0, 0, 1, 0], [], []>} : vector<8x8xbf16>, vector<8x8xbf16>, vector<8x8xf32> -> vector<8x8xf32>
    %cst_14 = arith.constant 0.353553385 : f32
    %38 = vector.broadcast %cst_14 : f32 to vector<8x8xf32>
    %39 = arith.mulf %37, %38 : vector<8x8xf32>
    %40 = vector.broadcast %7 : vector<1x8xf32> to vector<8x8xf32>
    %41 = arith.addf %39, %40 : vector<8x8xf32>
    %cst_15 = arith.constant dense<0xFF800000> : vector<8xf32>
    %42 = vector.multi_reduction <maximumf>, %41, %cst_15 [1] : vector<8x8xf32> to vector<8xf32>
    %43 = vector.shape_cast %42 : vector<8xf32> to vector<8x1xf32>
    %44 = vector.broadcast %43 : vector<8x1xf32> to vector<8x8xf32>
    %45 = arith.subf %41, %44 : vector<8x8xf32>
    %46 = math.exp %45 : vector<8x8xf32>
    %cst_16 = arith.constant dense<0.000000e+00> : vector<8xf32>
    %47 = vector.multi_reduction <add>, %46, %cst_16 [1] : vector<8x8xf32> to vector<8xf32>
    %48 = vector.shape_cast %47 : vector<8xf32> to vector<8x1xf32>
    %49 = tpu.reciprocal %48 {approx = true} : vector<8x1xf32> -> vector<8x1xf32>
    %50 = vector.broadcast %49 : vector<8x1xf32> to vector<8x8xf32>
    %51 = arith.mulf %46, %50 : vector<8x8xf32>
    %52 = arith.truncf %51 : vector<8x8xf32> to vector<8x8xbf16>
    %cst_17 = arith.constant dense<0.000000e+00> : vector<8x8xf32>
    %53 = tpu.matmul %52, %36, %cst_17 {dimension_numbers = #tpu.dot_dimension_numbers<[1], [0], [0], [1], [0, 0, 1, 1], [], []>} : vector<8x8xbf16>, vector<8x8xbf16>, vector<8x8xf32> -> vector<8x8xf32>
    %54 = vector.extract_strided_slice %1 {offsets = [0, 16], sizes = [8, 8], strides = [1, 1]} : vector<8x32xf32> to vector<8x8xf32>
    %55 = arith.truncf %54 : vector<8x8xf32> to vector<8x8xbf16>
    %56 = vector.extract_strided_slice %3 {offsets = [0, 16], sizes = [8, 8], strides = [1, 1]} : vector<8x32xf32> to vector<8x8xf32>
    %57 = arith.truncf %56 : vector<8x8xf32> to vector<8x8xbf16>
    %58 = vector.extract_strided_slice %5 {offsets = [0, 16], sizes = [8, 8], strides = [1, 1]} : vector<8x32xf32> to vector<8x8xf32>
    %59 = arith.truncf %58 : vector<8x8xf32> to vector<8x8xbf16>
    %cst_18 = arith.constant dense<0.000000e+00> : vector<8x8xf32>
    %60 = tpu.matmul %55, %57, %cst_18 {dimension_numbers = #tpu.dot_dimension_numbers<[1], [1], [0], [0], [0, 0, 1, 0], [], []>} : vector<8x8xbf16>, vector<8x8xbf16>, vector<8x8xf32> -> vector<8x8xf32>
    %cst_19 = arith.constant 0.353553385 : f32
    %61 = vector.broadcast %cst_19 : f32 to vector<8x8xf32>
    %62 = arith.mulf %60, %61 : vector<8x8xf32>
    %63 = vector.broadcast %7 : vector<1x8xf32> to vector<8x8xf32>
    %64 = arith.addf %62, %63 : vector<8x8xf32>
    %cst_20 = arith.constant dense<0xFF800000> : vector<8xf32>
    %65 = vector.multi_reduction <maximumf>, %64, %cst_20 [1] : vector<8x8xf32> to vector<8xf32>
    %66 = vector.shape_cast %65 : vector<8xf32> to vector<8x1xf32>
    %67 = vector.broadcast %66 : vector<8x1xf32> to vector<8x8xf32>
    %68 = arith.subf %64, %67 : vector<8x8xf32>
    %69 = math.exp %68 : vector<8x8xf32>
    %cst_21 = arith.constant dense<0.000000e+00> : vector<8xf32>
    %70 = vector.multi_reduction <add>, %69, %cst_21 [1] : vector<8x8xf32> to vector<8xf32>
    %71 = vector.shape_cast %70 : vector<8xf32> to vector<8x1xf32>
    %72 = tpu.reciprocal %71 {approx = true} : vector<8x1xf32> -> vector<8x1xf32>
    %73 = vector.broadcast %72 : vector<8x1xf32> to vector<8x8xf32>
    %74 = arith.mulf %69, %73 : vector<8x8xf32>
    %75 = arith.truncf %74 : vector<8x8xf32> to vector<8x8xbf16>
    %cst_22 = arith.constant dense<0.000000e+00> : vector<8x8xf32>
    %76 = tpu.matmul %75, %59, %cst_22 {dimension_numbers = #tpu.dot_dimension_numbers<[1], [0], [0], [1], [0, 0, 1, 1], [], []>} : vector<8x8xbf16>, vector<8x8xbf16>, vector<8x8xf32> -> vector<8x8xf32>
    %77 = vector.extract_strided_slice %1 {offsets = [0, 24], sizes = [8, 8], strides = [1, 1]} : vector<8x32xf32> to vector<8x8xf32>
    %78 = arith.truncf %77 : vector<8x8xf32> to vector<8x8xbf16>
    %79 = vector.extract_strided_slice %3 {offsets = [0, 24], sizes = [8, 8], strides = [1, 1]} : vector<8x32xf32> to vector<8x8xf32>
    %80 = arith.truncf %79 : vector<8x8xf32> to vector<8x8xbf16>
    %81 = vector.extract_strided_slice %5 {offsets = [0, 24], sizes = [8, 8], strides = [1, 1]} : vector<8x32xf32> to vector<8x8xf32>
    %82 = arith.truncf %81 : vector<8x8xf32> to vector<8x8xbf16>
    %cst_23 = arith.constant dense<0.000000e+00> : vector<8x8xf32>
    %83 = tpu.matmul %78, %80, %cst_23 {dimension_numbers = #tpu.dot_dimension_numbers<[1], [1], [0], [0], [0, 0, 1, 0], [], []>} : vector<8x8xbf16>, vector<8x8xbf16>, vector<8x8xf32> -> vector<8x8xf32>
    %cst_24 = arith.constant 0.353553385 : f32
    %84 = vector.broadcast %cst_24 : f32 to vector<8x8xf32>
    %85 = arith.mulf %83, %84 : vector<8x8xf32>
    %86 = vector.broadcast %7 : vector<1x8xf32> to vector<8x8xf32>
    %87 = arith.addf %85, %86 : vector<8x8xf32>
    %cst_25 = arith.constant dense<0xFF800000> : vector<8xf32>
    %88 = vector.multi_reduction <maximumf>, %87, %cst_25 [1] : vector<8x8xf32> to vector<8xf32>
    %89 = vector.shape_cast %88 : vector<8xf32> to vector<8x1xf32>
    %90 = vector.broadcast %89 : vector<8x1xf32> to vector<8x8xf32>
    %91 = arith.subf %87, %90 : vector<8x8xf32>
    %92 = math.exp %91 : vector<8x8xf32>
    %cst_26 = arith.constant dense<0.000000e+00> : vector<8xf32>
    %93 = vector.multi_reduction <add>, %92, %cst_26 [1] : vector<8x8xf32> to vector<8xf32>
    %94 = vector.shape_cast %93 : vector<8xf32> to vector<8x1xf32>
    %95 = tpu.reciprocal %94 {approx = true} : vector<8x1xf32> -> vector<8x1xf32>
    %96 = vector.broadcast %95 : vector<8x1xf32> to vector<8x8xf32>
    %97 = arith.mulf %92, %96 : vector<8x8xf32>
    %98 = arith.truncf %97 : vector<8x8xf32> to vector<8x8xbf16>
    %cst_27 = arith.constant dense<0.000000e+00> : vector<8x8xf32>
    %99 = tpu.matmul %98, %82, %cst_27 {dimension_numbers = #tpu.dot_dimension_numbers<[1], [0], [0], [1], [0, 0, 1, 1], [], []>} : vector<8x8xbf16>, vector<8x8xbf16>, vector<8x8xf32> -> vector<8x8xf32>
    %100 = tpu.concatenate %30, %53, %76, %99 in 1 : vector<8x8xf32>, vector<8x8xf32>, vector<8x8xf32>, vector<8x8xf32> -> vector<8x32xf32>
    %c0_28 = arith.constant 0 : index
    %c0_29 = arith.constant 0 : index
    %c0_30 = arith.constant 0 : index
    %101 = vector.load %arg2[%c0_28, %c0_29, %c0_30] : memref<1x8x32xf32, #tpu.memory_space<vmem>>, vector<1x8x32xf32>
    %102 = vector.shape_cast %101 : vector<1x8x32xf32> to vector<8x32xf32>
    %c0_31 = arith.constant 0 : index
    %c0_32 = arith.constant 0 : index
    %103 = vector.load %arg4[%c0_31, %c0_32] : memref<32x32xf32, #tpu.memory_space<vmem>>, vector<32x32xf32>
    %c0_33 = arith.constant 0 : index
    %c0_34 = arith.constant 0 : index
    %104 = vector.load %arg5[%c0_33, %c0_34] : memref<1x32xf32, #tpu.memory_space<vmem>>, vector<1x32xf32>
    %c0_35 = arith.constant 0 : index
    %c0_36 = arith.constant 0 : index
    %105 = vector.load %arg6[%c0_35, %c0_36] : memref<1x32xf32, #tpu.memory_space<vmem>>, vector<1x32xf32>
    %c0_37 = arith.constant 0 : index
    %c0_38 = arith.constant 0 : index
    %106 = vector.load %arg7[%c0_37, %c0_38] : memref<1x32xf32, #tpu.memory_space<vmem>>, vector<1x32xf32>
    %107 = arith.truncf %100 : vector<8x32xf32> to vector<8x32xbf16>
    %108 = arith.truncf %103 : vector<32x32xf32> to vector<32x32xbf16>
    %cst_39 = arith.constant dense<0.000000e+00> : vector<8x32xf32>
    %109 = tpu.matmul %107, %108, %cst_39 {dimension_numbers = #tpu.dot_dimension_numbers<[1], [0], [0], [1], [0, 0, 1, 1], [], []>} : vector<8x32xbf16>, vector<32x32xbf16>, vector<8x32xf32> -> vector<8x32xf32>
    %110 = vector.broadcast %104 : vector<1x32xf32> to vector<8x32xf32>
    %111 = arith.addf %109, %110 : vector<8x32xf32>
    %112 = arith.addf %102, %111 : vector<8x32xf32>
    %cst_40 = arith.constant dense<0.000000e+00> : vector<8xf32>
    %113 = vector.multi_reduction <add>, %112, %cst_40 [1] : vector<8x32xf32> to vector<8xf32>
    %114 = vector.shape_cast %113 : vector<8xf32> to vector<8x1xf32>
    %cst_41 = arith.constant 3.200000e+01 : f32
    %115 = vector.broadcast %cst_41 : f32 to vector<8x1xf32>
    %116 = arith.divf %114, %115 : vector<8x1xf32>
    %117 = vector.broadcast %116 : vector<8x1xf32> to vector<8x32xf32>
    %118 = arith.subf %112, %117 : vector<8x32xf32>
    %119 = arith.mulf %118, %118 : vector<8x32xf32>
    %cst_42 = arith.constant dense<0.000000e+00> : vector<8xf32>
    %120 = vector.multi_reduction <add>, %119, %cst_42 [1] : vector<8x32xf32> to vector<8xf32>
    %121 = vector.shape_cast %120 : vector<8xf32> to vector<8x1xf32>
    %cst_43 = arith.constant 3.200000e+01 : f32
    %122 = vector.broadcast %cst_43 : f32 to vector<8x1xf32>
    %123 = arith.divf %121, %122 : vector<8x1xf32>
    %cst_44 = arith.constant 9.99999974E-6 : f32
    %124 = vector.broadcast %cst_44 : f32 to vector<8x1xf32>
    %125 = arith.addf %123, %124 : vector<8x1xf32>
    %126 = math.rsqrt %125 : vector<8x1xf32>
    %127 = vector.broadcast %126 : vector<8x1xf32> to vector<8x32xf32>
    %128 = arith.mulf %118, %127 : vector<8x32xf32>
    %129 = vector.broadcast %105 : vector<1x32xf32> to vector<8x32xf32>
    %130 = arith.mulf %128, %129 : vector<8x32xf32>
    %131 = vector.broadcast %106 : vector<1x32xf32> to vector<8x32xf32>
    %132 = arith.addf %130, %131 : vector<8x32xf32>
    %c0_45 = arith.constant 0 : index
    %c0_46 = arith.constant 0 : index
    %c0_47 = arith.constant 0 : index
    %133 = vector.load %arg8[%c0_45, %c0_46, %c0_47] : memref<1x8x32xf32, #tpu.memory_space<vmem>>, vector<1x8x32xf32>
    %134 = vector.shape_cast %133 : vector<1x8x32xf32> to vector<8x32xf32>
    %135 = vector.shape_cast %132 : vector<8x32xf32> to vector<1x8x32xf32>
    tpu.vector_store %arg8[%c0_45, %c0_46, %c0_47], %135 {strides = array<i32>} : memref<1x8x32xf32, #tpu.memory_space<vmem>>, vector<1x8x32xf32>,
    return
  }
  func.func @transform_0(%arg0: i32) -> (i32, i32, i32) {
    %c0_i32 = arith.constant 0 : i32
    %c0_i32_0 = arith.constant 0 : i32
    %c0_i32_1 = arith.constant 0 : i32
    return %arg0, %c0_i32, %c0_i32_0 : i32, i32, i32
  }
  func.func @transform_1(%arg0: i32) -> (i32, i32, i32) {
    %c0_i32 = arith.constant 0 : i32
    %c0_i32_0 = arith.constant 0 : i32
    %c0_i32_1 = arith.constant 0 : i32
    return %arg0, %c0_i32, %c0_i32_0 : i32, i32, i32
  }
  func.func @transform_2(%arg0: i32) -> (i32, i32, i32) {
    %c0_i32 = arith.constant 0 : i32
    %c0_i32_0 = arith.constant 0 : i32
    %c0_i32_1 = arith.constant 0 : i32
    return %arg0, %c0_i32, %c0_i32_0 : i32, i32, i32
  }
  func.func @transform_3(%arg0: i32) -> (i32, i32) {
    %c0_i32 = arith.constant 0 : i32
    %c0_i32_0 = arith.constant 0 : i32
    %c0_i32_1 = arith.constant 0 : i32
    return %c0_i32, %c0_i32_0 : i32, i32
  }
  func.func @transform_4(%arg0: i32) -> (i32, i32) {
    %c0_i32 = arith.constant 0 : i32
    %c0_i32_0 = arith.constant 0 : i32
    %c0_i32_1 = arith.constant 0 : i32
    return %c0_i32, %c0_i32_0 : i32, i32
  }
  func.func @transform_5(%arg0: i32) -> (i32, i32) {
    %c0_i32 = arith.constant 0 : i32
    %c0_i32_0 = arith.constant 0 : i32
    %c0_i32_1 = arith.constant 0 : i32
    return %c0_i32, %c0_i32_0 : i32, i32
  }
  func.func @transform_6(%arg0: i32) -> (i32, i32) {
    %c0_i32 = arith.constant 0 : i32
    %c0_i32_0 = arith.constant 0 : i32
    %c0_i32_1 = arith.constant 0 : i32
    return %c0_i32, %c0_i32_0 : i32, i32
  }
  func.func @transform_7(%arg0: i32) -> (i32, i32, i32) {
    %c0_i32 = arith.constant 0 : i32
    %c0_i32_0 = arith.constant 0 : i32
    %c0_i32_1 = arith.constant 0 : i32
    return %arg0, %c0_i32, %c0_i32_0 : i32, i32, i32
  }
}

module attributes {stable_mosaic.version = 11 : i64} {
  func.func @_ffn_ln_kernel(%arg0: i32, %arg1: memref<16x32xf32, #tpu.memory_space<vmem>>, %arg2: memref<32x64xf32, #tpu.memory_space<vmem>>, %arg3: memref<1x64xf32, #tpu.memory_space<vmem>>, %arg4: memref<64x32xf32, #tpu.memory_space<vmem>>, %arg5: memref<1x32xf32, #tpu.memory_space<vmem>>, %arg6: memref<1x32xf32, #tpu.memory_space<vmem>>, %arg7: memref<1x32xf32, #tpu.memory_space<vmem>>, %arg8: memref<16x32xf32, #tpu.memory_space<vmem>>) attributes {dimension_semantics = [#tpu.dimension_semantics<parallel>], iteration_bounds = array<i64: 1>, scalar_prefetch = 0 : i64, scratch_operands = 0 : i64, tpu.core_type = #tpu.core_type<tc>, window_params = [{transform_indices = @transform_0, window_bounds = array<i64: 16, 32>}, {pipeline_mode = #tpu.pipeline_mode<synchronous>, transform_indices = @transform_1, window_bounds = array<i64: 32, 64>}, {pipeline_mode = #tpu.pipeline_mode<synchronous>, transform_indices = @transform_2, window_bounds = array<i64: 1, 64>}, {pipeline_mode = #tpu.pipeline_mode<synchronous>, transform_indices = @transform_3, window_bounds = array<i64: 64, 32>}, {pipeline_mode = #tpu.pipeline_mode<synchronous>, transform_indices = @transform_4, window_bounds = array<i64: 1, 32>}, {pipeline_mode = #tpu.pipeline_mode<synchronous>, transform_indices = @transform_5, window_bounds = array<i64: 1, 32>}, {pipeline_mode = #tpu.pipeline_mode<synchronous>, transform_indices = @transform_6, window_bounds = array<i64: 1, 32>}, {transform_indices = @transform_7, window_bounds = array<i64: 16, 32>}]} {
    %c0 = arith.constant 0 : index
    %c0_0 = arith.constant 0 : index
    %0 = vector.load %arg1[%c0, %c0_0] : memref<16x32xf32, #tpu.memory_space<vmem>>, vector<16x32xf32>
    %1 = arith.truncf %0 : vector<16x32xf32> to vector<16x32xbf16>
    %c0_1 = arith.constant 0 : index
    %c0_2 = arith.constant 0 : index
    %2 = vector.load %arg2[%c0_1, %c0_2] : memref<32x64xf32, #tpu.memory_space<vmem>>, vector<32x64xf32>
    %3 = arith.truncf %2 : vector<32x64xf32> to vector<32x64xbf16>
    %cst = arith.constant dense<0.000000e+00> : vector<16x64xf32>
    %4 = tpu.matmul %1, %3, %cst {dimension_numbers = #tpu.dot_dimension_numbers<[1], [0], [0], [1], [0, 0, 1, 1], [], []>} : vector<16x32xbf16>, vector<32x64xbf16>, vector<16x64xf32> -> vector<16x64xf32>
    %c0_3 = arith.constant 0 : index
    %c0_4 = arith.constant 0 : index
    %5 = vector.load %arg3[%c0_3, %c0_4] : memref<1x64xf32, #tpu.memory_space<vmem>>, vector<1x64xf32>
    %6 = vector.broadcast %5 : vector<1x64xf32> to vector<16x64xf32>
    %7 = arith.addf %4, %6 : vector<16x64xf32>
    %cst_5 = arith.constant 0.000000e+00 : f32
    %8 = vector.broadcast %cst_5 : f32 to vector<16x64xf32>
    %9 = arith.maximumf %7, %8 : vector<16x64xf32>
    %10 = arith.truncf %9 : vector<16x64xf32> to vector<16x64xbf16>
    %c0_6 = arith.constant 0 : index
    %c0_7 = arith.constant 0 : index
    %11 = vector.load %arg4[%c0_6, %c0_7] : memref<64x32xf32, #tpu.memory_space<vmem>>, vector<64x32xf32>
    %12 = arith.truncf %11 : vector<64x32xf32> to vector<64x32xbf16>
    %cst_8 = arith.constant dense<0.000000e+00> : vector<16x32xf32>
    %13 = tpu.matmul %10, %12, %cst_8 {dimension_numbers = #tpu.dot_dimension_numbers<[1], [0], [0], [1], [0, 0, 1, 1], [], []>} : vector<16x64xbf16>, vector<64x32xbf16>, vector<16x32xf32> -> vector<16x32xf32>
    %c0_9 = arith.constant 0 : index
    %c0_10 = arith.constant 0 : index
    %14 = vector.load %arg5[%c0_9, %c0_10] : memref<1x32xf32, #tpu.memory_space<vmem>>, vector<1x32xf32>
    %15 = vector.broadcast %14 : vector<1x32xf32> to vector<16x32xf32>
    %16 = arith.addf %13, %15 : vector<16x32xf32>
    %17 = arith.addf %16, %0 : vector<16x32xf32>
    %c0_11 = arith.constant 0 : index
    %c0_12 = arith.constant 0 : index
    %18 = vector.load %arg6[%c0_11, %c0_12] : memref<1x32xf32, #tpu.memory_space<vmem>>, vector<1x32xf32>
    %c0_13 = arith.constant 0 : index
    %c0_14 = arith.constant 0 : index
    %19 = vector.load %arg7[%c0_13, %c0_14] : memref<1x32xf32, #tpu.memory_space<vmem>>, vector<1x32xf32>
    %cst_15 = arith.constant dense<0.000000e+00> : vector<16xf32>
    %20 = vector.multi_reduction <add>, %17, %cst_15 [1] : vector<16x32xf32> to vector<16xf32>
    %21 = vector.shape_cast %20 : vector<16xf32> to vector<16x1xf32>
    %cst_16 = arith.constant 3.200000e+01 : f32
    %22 = vector.broadcast %cst_16 : f32 to vector<16x1xf32>
    %23 = arith.divf %21, %22 : vector<16x1xf32>
    %24 = vector.broadcast %23 : vector<16x1xf32> to vector<16x32xf32>
    %25 = arith.subf %17, %24 : vector<16x32xf32>
    %26 = arith.mulf %25, %25 : vector<16x32xf32>
    %cst_17 = arith.constant dense<0.000000e+00> : vector<16xf32>
    %27 = vector.multi_reduction <add>, %26, %cst_17 [1] : vector<16x32xf32> to vector<16xf32>
    %28 = vector.shape_cast %27 : vector<16xf32> to vector<16x1xf32>
    %cst_18 = arith.constant 3.200000e+01 : f32
    %29 = vector.broadcast %cst_18 : f32 to vector<16x1xf32>
    %30 = arith.divf %28, %29 : vector<16x1xf32>
    %cst_19 = arith.constant 9.99999974E-6 : f32
    %31 = vector.broadcast %cst_19 : f32 to vector<16x1xf32>
    %32 = arith.addf %30, %31 : vector<16x1xf32>
    %33 = math.rsqrt %32 : vector<16x1xf32>
    %34 = vector.broadcast %33 : vector<16x1xf32> to vector<16x32xf32>
    %35 = arith.mulf %25, %34 : vector<16x32xf32>
    %36 = vector.broadcast %18 : vector<1x32xf32> to vector<16x32xf32>
    %37 = arith.mulf %35, %36 : vector<16x32xf32>
    %38 = vector.broadcast %19 : vector<1x32xf32> to vector<16x32xf32>
    %39 = arith.addf %37, %38 : vector<16x32xf32>
    %c0_20 = arith.constant 0 : index
    %c0_21 = arith.constant 0 : index
    %40 = vector.load %arg8[%c0_20, %c0_21] : memref<16x32xf32, #tpu.memory_space<vmem>>, vector<16x32xf32>
    tpu.vector_store %arg8[%c0_20, %c0_21], %39 {strides = array<i32>} : memref<16x32xf32, #tpu.memory_space<vmem>>, vector<16x32xf32>,
    return
  }
  func.func @transform_0(%arg0: i32) -> (i32, i32) {
    %c0_i32 = arith.constant 0 : i32
    %c0_i32_0 = arith.constant 0 : i32
    return %arg0, %c0_i32 : i32, i32
  }
  func.func @transform_1(%arg0: i32) -> (i32, i32) {
    %c0_i32 = arith.constant 0 : i32
    %c0_i32_0 = arith.constant 0 : i32
    %c0_i32_1 = arith.constant 0 : i32
    return %c0_i32, %c0_i32_0 : i32, i32
  }
  func.func @transform_2(%arg0: i32) -> (i32, i32) {
    %c0_i32 = arith.constant 0 : i32
    %c0_i32_0 = arith.constant 0 : i32
    %c0_i32_1 = arith.constant 0 : i32
    return %c0_i32, %c0_i32_0 : i32, i32
  }
  func.func @transform_3(%arg0: i32) -> (i32, i32) {
    %c0_i32 = arith.constant 0 : i32
    %c0_i32_0 = arith.constant 0 : i32
    %c0_i32_1 = arith.constant 0 : i32
    return %c0_i32, %c0_i32_0 : i32, i32
  }
  func.func @transform_4(%arg0: i32) -> (i32, i32) {
    %c0_i32 = arith.constant 0 : i32
    %c0_i32_0 = arith.constant 0 : i32
    %c0_i32_1 = arith.constant 0 : i32
    return %c0_i32, %c0_i32_0 : i32, i32
  }
  func.func @transform_5(%arg0: i32) -> (i32, i32) {
    %c0_i32 = arith.constant 0 : i32
    %c0_i32_0 = arith.constant 0 : i32
    %c0_i32_1 = arith.constant 0 : i32
    return %c0_i32, %c0_i32_0 : i32, i32
  }
  func.func @transform_6(%arg0: i32) -> (i32, i32) {
    %c0_i32 = arith.constant 0 : i32
    %c0_i32_0 = arith.constant 0 : i32
    %c0_i32_1 = arith.constant 0 : i32
    return %c0_i32, %c0_i32_0 : i32, i32
  }
  func.func @transform_7(%arg0: i32) -> (i32, i32) {
    %c0_i32 = arith.constant 0 : i32
    %c0_i32_0 = arith.constant 0 : i32
    return %arg0, %c0_i32 : i32, i32
  }
}

module attributes {stable_mosaic.version = 11 : i64} {
  func.func @_linear_kernel(%arg0: i32, %arg1: i32, %arg2: i32, %arg3: memref<16x32xf32, #tpu.memory_space<vmem>>, %arg4: memref<32x64xf32, #tpu.memory_space<vmem>>, %arg5: memref<1x64xf32, #tpu.memory_space<vmem>>, %arg6: memref<16x64xf32, #tpu.memory_space<vmem>>, %arg7: memref<16x64xf32, #tpu.memory_space<vmem>>) attributes {dimension_semantics = [#tpu.dimension_semantics<parallel>, #tpu.dimension_semantics<parallel>, #tpu.dimension_semantics<arbitrary>], iteration_bounds = array<i64: 1, 1, 1>, scalar_prefetch = 0 : i64, scratch_operands = 1 : i64, tpu.core_type = #tpu.core_type<tc>, window_params = [{transform_indices = @transform_0, window_bounds = array<i64: 16, 32>}, {transform_indices = @transform_1, window_bounds = array<i64: 32, 64>}, {transform_indices = @transform_2, window_bounds = array<i64: 1, 64>}, {transform_indices = @transform_3, window_bounds = array<i64: 16, 64>}]} {
    %c0_i32 = arith.constant 0 : i32
    %0 = arith.cmpi eq, %arg2, %c0_i32 : i32
    %1 = arith.extui %0 : i1 to i32
    %c0_i32_0 = arith.constant 0 : i32
    %2 = arith.cmpi ne, %1, %c0_i32_0 : i32
    scf.if %2 {
      %cst_10 = arith.constant 0.000000e+00 : f32
      %14 = vector.broadcast %cst_10 : f32 to vector<16x64xf32>
      %c0_11 = arith.constant 0 : index
      %c0_12 = arith.constant 0 : index
      %15 = vector.load %arg7[%c0_11, %c0_12] : memref<16x64xf32, #tpu.memory_space<vmem>>, vector<16x64xf32>
      tpu.vector_store %arg7[%c0_11, %c0_12], %14 {strides = array<i32>} : memref<16x64xf32, #tpu.memory_space<vmem>>, vector<16x64xf32>,
    } else {
    }
    %c0 = arith.constant 0 : index
    %c0_1 = arith.constant 0 : index
    %3 = vector.load %arg7[%c0, %c0_1] : memref<16x64xf32, #tpu.memory_space<vmem>>, vector<16x64xf32>
    %c0_2 = arith.constant 0 : index
    %c0_3 = arith.constant 0 : index
    %4 = vector.load %arg3[%c0_2, %c0_3] : memref<16x32xf32, #tpu.memory_space<vmem>>, vector<16x32xf32>
    %5 = arith.truncf %4 : vector<16x32xf32> to vector<16x32xbf16>
    %c0_4 = arith.constant 0 : index
    %c0_5 = arith.constant 0 : index
    %6 = vector.load %arg4[%c0_4, %c0_5] : memref<32x64xf32, #tpu.memory_space<vmem>>, vector<32x64xf32>
    %7 = arith.truncf %6 : vector<32x64xf32> to vector<32x64xbf16>
    %cst = arith.constant dense<0.000000e+00> : vector<16x64xf32>
    %8 = tpu.matmul %5, %7, %cst {dimension_numbers = #tpu.dot_dimension_numbers<[1], [0], [0], [1], [0, 0, 1, 1], [], []>} : vector<16x32xbf16>, vector<32x64xbf16>, vector<16x64xf32> -> vector<16x64xf32>
    %9 = arith.addf %3, %8 : vector<16x64xf32>
    %c0_6 = arith.constant 0 : index
    %c0_7 = arith.constant 0 : index
    %10 = vector.load %arg7[%c0_6, %c0_7] : memref<16x64xf32, #tpu.memory_space<vmem>>, vector<16x64xf32>
    tpu.vector_store %arg7[%c0_6, %c0_7], %9 {strides = array<i32>} : memref<16x64xf32, #tpu.memory_space<vmem>>, vector<16x64xf32>,
    %c0_i32_8 = arith.constant 0 : i32
    %11 = arith.cmpi eq, %arg2, %c0_i32_8 : i32
    %12 = arith.extui %11 : i1 to i32
    %c0_i32_9 = arith.constant 0 : i32
    %13 = arith.cmpi ne, %12, %c0_i32_9 : i32
    scf.if %13 {
      %c0_10 = arith.constant 0 : index
      %c0_11 = arith.constant 0 : index
      %14 = vector.load %arg7[%c0_10, %c0_11] : memref<16x64xf32, #tpu.memory_space<vmem>>, vector<16x64xf32>
      %c0_12 = arith.constant 0 : index
      %c0_13 = arith.constant 0 : index
      %15 = vector.load %arg5[%c0_12, %c0_13] : memref<1x64xf32, #tpu.memory_space<vmem>>, vector<1x64xf32>
      %16 = vector.broadcast %15 : vector<1x64xf32> to vector<16x64xf32>
      %17 = arith.addf %14, %16 : vector<16x64xf32>
      %c0_14 = arith.constant 0 : index
      %c0_15 = arith.constant 0 : index
      %18 = vector.load %arg6[%c0_14, %c0_15] : memref<16x64xf32, #tpu.memory_space<vmem>>, vector<16x64xf32>
      tpu.vector_store %arg6[%c0_14, %c0_15], %17 {strides = array<i32>} : memref<16x64xf32, #tpu.memory_space<vmem>>, vector<16x64xf32>,
    } else {
    }
    return
  }
  func.func @transform_0(%arg0: i32, %arg1: i32, %arg2: i32) -> (i32, i32) {
    %c0_i32 = arith.constant 0 : i32
    return %arg0, %arg2 : i32, i32
  }
  func.func @transform_1(%arg0: i32, %arg1: i32, %arg2: i32) -> (i32, i32) {
    %c0_i32 = arith.constant 0 : i32
    return %arg2, %arg1 : i32, i32
  }
  func.func @transform_2(%arg0: i32, %arg1: i32, %arg2: i32) -> (i32, i32) {
    %c0_i32 = arith.constant 0 : i32
    %c0_i32_0 = arith.constant 0 : i32
    return %c0_i32, %arg1 : i32, i32
  }
  func.func @transform_3(%arg0: i32, %arg1: i32, %arg2: i32) -> (i32, i32) {
    %c0_i32 = arith.constant 0 : i32
    return %arg0, %arg1 : i32, i32
  }
}

module attributes {stable_mosaic.version = 11 : i64} {
  func.func @_self_attn_block_kernel(%arg0: i32, %arg1: memref<1x8x96xf32, #tpu.memory_space<vmem>>, %arg2: memref<1x8x32xf32, #tpu.memory_space<vmem>>, %arg3: memref<1x8x8xf32, #tpu.memory_space<vmem>>, %arg4: memref<32x32xf32, #tpu.memory_space<vmem>>, %arg5: memref<1x32xf32, #tpu.memory_space<vmem>>, %arg6: memref<1x32xf32, #tpu.memory_space<vmem>>, %arg7: memref<1x32xf32, #tpu.memory_space<vmem>>, %arg8: memref<1x8x32xf32, #tpu.memory_space<vmem>>) attributes {dimension_semantics = [#tpu.dimension_semantics<parallel>], iteration_bounds = array<i64: 2>, scalar_prefetch = 0 : i64, scratch_operands = 0 : i64, tpu.core_type = #tpu.core_type<tc>, window_params = [{transform_indices = @transform_0, window_bounds = array<i64: 1, 8, 96>}, {transform_indices = @transform_1, window_bounds = array<i64: 1, 8, 32>}, {transform_indices = @transform_2, window_bounds = array<i64: 1, 8, 8>}, {pipeline_mode = #tpu.pipeline_mode<synchronous>, transform_indices = @transform_3, window_bounds = array<i64: 32, 32>}, {pipeline_mode = #tpu.pipeline_mode<synchronous>, transform_indices = @transform_4, window_bounds = array<i64: 1, 32>}, {pipeline_mode = #tpu.pipeline_mode<synchronous>, transform_indices = @transform_5, window_bounds = array<i64: 1, 32>}, {pipeline_mode = #tpu.pipeline_mode<synchronous>, transform_indices = @transform_6, window_bounds = array<i64: 1, 32>}, {transform_indices = @transform_7, window_bounds = array<i64: 1, 8, 32>}]} {
    %c0 = arith.constant 0 : index
    %c0_0 = arith.constant 0 : index
    %c0_1 = arith.constant 0 : index
    %0 = vector.load %arg1[%c0, %c0_0, %c0_1] : memref<1x8x96xf32, #tpu.memory_space<vmem>>, vector<1x8x32xf32>
    %1 = vector.shape_cast %0 : vector<1x8x32xf32> to vector<8x32xf32>
    %c0_2 = arith.constant 0 : index
    %c0_3 = arith.constant 0 : index
    %c32 = arith.constant 32 : index
    %2 = vector.load %arg1[%c0_2, %c0_3, %c32] : memref<1x8x96xf32, #tpu.memory_space<vmem>>, vector<1x8x32xf32>
    %3 = vector.shape_cast %2 : vector<1x8x32xf32> to vector<8x32xf32>
    %c0_4 = arith.constant 0 : index
    %c0_5 = arith.constant 0 : index
    %c64 = arith.constant 64 : index
    %4 = vector.load %arg1[%c0_4, %c0_5, %c64] : memref<1x8x96xf32, #tpu.memory_space<vmem>>, vector<1x8x32xf32>
    %5 = vector.shape_cast %4 : vector<1x8x32xf32> to vector<8x32xf32>
    %c0_6 = arith.constant 0 : index
    %c0_7 = arith.constant 0 : index
    %c0_8 = arith.constant 0 : index
    %6 = vector.load %arg3[%c0_6, %c0_7, %c0_8] : memref<1x8x8xf32, #tpu.memory_space<vmem>>, vector<1x8x8xf32>
    %7 = vector.shape_cast %6 : vector<1x8x8xf32> to vector<8x8xf32>
    %8 = vector.extract_strided_slice %1 {offsets = [0, 0], sizes = [8, 8], strides = [1, 1]} : vector<8x32xf32> to vector<8x8xf32>
    %9 = arith.truncf %8 : vector<8x8xf32> to vector<8x8xbf16>
    %10 = vector.extract_strided_slice %3 {offsets = [0, 0], sizes = [8, 8], strides = [1, 1]} : vector<8x32xf32> to vector<8x8xf32>
    %11 = arith.truncf %10 : vector<8x8xf32> to vector<8x8xbf16>
    %12 = vector.extract_strided_slice %5 {offsets = [0, 0], sizes = [8, 8], strides = [1, 1]} : vector<8x32xf32> to vector<8x8xf32>
    %13 = arith.truncf %12 : vector<8x8xf32> to vector<8x8xbf16>
    %cst = arith.constant dense<0.000000e+00> : vector<8x8xf32>
    %14 = tpu.matmul %9, %11, %cst {dimension_numbers = #tpu.dot_dimension_numbers<[1], [1], [0], [0], [0, 0, 1, 0], [], []>} : vector<8x8xbf16>, vector<8x8xbf16>, vector<8x8xf32> -> vector<8x8xf32>
    %cst_9 = arith.constant 0.353553385 : f32
    %15 = vector.broadcast %cst_9 : f32 to vector<8x8xf32>
    %16 = arith.mulf %14, %15 : vector<8x8xf32>
    %17 = arith.addf %16, %7 : vector<8x8xf32>
    %cst_10 = arith.constant dense<0xFF800000> : vector<8xf32>
    %18 = vector.multi_reduction <maximumf>, %17, %cst_10 [1] : vector<8x8xf32> to vector<8xf32>
    %19 = vector.shape_cast %18 : vector<8xf32> to vector<8x1xf32>
    %20 = vector.broadcast %19 : vector<8x1xf32> to vector<8x8xf32>
    %21 = arith.subf %17, %20 : vector<8x8xf32>
    %22 = math.exp %21 : vector<8x8xf32>
    %cst_11 = arith.constant dense<0.000000e+00> : vector<8xf32>
    %23 = vector.multi_reduction <add>, %22, %cst_11 [1] : vector<8x8xf32> to vector<8xf32>
    %24 = vector.shape_cast %23 : vector<8xf32> to vector<8x1xf32>
    %25 = tpu.reciprocal %24 {approx = true} : vector<8x1xf32> -> vector<8x1xf32>
    %26 = vector.broadcast %25 : vector<8x1xf32> to vector<8x8xf32>
    %27 = arith.mulf %22, %26 : vector<8x8xf32>
    %28 = arith.truncf %27 : vector<8x8xf32> to vector<8x8xbf16>
    %cst_12 = arith.constant dense<0.000000e+00> : vector<8x8xf32>
    %29 = tpu.matmul %28, %13, %cst_12 {dimension_numbers = #tpu.dot_dimension_numbers<[1], [0], [0], [1], [0, 0, 1, 1], [], []>} : vector<8x8xbf16>, vector<8x8xbf16>, vector<8x8xf32> -> vector<8x8xf32>
    %30 = vector.extract_strided_slice %1 {offsets = [0, 8], sizes = [8, 8], strides = [1, 1]} : vector<8x32xf32> to vector<8x8xf32>
    %31 = arith.truncf %30 : vector<8x8xf32> to vector<8x8xbf16>
    %32 = vector.extract_strided_slice %3 {offsets = [0, 8], sizes = [8, 8], strides = [1, 1]} : vector<8x32xf32> to vector<8x8xf32>
    %33 = arith.truncf %32 : vector<8x8xf32> to vector<8x8xbf16>
    %34 = vector.extract_strided_slice %5 {offsets = [0, 8], sizes = [8, 8], strides = [1, 1]} : vector<8x32xf32> to vector<8x8xf32>
    %35 = arith.truncf %34 : vector<8x8xf32> to vector<8x8xbf16>
    %cst_13 = arith.constant dense<0.000000e+00> : vector<8x8xf32>
    %36 = tpu.matmul %31, %33, %cst_13 {dimension_numbers = #tpu.dot_dimension_numbers<[1], [1], [0], [0], [0, 0, 1, 0], [], []>} : vector<8x8xbf16>, vector<8x8xbf16>, vector<8x8xf32> -> vector<8x8xf32>
    %cst_14 = arith.constant 0.353553385 : f32
    %37 = vector.broadcast %cst_14 : f32 to vector<8x8xf32>
    %38 = arith.mulf %36, %37 : vector<8x8xf32>
    %39 = arith.addf %38, %7 : vector<8x8xf32>
    %cst_15 = arith.constant dense<0xFF800000> : vector<8xf32>
    %40 = vector.multi_reduction <maximumf>, %39, %cst_15 [1] : vector<8x8xf32> to vector<8xf32>
    %41 = vector.shape_cast %40 : vector<8xf32> to vector<8x1xf32>
    %42 = vector.broadcast %41 : vector<8x1xf32> to vector<8x8xf32>
    %43 = arith.subf %39, %42 : vector<8x8xf32>
    %44 = math.exp %43 : vector<8x8xf32>
    %cst_16 = arith.constant dense<0.000000e+00> : vector<8xf32>
    %45 = vector.multi_reduction <add>, %44, %cst_16 [1] : vector<8x8xf32> to vector<8xf32>
    %46 = vector.shape_cast %45 : vector<8xf32> to vector<8x1xf32>
    %47 = tpu.reciprocal %46 {approx = true} : vector<8x1xf32> -> vector<8x1xf32>
    %48 = vector.broadcast %47 : vector<8x1xf32> to vector<8x8xf32>
    %49 = arith.mulf %44, %48 : vector<8x8xf32>
    %50 = arith.truncf %49 : vector<8x8xf32> to vector<8x8xbf16>
    %cst_17 = arith.constant dense<0.000000e+00> : vector<8x8xf32>
    %51 = tpu.matmul %50, %35, %cst_17 {dimension_numbers = #tpu.dot_dimension_numbers<[1], [0], [0], [1], [0, 0, 1, 1], [], []>} : vector<8x8xbf16>, vector<8x8xbf16>, vector<8x8xf32> -> vector<8x8xf32>
    %52 = vector.extract_strided_slice %1 {offsets = [0, 16], sizes = [8, 8], strides = [1, 1]} : vector<8x32xf32> to vector<8x8xf32>
    %53 = arith.truncf %52 : vector<8x8xf32> to vector<8x8xbf16>
    %54 = vector.extract_strided_slice %3 {offsets = [0, 16], sizes = [8, 8], strides = [1, 1]} : vector<8x32xf32> to vector<8x8xf32>
    %55 = arith.truncf %54 : vector<8x8xf32> to vector<8x8xbf16>
    %56 = vector.extract_strided_slice %5 {offsets = [0, 16], sizes = [8, 8], strides = [1, 1]} : vector<8x32xf32> to vector<8x8xf32>
    %57 = arith.truncf %56 : vector<8x8xf32> to vector<8x8xbf16>
    %cst_18 = arith.constant dense<0.000000e+00> : vector<8x8xf32>
    %58 = tpu.matmul %53, %55, %cst_18 {dimension_numbers = #tpu.dot_dimension_numbers<[1], [1], [0], [0], [0, 0, 1, 0], [], []>} : vector<8x8xbf16>, vector<8x8xbf16>, vector<8x8xf32> -> vector<8x8xf32>
    %cst_19 = arith.constant 0.353553385 : f32
    %59 = vector.broadcast %cst_19 : f32 to vector<8x8xf32>
    %60 = arith.mulf %58, %59 : vector<8x8xf32>
    %61 = arith.addf %60, %7 : vector<8x8xf32>
    %cst_20 = arith.constant dense<0xFF800000> : vector<8xf32>
    %62 = vector.multi_reduction <maximumf>, %61, %cst_20 [1] : vector<8x8xf32> to vector<8xf32>
    %63 = vector.shape_cast %62 : vector<8xf32> to vector<8x1xf32>
    %64 = vector.broadcast %63 : vector<8x1xf32> to vector<8x8xf32>
    %65 = arith.subf %61, %64 : vector<8x8xf32>
    %66 = math.exp %65 : vector<8x8xf32>
    %cst_21 = arith.constant dense<0.000000e+00> : vector<8xf32>
    %67 = vector.multi_reduction <add>, %66, %cst_21 [1] : vector<8x8xf32> to vector<8xf32>
    %68 = vector.shape_cast %67 : vector<8xf32> to vector<8x1xf32>
    %69 = tpu.reciprocal %68 {approx = true} : vector<8x1xf32> -> vector<8x1xf32>
    %70 = vector.broadcast %69 : vector<8x1xf32> to vector<8x8xf32>
    %71 = arith.mulf %66, %70 : vector<8x8xf32>
    %72 = arith.truncf %71 : vector<8x8xf32> to vector<8x8xbf16>
    %cst_22 = arith.constant dense<0.000000e+00> : vector<8x8xf32>
    %73 = tpu.matmul %72, %57, %cst_22 {dimension_numbers = #tpu.dot_dimension_numbers<[1], [0], [0], [1], [0, 0, 1, 1], [], []>} : vector<8x8xbf16>, vector<8x8xbf16>, vector<8x8xf32> -> vector<8x8xf32>
    %74 = vector.extract_strided_slice %1 {offsets = [0, 24], sizes = [8, 8], strides = [1, 1]} : vector<8x32xf32> to vector<8x8xf32>
    %75 = arith.truncf %74 : vector<8x8xf32> to vector<8x8xbf16>
    %76 = vector.extract_strided_slice %3 {offsets = [0, 24], sizes = [8, 8], strides = [1, 1]} : vector<8x32xf32> to vector<8x8xf32>
    %77 = arith.truncf %76 : vector<8x8xf32> to vector<8x8xbf16>
    %78 = vector.extract_strided_slice %5 {offsets = [0, 24], sizes = [8, 8], strides = [1, 1]} : vector<8x32xf32> to vector<8x8xf32>
    %79 = arith.truncf %78 : vector<8x8xf32> to vector<8x8xbf16>
    %cst_23 = arith.constant dense<0.000000e+00> : vector<8x8xf32>
    %80 = tpu.matmul %75, %77, %cst_23 {dimension_numbers = #tpu.dot_dimension_numbers<[1], [1], [0], [0], [0, 0, 1, 0], [], []>} : vector<8x8xbf16>, vector<8x8xbf16>, vector<8x8xf32> -> vector<8x8xf32>
    %cst_24 = arith.constant 0.353553385 : f32
    %81 = vector.broadcast %cst_24 : f32 to vector<8x8xf32>
    %82 = arith.mulf %80, %81 : vector<8x8xf32>
    %83 = arith.addf %82, %7 : vector<8x8xf32>
    %cst_25 = arith.constant dense<0xFF800000> : vector<8xf32>
    %84 = vector.multi_reduction <maximumf>, %83, %cst_25 [1] : vector<8x8xf32> to vector<8xf32>
    %85 = vector.shape_cast %84 : vector<8xf32> to vector<8x1xf32>
    %86 = vector.broadcast %85 : vector<8x1xf32> to vector<8x8xf32>
    %87 = arith.subf %83, %86 : vector<8x8xf32>
    %88 = math.exp %87 : vector<8x8xf32>
    %cst_26 = arith.constant dense<0.000000e+00> : vector<8xf32>
    %89 = vector.multi_reduction <add>, %88, %cst_26 [1] : vector<8x8xf32> to vector<8xf32>
    %90 = vector.shape_cast %89 : vector<8xf32> to vector<8x1xf32>
    %91 = tpu.reciprocal %90 {approx = true} : vector<8x1xf32> -> vector<8x1xf32>
    %92 = vector.broadcast %91 : vector<8x1xf32> to vector<8x8xf32>
    %93 = arith.mulf %88, %92 : vector<8x8xf32>
    %94 = arith.truncf %93 : vector<8x8xf32> to vector<8x8xbf16>
    %cst_27 = arith.constant dense<0.000000e+00> : vector<8x8xf32>
    %95 = tpu.matmul %94, %79, %cst_27 {dimension_numbers = #tpu.dot_dimension_numbers<[1], [0], [0], [1], [0, 0, 1, 1], [], []>} : vector<8x8xbf16>, vector<8x8xbf16>, vector<8x8xf32> -> vector<8x8xf32>
    %96 = tpu.concatenate %29, %51, %73, %95 in 1 : vector<8x8xf32>, vector<8x8xf32>, vector<8x8xf32>, vector<8x8xf32> -> vector<8x32xf32>
    %c0_28 = arith.constant 0 : index
    %c0_29 = arith.constant 0 : index
    %c0_30 = arith.constant 0 : index
    %97 = vector.load %arg2[%c0_28, %c0_29, %c0_30] : memref<1x8x32xf32, #tpu.memory_space<vmem>>, vector<1x8x32xf32>
    %98 = vector.shape_cast %97 : vector<1x8x32xf32> to vector<8x32xf32>
    %c0_31 = arith.constant 0 : index
    %c0_32 = arith.constant 0 : index
    %99 = vector.load %arg4[%c0_31, %c0_32] : memref<32x32xf32, #tpu.memory_space<vmem>>, vector<32x32xf32>
    %c0_33 = arith.constant 0 : index
    %c0_34 = arith.constant 0 : index
    %100 = vector.load %arg5[%c0_33, %c0_34] : memref<1x32xf32, #tpu.memory_space<vmem>>, vector<1x32xf32>
    %c0_35 = arith.constant 0 : index
    %c0_36 = arith.constant 0 : index
    %101 = vector.load %arg6[%c0_35, %c0_36] : memref<1x32xf32, #tpu.memory_space<vmem>>, vector<1x32xf32>
    %c0_37 = arith.constant 0 : index
    %c0_38 = arith.constant 0 : index
    %102 = vector.load %arg7[%c0_37, %c0_38] : memref<1x32xf32, #tpu.memory_space<vmem>>, vector<1x32xf32>
    %103 = arith.truncf %96 : vector<8x32xf32> to vector<8x32xbf16>
    %104 = arith.truncf %99 : vector<32x32xf32> to vector<32x32xbf16>
    %cst_39 = arith.constant dense<0.000000e+00> : vector<8x32xf32>
    %105 = tpu.matmul %103, %104, %cst_39 {dimension_numbers = #tpu.dot_dimension_numbers<[1], [0], [0], [1], [0, 0, 1, 1], [], []>} : vector<8x32xbf16>, vector<32x32xbf16>, vector<8x32xf32> -> vector<8x32xf32>
    %106 = vector.broadcast %100 : vector<1x32xf32> to vector<8x32xf32>
    %107 = arith.addf %105, %106 : vector<8x32xf32>
    %108 = arith.addf %98, %107 : vector<8x32xf32>
    %cst_40 = arith.constant dense<0.000000e+00> : vector<8xf32>
    %109 = vector.multi_reduction <add>, %108, %cst_40 [1] : vector<8x32xf32> to vector<8xf32>
    %110 = vector.shape_cast %109 : vector<8xf32> to vector<8x1xf32>
    %cst_41 = arith.constant 3.200000e+01 : f32
    %111 = vector.broadcast %cst_41 : f32 to vector<8x1xf32>
    %112 = arith.divf %110, %111 : vector<8x1xf32>
    %113 = vector.broadcast %112 : vector<8x1xf32> to vector<8x32xf32>
    %114 = arith.subf %108, %113 : vector<8x32xf32>
    %115 = arith.mulf %114, %114 : vector<8x32xf32>
    %cst_42 = arith.constant dense<0.000000e+00> : vector<8xf32>
    %116 = vector.multi_reduction <add>, %115, %cst_42 [1] : vector<8x32xf32> to vector<8xf32>
    %117 = vector.shape_cast %116 : vector<8xf32> to vector<8x1xf32>
    %cst_43 = arith.constant 3.200000e+01 : f32
    %118 = vector.broadcast %cst_43 : f32 to vector<8x1xf32>
    %119 = arith.divf %117, %118 : vector<8x1xf32>
    %cst_44 = arith.constant 9.99999974E-6 : f32
    %120 = vector.broadcast %cst_44 : f32 to vector<8x1xf32>
    %121 = arith.addf %119, %120 : vector<8x1xf32>
    %122 = math.rsqrt %121 : vector<8x1xf32>
    %123 = vector.broadcast %122 : vector<8x1xf32> to vector<8x32xf32>
    %124 = arith.mulf %114, %123 : vector<8x32xf32>
    %125 = vector.broadcast %101 : vector<1x32xf32> to vector<8x32xf32>
    %126 = arith.mulf %124, %125 : vector<8x32xf32>
    %127 = vector.broadcast %102 : vector<1x32xf32> to vector<8x32xf32>
    %128 = arith.addf %126, %127 : vector<8x32xf32>
    %c0_45 = arith.constant 0 : index
    %c0_46 = arith.constant 0 : index
    %c0_47 = arith.constant 0 : index
    %129 = vector.load %arg8[%c0_45, %c0_46, %c0_47] : memref<1x8x32xf32, #tpu.memory_space<vmem>>, vector<1x8x32xf32>
    %130 = vector.shape_cast %129 : vector<1x8x32xf32> to vector<8x32xf32>
    %131 = vector.shape_cast %128 : vector<8x32xf32> to vector<1x8x32xf32>
    tpu.vector_store %arg8[%c0_45, %c0_46, %c0_47], %131 {strides = array<i32>} : memref<1x8x32xf32, #tpu.memory_space<vmem>>, vector<1x8x32xf32>,
    return
  }
  func.func @transform_0(%arg0: i32) -> (i32, i32, i32) {
    %c0_i32 = arith.constant 0 : i32
    %c0_i32_0 = arith.constant 0 : i32
    %c0_i32_1 = arith.constant 0 : i32
    return %arg0, %c0_i32, %c0_i32_0 : i32, i32, i32
  }
  func.func @transform_1(%arg0: i32) -> (i32, i32, i32) {
    %c0_i32 = arith.constant 0 : i32
    %c0_i32_0 = arith.constant 0 : i32
    %c0_i32_1 = arith.constant 0 : i32
    return %arg0, %c0_i32, %c0_i32_0 : i32, i32, i32
  }
  func.func @transform_2(%arg0: i32) -> (i32, i32, i32) {
    %c0_i32 = arith.constant 0 : i32
    %c0_i32_0 = arith.constant 0 : i32
    %c0_i32_1 = arith.constant 0 : i32
    return %arg0, %c0_i32, %c0_i32_0 : i32, i32, i32
  }
  func.func @transform_3(%arg0: i32) -> (i32, i32) {
    %c0_i32 = arith.constant 0 : i32
    %c0_i32_0 = arith.constant 0 : i32
    %c0_i32_1 = arith.constant 0 : i32
    return %c0_i32, %c0_i32_0 : i32, i32
  }
  func.func @transform_4(%arg0: i32) -> (i32, i32) {
    %c0_i32 = arith.constant 0 : i32
    %c0_i32_0 = arith.constant 0 : i32
    %c0_i32_1 = arith.constant 0 : i32
    return %c0_i32, %c0_i32_0 : i32, i32
  }
  func.func @transform_5(%arg0: i32) -> (i32, i32) {
    %c0_i32 = arith.constant 0 : i32
    %c0_i32_0 = arith.constant 0 : i32
    %c0_i32_1 = arith.constant 0 : i32
    return %c0_i32, %c0_i32_0 : i32, i32
  }
  func.func @transform_6(%arg0: i32) -> (i32, i32) {
    %c0_i32 = arith.constant 0 : i32
    %c0_i32_0 = arith.constant 0 : i32
    %c0_i32_1 = arith.constant 0 : i32
    return %c0_i32, %c0_i32_0 : i32, i32
  }
  func.func @transform_7(%arg0: i32) -> (i32, i32, i32) {
    %c0_i32 = arith.constant 0 : i32
    %c0_i32_0 = arith.constant 0 : i32
    %c0_i32_1 = arith.constant 0 : i32
    return %arg0, %c0_i32, %c0_i32_0 : i32, i32, i32
  }
}

module attributes {stable_mosaic.version = 11 : i64} {
  func.func @_linear_kernel(%arg0: i32, %arg1: i32, %arg2: i32, %arg3: memref<16x32xf32, #tpu.memory_space<vmem>>, %arg4: memref<32x32xf32, #tpu.memory_space<vmem>>, %arg5: memref<1x32xf32, #tpu.memory_space<vmem>>, %arg6: memref<16x32xf32, #tpu.memory_space<vmem>>, %arg7: memref<16x32xf32, #tpu.memory_space<vmem>>) attributes {dimension_semantics = [#tpu.dimension_semantics<parallel>, #tpu.dimension_semantics<parallel>, #tpu.dimension_semantics<arbitrary>], iteration_bounds = array<i64: 1, 1, 1>, scalar_prefetch = 0 : i64, scratch_operands = 1 : i64, tpu.core_type = #tpu.core_type<tc>, window_params = [{transform_indices = @transform_0, window_bounds = array<i64: 16, 32>}, {transform_indices = @transform_1, window_bounds = array<i64: 32, 32>}, {transform_indices = @transform_2, window_bounds = array<i64: 1, 32>}, {transform_indices = @transform_3, window_bounds = array<i64: 16, 32>}]} {
    %c0_i32 = arith.constant 0 : i32
    %0 = arith.cmpi eq, %arg2, %c0_i32 : i32
    %1 = arith.extui %0 : i1 to i32
    %c0_i32_0 = arith.constant 0 : i32
    %2 = arith.cmpi ne, %1, %c0_i32_0 : i32
    scf.if %2 {
      %cst_10 = arith.constant 0.000000e+00 : f32
      %14 = vector.broadcast %cst_10 : f32 to vector<16x32xf32>
      %c0_11 = arith.constant 0 : index
      %c0_12 = arith.constant 0 : index
      %15 = vector.load %arg7[%c0_11, %c0_12] : memref<16x32xf32, #tpu.memory_space<vmem>>, vector<16x32xf32>
      tpu.vector_store %arg7[%c0_11, %c0_12], %14 {strides = array<i32>} : memref<16x32xf32, #tpu.memory_space<vmem>>, vector<16x32xf32>,
    } else {
    }
    %c0 = arith.constant 0 : index
    %c0_1 = arith.constant 0 : index
    %3 = vector.load %arg7[%c0, %c0_1] : memref<16x32xf32, #tpu.memory_space<vmem>>, vector<16x32xf32>
    %c0_2 = arith.constant 0 : index
    %c0_3 = arith.constant 0 : index
    %4 = vector.load %arg3[%c0_2, %c0_3] : memref<16x32xf32, #tpu.memory_space<vmem>>, vector<16x32xf32>
    %5 = arith.truncf %4 : vector<16x32xf32> to vector<16x32xbf16>
    %c0_4 = arith.constant 0 : index
    %c0_5 = arith.constant 0 : index
    %6 = vector.load %arg4[%c0_4, %c0_5] : memref<32x32xf32, #tpu.memory_space<vmem>>, vector<32x32xf32>
    %7 = arith.truncf %6 : vector<32x32xf32> to vector<32x32xbf16>
    %cst = arith.constant dense<0.000000e+00> : vector<16x32xf32>
    %8 = tpu.matmul %5, %7, %cst {dimension_numbers = #tpu.dot_dimension_numbers<[1], [0], [0], [1], [0, 0, 1, 1], [], []>} : vector<16x32xbf16>, vector<32x32xbf16>, vector<16x32xf32> -> vector<16x32xf32>
    %9 = arith.addf %3, %8 : vector<16x32xf32>
    %c0_6 = arith.constant 0 : index
    %c0_7 = arith.constant 0 : index
    %10 = vector.load %arg7[%c0_6, %c0_7] : memref<16x32xf32, #tpu.memory_space<vmem>>, vector<16x32xf32>
    tpu.vector_store %arg7[%c0_6, %c0_7], %9 {strides = array<i32>} : memref<16x32xf32, #tpu.memory_space<vmem>>, vector<16x32xf32>,
    %c0_i32_8 = arith.constant 0 : i32
    %11 = arith.cmpi eq, %arg2, %c0_i32_8 : i32
    %12 = arith.extui %11 : i1 to i32
    %c0_i32_9 = arith.constant 0 : i32
    %13 = arith.cmpi ne, %12, %c0_i32_9 : i32
    scf.if %13 {
      %c0_10 = arith.constant 0 : index
      %c0_11 = arith.constant 0 : index
      %14 = vector.load %arg7[%c0_10, %c0_11] : memref<16x32xf32, #tpu.memory_space<vmem>>, vector<16x32xf32>
      %c0_12 = arith.constant 0 : index
      %c0_13 = arith.constant 0 : index
      %15 = vector.load %arg5[%c0_12, %c0_13] : memref<1x32xf32, #tpu.memory_space<vmem>>, vector<1x32xf32>
      %16 = vector.broadcast %15 : vector<1x32xf32> to vector<16x32xf32>
      %17 = arith.addf %14, %16 : vector<16x32xf32>
      %c0_14 = arith.constant 0 : index
      %c0_15 = arith.constant 0 : index
      %18 = vector.load %arg6[%c0_14, %c0_15] : memref<16x32xf32, #tpu.memory_space<vmem>>, vector<16x32xf32>
      tpu.vector_store %arg6[%c0_14, %c0_15], %17 {strides = array<i32>} : memref<16x32xf32, #tpu.memory_space<vmem>>, vector<16x32xf32>,
    } else {
    }
    return
  }
  func.func @transform_0(%arg0: i32, %arg1: i32, %arg2: i32) -> (i32, i32) {
    %c0_i32 = arith.constant 0 : i32
    return %arg0, %arg2 : i32, i32
  }
  func.func @transform_1(%arg0: i32, %arg1: i32, %arg2: i32) -> (i32, i32) {
    %c0_i32 = arith.constant 0 : i32
    return %arg2, %arg1 : i32, i32
  }
  func.func @transform_2(%arg0: i32, %arg1: i32, %arg2: i32) -> (i32, i32) {
    %c0_i32 = arith.constant 0 : i32
    %c0_i32_0 = arith.constant 0 : i32
    return %c0_i32, %arg1 : i32, i32
  }
  func.func @transform_3(%arg0: i32, %arg1: i32, %arg2: i32) -> (i32, i32) {
    %c0_i32 = arith.constant 0 : i32
    return %arg0, %arg1 : i32, i32
  }
}

module attributes {stable_mosaic.version = 11 : i64} {
  func.func @_ffn_ln_kernel(%arg0: i32, %arg1: memref<16x32xf32, #tpu.memory_space<vmem>>, %arg2: memref<32x64xf32, #tpu.memory_space<vmem>>, %arg3: memref<1x64xf32, #tpu.memory_space<vmem>>, %arg4: memref<64x32xf32, #tpu.memory_space<vmem>>, %arg5: memref<1x32xf32, #tpu.memory_space<vmem>>, %arg6: memref<1x32xf32, #tpu.memory_space<vmem>>, %arg7: memref<1x32xf32, #tpu.memory_space<vmem>>, %arg8: memref<16x32xf32, #tpu.memory_space<vmem>>) attributes {dimension_semantics = [#tpu.dimension_semantics<parallel>], iteration_bounds = array<i64: 1>, scalar_prefetch = 0 : i64, scratch_operands = 0 : i64, tpu.core_type = #tpu.core_type<tc>, window_params = [{transform_indices = @transform_0, window_bounds = array<i64: 16, 32>}, {pipeline_mode = #tpu.pipeline_mode<synchronous>, transform_indices = @transform_1, window_bounds = array<i64: 32, 64>}, {pipeline_mode = #tpu.pipeline_mode<synchronous>, transform_indices = @transform_2, window_bounds = array<i64: 1, 64>}, {pipeline_mode = #tpu.pipeline_mode<synchronous>, transform_indices = @transform_3, window_bounds = array<i64: 64, 32>}, {pipeline_mode = #tpu.pipeline_mode<synchronous>, transform_indices = @transform_4, window_bounds = array<i64: 1, 32>}, {pipeline_mode = #tpu.pipeline_mode<synchronous>, transform_indices = @transform_5, window_bounds = array<i64: 1, 32>}, {pipeline_mode = #tpu.pipeline_mode<synchronous>, transform_indices = @transform_6, window_bounds = array<i64: 1, 32>}, {transform_indices = @transform_7, window_bounds = array<i64: 16, 32>}]} {
    %c0 = arith.constant 0 : index
    %c0_0 = arith.constant 0 : index
    %0 = vector.load %arg1[%c0, %c0_0] : memref<16x32xf32, #tpu.memory_space<vmem>>, vector<16x32xf32>
    %1 = arith.truncf %0 : vector<16x32xf32> to vector<16x32xbf16>
    %c0_1 = arith.constant 0 : index
    %c0_2 = arith.constant 0 : index
    %2 = vector.load %arg2[%c0_1, %c0_2] : memref<32x64xf32, #tpu.memory_space<vmem>>, vector<32x64xf32>
    %3 = arith.truncf %2 : vector<32x64xf32> to vector<32x64xbf16>
    %cst = arith.constant dense<0.000000e+00> : vector<16x64xf32>
    %4 = tpu.matmul %1, %3, %cst {dimension_numbers = #tpu.dot_dimension_numbers<[1], [0], [0], [1], [0, 0, 1, 1], [], []>} : vector<16x32xbf16>, vector<32x64xbf16>, vector<16x64xf32> -> vector<16x64xf32>
    %c0_3 = arith.constant 0 : index
    %c0_4 = arith.constant 0 : index
    %5 = vector.load %arg3[%c0_3, %c0_4] : memref<1x64xf32, #tpu.memory_space<vmem>>, vector<1x64xf32>
    %6 = vector.broadcast %5 : vector<1x64xf32> to vector<16x64xf32>
    %7 = arith.addf %4, %6 : vector<16x64xf32>
    %cst_5 = arith.constant 0.000000e+00 : f32
    %8 = vector.broadcast %cst_5 : f32 to vector<16x64xf32>
    %9 = arith.maximumf %7, %8 : vector<16x64xf32>
    %10 = arith.truncf %9 : vector<16x64xf32> to vector<16x64xbf16>
    %c0_6 = arith.constant 0 : index
    %c0_7 = arith.constant 0 : index
    %11 = vector.load %arg4[%c0_6, %c0_7] : memref<64x32xf32, #tpu.memory_space<vmem>>, vector<64x32xf32>
    %12 = arith.truncf %11 : vector<64x32xf32> to vector<64x32xbf16>
    %cst_8 = arith.constant dense<0.000000e+00> : vector<16x32xf32>
    %13 = tpu.matmul %10, %12, %cst_8 {dimension_numbers = #tpu.dot_dimension_numbers<[1], [0], [0], [1], [0, 0, 1, 1], [], []>} : vector<16x64xbf16>, vector<64x32xbf16>, vector<16x32xf32> -> vector<16x32xf32>
    %c0_9 = arith.constant 0 : index
    %c0_10 = arith.constant 0 : index
    %14 = vector.load %arg5[%c0_9, %c0_10] : memref<1x32xf32, #tpu.memory_space<vmem>>, vector<1x32xf32>
    %15 = vector.broadcast %14 : vector<1x32xf32> to vector<16x32xf32>
    %16 = arith.addf %13, %15 : vector<16x32xf32>
    %17 = arith.addf %16, %0 : vector<16x32xf32>
    %c0_11 = arith.constant 0 : index
    %c0_12 = arith.constant 0 : index
    %18 = vector.load %arg6[%c0_11, %c0_12] : memref<1x32xf32, #tpu.memory_space<vmem>>, vector<1x32xf32>
    %c0_13 = arith.constant 0 : index
    %c0_14 = arith.constant 0 : index
    %19 = vector.load %arg7[%c0_13, %c0_14] : memref<1x32xf32, #tpu.memory_space<vmem>>, vector<1x32xf32>
    %cst_15 = arith.constant dense<0.000000e+00> : vector<16xf32>
    %20 = vector.multi_reduction <add>, %17, %cst_15 [1] : vector<16x32xf32> to vector<16xf32>
    %21 = vector.shape_cast %20 : vector<16xf32> to vector<16x1xf32>
    %cst_16 = arith.constant 3.200000e+01 : f32
    %22 = vector.broadcast %cst_16 : f32 to vector<16x1xf32>
    %23 = arith.divf %21, %22 : vector<16x1xf32>
    %24 = vector.broadcast %23 : vector<16x1xf32> to vector<16x32xf32>
    %25 = arith.subf %17, %24 : vector<16x32xf32>
    %26 = arith.mulf %25, %25 : vector<16x32xf32>
    %cst_17 = arith.constant dense<0.000000e+00> : vector<16xf32>
    %27 = vector.multi_reduction <add>, %26, %cst_17 [1] : vector<16x32xf32> to vector<16xf32>
    %28 = vector.shape_cast %27 : vector<16xf32> to vector<16x1xf32>
    %cst_18 = arith.constant 3.200000e+01 : f32
    %29 = vector.broadcast %cst_18 : f32 to vector<16x1xf32>
    %30 = arith.divf %28, %29 : vector<16x1xf32>
    %cst_19 = arith.constant 9.99999974E-6 : f32
    %31 = vector.broadcast %cst_19 : f32 to vector<16x1xf32>
    %32 = arith.addf %30, %31 : vector<16x1xf32>
    %33 = math.rsqrt %32 : vector<16x1xf32>
    %34 = vector.broadcast %33 : vector<16x1xf32> to vector<16x32xf32>
    %35 = arith.mulf %25, %34 : vector<16x32xf32>
    %36 = vector.broadcast %18 : vector<1x32xf32> to vector<16x32xf32>
    %37 = arith.mulf %35, %36 : vector<16x32xf32>
    %38 = vector.broadcast %19 : vector<1x32xf32> to vector<16x32xf32>
    %39 = arith.addf %37, %38 : vector<16x32xf32>
    %c0_20 = arith.constant 0 : index
    %c0_21 = arith.constant 0 : index
    %40 = vector.load %arg8[%c0_20, %c0_21] : memref<16x32xf32, #tpu.memory_space<vmem>>, vector<16x32xf32>
    tpu.vector_store %arg8[%c0_20, %c0_21], %39 {strides = array<i32>} : memref<16x32xf32, #tpu.memory_space<vmem>>, vector<16x32xf32>,
    return
  }
  func.func @transform_0(%arg0: i32) -> (i32, i32) {
    %c0_i32 = arith.constant 0 : i32
    %c0_i32_0 = arith.constant 0 : i32
    return %arg0, %c0_i32 : i32, i32
  }
  func.func @transform_1(%arg0: i32) -> (i32, i32) {
    %c0_i32 = arith.constant 0 : i32
    %c0_i32_0 = arith.constant 0 : i32
    %c0_i32_1 = arith.constant 0 : i32
    return %c0_i32, %c0_i32_0 : i32, i32
  }
  func.func @transform_2(%arg0: i32) -> (i32, i32) {
    %c0_i32 = arith.constant 0 : i32
    %c0_i32_0 = arith.constant 0 : i32
    %c0_i32_1 = arith.constant 0 : i32
    return %c0_i32, %c0_i32_0 : i32, i32
  }
  func.func @transform_3(%arg0: i32) -> (i32, i32) {
    %c0_i32 = arith.constant 0 : i32
    %c0_i32_0 = arith.constant 0 : i32
    %c0_i32_1 = arith.constant 0 : i32
    return %c0_i32, %c0_i32_0 : i32, i32
  }
  func.func @transform_4(%arg0: i32) -> (i32, i32) {
    %c0_i32 = arith.constant 0 : i32
    %c0_i32_0 = arith.constant 0 : i32
    %c0_i32_1 = arith.constant 0 : i32
    return %c0_i32, %c0_i32_0 : i32, i32
  }
  func.func @transform_5(%arg0: i32) -> (i32, i32) {
    %c0_i32 = arith.constant 0 : i32
    %c0_i32_0 = arith.constant 0 : i32
    %c0_i32_1 = arith.constant 0 : i32
    return %c0_i32, %c0_i32_0 : i32, i32
  }
  func.func @transform_6(%arg0: i32) -> (i32, i32) {
    %c0_i32 = arith.constant 0 : i32
    %c0_i32_0 = arith.constant 0 : i32
    %c0_i32_1 = arith.constant 0 : i32
    return %c0_i32, %c0_i32_0 : i32, i32
  }
  func.func @transform_7(%arg0: i32) -> (i32, i32) {
    %c0_i32 = arith.constant 0 : i32
    %c0_i32_0 = arith.constant 0 : i32
    return %arg0, %c0_i32 : i32, i32
  }
}

module attributes {stable_mosaic.version = 11 : i64} {
  func.func @_cross_attn_block_kernel(%arg0: i32, %arg1: memref<1x8x32xf32, #tpu.memory_space<vmem>>, %arg2: memref<1x8x64xf32, #tpu.memory_space<vmem>>, %arg3: memref<1x8x32xf32, #tpu.memory_space<vmem>>, %arg4: memref<1x1x8xf32, #tpu.memory_space<vmem>>, %arg5: memref<32x32xf32, #tpu.memory_space<vmem>>, %arg6: memref<1x32xf32, #tpu.memory_space<vmem>>, %arg7: memref<1x32xf32, #tpu.memory_space<vmem>>, %arg8: memref<1x32xf32, #tpu.memory_space<vmem>>, %arg9: memref<1x8x32xf32, #tpu.memory_space<vmem>>) attributes {dimension_semantics = [#tpu.dimension_semantics<parallel>], iteration_bounds = array<i64: 2>, scalar_prefetch = 0 : i64, scratch_operands = 0 : i64, tpu.core_type = #tpu.core_type<tc>, window_params = [{transform_indices = @transform_0, window_bounds = array<i64: 1, 8, 32>}, {transform_indices = @transform_1, window_bounds = array<i64: 1, 8, 64>}, {transform_indices = @transform_2, window_bounds = array<i64: 1, 8, 32>}, {transform_indices = @transform_3, window_bounds = array<i64: 1, 1, 8>}, {pipeline_mode = #tpu.pipeline_mode<synchronous>, transform_indices = @transform_4, window_bounds = array<i64: 32, 32>}, {pipeline_mode = #tpu.pipeline_mode<synchronous>, transform_indices = @transform_5, window_bounds = array<i64: 1, 32>}, {pipeline_mode = #tpu.pipeline_mode<synchronous>, transform_indices = @transform_6, window_bounds = array<i64: 1, 32>}, {pipeline_mode = #tpu.pipeline_mode<synchronous>, transform_indices = @transform_7, window_bounds = array<i64: 1, 32>}, {transform_indices = @transform_8, window_bounds = array<i64: 1, 8, 32>}]} {
    %c0 = arith.constant 0 : index
    %c0_0 = arith.constant 0 : index
    %c0_1 = arith.constant 0 : index
    %0 = vector.load %arg1[%c0, %c0_0, %c0_1] : memref<1x8x32xf32, #tpu.memory_space<vmem>>, vector<1x8x32xf32>
    %1 = vector.shape_cast %0 : vector<1x8x32xf32> to vector<8x32xf32>
    %c0_2 = arith.constant 0 : index
    %c0_3 = arith.constant 0 : index
    %c0_4 = arith.constant 0 : index
    %2 = vector.load %arg2[%c0_2, %c0_3, %c0_4] : memref<1x8x64xf32, #tpu.memory_space<vmem>>, vector<1x8x32xf32>
    %3 = vector.shape_cast %2 : vector<1x8x32xf32> to vector<8x32xf32>
    %c0_5 = arith.constant 0 : index
    %c0_6 = arith.constant 0 : index
    %c32 = arith.constant 32 : index
    %4 = vector.load %arg2[%c0_5, %c0_6, %c32] : memref<1x8x64xf32, #tpu.memory_space<vmem>>, vector<1x8x32xf32>
    %5 = vector.shape_cast %4 : vector<1x8x32xf32> to vector<8x32xf32>
    %c0_7 = arith.constant 0 : index
    %c0_8 = arith.constant 0 : index
    %c0_9 = arith.constant 0 : index
    %6 = vector.load %arg4[%c0_7, %c0_8, %c0_9] : memref<1x1x8xf32, #tpu.memory_space<vmem>>, vector<1x1x8xf32>
    %7 = vector.shape_cast %6 : vector<1x1x8xf32> to vector<1x8xf32>
    %8 = vector.extract_strided_slice %1 {offsets = [0, 0], sizes = [8, 8], strides = [1, 1]} : vector<8x32xf32> to vector<8x8xf32>
    %9 = arith.truncf %8 : vector<8x8xf32> to vector<8x8xbf16>
    %10 = vector.extract_strided_slice %3 {offsets = [0, 0], sizes = [8, 8], strides = [1, 1]} : vector<8x32xf32> to vector<8x8xf32>
    %11 = arith.truncf %10 : vector<8x8xf32> to vector<8x8xbf16>
    %12 = vector.extract_strided_slice %5 {offsets = [0, 0], sizes = [8, 8], strides = [1, 1]} : vector<8x32xf32> to vector<8x8xf32>
    %13 = arith.truncf %12 : vector<8x8xf32> to vector<8x8xbf16>
    %cst = arith.constant dense<0.000000e+00> : vector<8x8xf32>
    %14 = tpu.matmul %9, %11, %cst {dimension_numbers = #tpu.dot_dimension_numbers<[1], [1], [0], [0], [0, 0, 1, 0], [], []>} : vector<8x8xbf16>, vector<8x8xbf16>, vector<8x8xf32> -> vector<8x8xf32>
    %cst_10 = arith.constant 0.353553385 : f32
    %15 = vector.broadcast %cst_10 : f32 to vector<8x8xf32>
    %16 = arith.mulf %14, %15 : vector<8x8xf32>
    %17 = vector.broadcast %7 : vector<1x8xf32> to vector<8x8xf32>
    %18 = arith.addf %16, %17 : vector<8x8xf32>
    %cst_11 = arith.constant dense<0xFF800000> : vector<8xf32>
    %19 = vector.multi_reduction <maximumf>, %18, %cst_11 [1] : vector<8x8xf32> to vector<8xf32>
    %20 = vector.shape_cast %19 : vector<8xf32> to vector<8x1xf32>
    %21 = vector.broadcast %20 : vector<8x1xf32> to vector<8x8xf32>
    %22 = arith.subf %18, %21 : vector<8x8xf32>
    %23 = math.exp %22 : vector<8x8xf32>
    %cst_12 = arith.constant dense<0.000000e+00> : vector<8xf32>
    %24 = vector.multi_reduction <add>, %23, %cst_12 [1] : vector<8x8xf32> to vector<8xf32>
    %25 = vector.shape_cast %24 : vector<8xf32> to vector<8x1xf32>
    %26 = tpu.reciprocal %25 {approx = true} : vector<8x1xf32> -> vector<8x1xf32>
    %27 = vector.broadcast %26 : vector<8x1xf32> to vector<8x8xf32>
    %28 = arith.mulf %23, %27 : vector<8x8xf32>
    %29 = arith.truncf %28 : vector<8x8xf32> to vector<8x8xbf16>
    %cst_13 = arith.constant dense<0.000000e+00> : vector<8x8xf32>
    %30 = tpu.matmul %29, %13, %cst_13 {dimension_numbers = #tpu.dot_dimension_numbers<[1], [0], [0], [1], [0, 0, 1, 1], [], []>} : vector<8x8xbf16>, vector<8x8xbf16>, vector<8x8xf32> -> vector<8x8xf32>
    %31 = vector.extract_strided_slice %1 {offsets = [0, 8], sizes = [8, 8], strides = [1, 1]} : vector<8x32xf32> to vector<8x8xf32>
    %32 = arith.truncf %31 : vector<8x8xf32> to vector<8x8xbf16>
    %33 = vector.extract_strided_slice %3 {offsets = [0, 8], sizes = [8, 8], strides = [1, 1]} : vector<8x32xf32> to vector<8x8xf32>
    %34 = arith.truncf %33 : vector<8x8xf32> to vector<8x8xbf16>
    %35 = vector.extract_strided_slice %5 {offsets = [0, 8], sizes = [8, 8], strides = [1, 1]} : vector<8x32xf32> to vector<8x8xf32>
    %36 = arith.truncf %35 : vector<8x8xf32> to vector<8x8xbf16>
    %cst_14 = arith.constant dense<0.000000e+00> : vector<8x8xf32>
    %37 = tpu.matmul %32, %34, %cst_14 {dimension_numbers = #tpu.dot_dimension_numbers<[1], [1], [0], [0], [0, 0, 1, 0], [], []>} : vector<8x8xbf16>, vector<8x8xbf16>, vector<8x8xf32> -> vector<8x8xf32>
    %cst_15 = arith.constant 0.353553385 : f32
    %38 = vector.broadcast %cst_15 : f32 to vector<8x8xf32>
    %39 = arith.mulf %37, %38 : vector<8x8xf32>
    %40 = vector.broadcast %7 : vector<1x8xf32> to vector<8x8xf32>
    %41 = arith.addf %39, %40 : vector<8x8xf32>
    %cst_16 = arith.constant dense<0xFF800000> : vector<8xf32>
    %42 = vector.multi_reduction <maximumf>, %41, %cst_16 [1] : vector<8x8xf32> to vector<8xf32>
    %43 = vector.shape_cast %42 : vector<8xf32> to vector<8x1xf32>
    %44 = vector.broadcast %43 : vector<8x1xf32> to vector<8x8xf32>
    %45 = arith.subf %41, %44 : vector<8x8xf32>
    %46 = math.exp %45 : vector<8x8xf32>
    %cst_17 = arith.constant dense<0.000000e+00> : vector<8xf32>
    %47 = vector.multi_reduction <add>, %46, %cst_17 [1] : vector<8x8xf32> to vector<8xf32>
    %48 = vector.shape_cast %47 : vector<8xf32> to vector<8x1xf32>
    %49 = tpu.reciprocal %48 {approx = true} : vector<8x1xf32> -> vector<8x1xf32>
    %50 = vector.broadcast %49 : vector<8x1xf32> to vector<8x8xf32>
    %51 = arith.mulf %46, %50 : vector<8x8xf32>
    %52 = arith.truncf %51 : vector<8x8xf32> to vector<8x8xbf16>
    %cst_18 = arith.constant dense<0.000000e+00> : vector<8x8xf32>
    %53 = tpu.matmul %52, %36, %cst_18 {dimension_numbers = #tpu.dot_dimension_numbers<[1], [0], [0], [1], [0, 0, 1, 1], [], []>} : vector<8x8xbf16>, vector<8x8xbf16>, vector<8x8xf32> -> vector<8x8xf32>
    %54 = vector.extract_strided_slice %1 {offsets = [0, 16], sizes = [8, 8], strides = [1, 1]} : vector<8x32xf32> to vector<8x8xf32>
    %55 = arith.truncf %54 : vector<8x8xf32> to vector<8x8xbf16>
    %56 = vector.extract_strided_slice %3 {offsets = [0, 16], sizes = [8, 8], strides = [1, 1]} : vector<8x32xf32> to vector<8x8xf32>
    %57 = arith.truncf %56 : vector<8x8xf32> to vector<8x8xbf16>
    %58 = vector.extract_strided_slice %5 {offsets = [0, 16], sizes = [8, 8], strides = [1, 1]} : vector<8x32xf32> to vector<8x8xf32>
    %59 = arith.truncf %58 : vector<8x8xf32> to vector<8x8xbf16>
    %cst_19 = arith.constant dense<0.000000e+00> : vector<8x8xf32>
    %60 = tpu.matmul %55, %57, %cst_19 {dimension_numbers = #tpu.dot_dimension_numbers<[1], [1], [0], [0], [0, 0, 1, 0], [], []>} : vector<8x8xbf16>, vector<8x8xbf16>, vector<8x8xf32> -> vector<8x8xf32>
    %cst_20 = arith.constant 0.353553385 : f32
    %61 = vector.broadcast %cst_20 : f32 to vector<8x8xf32>
    %62 = arith.mulf %60, %61 : vector<8x8xf32>
    %63 = vector.broadcast %7 : vector<1x8xf32> to vector<8x8xf32>
    %64 = arith.addf %62, %63 : vector<8x8xf32>
    %cst_21 = arith.constant dense<0xFF800000> : vector<8xf32>
    %65 = vector.multi_reduction <maximumf>, %64, %cst_21 [1] : vector<8x8xf32> to vector<8xf32>
    %66 = vector.shape_cast %65 : vector<8xf32> to vector<8x1xf32>
    %67 = vector.broadcast %66 : vector<8x1xf32> to vector<8x8xf32>
    %68 = arith.subf %64, %67 : vector<8x8xf32>
    %69 = math.exp %68 : vector<8x8xf32>
    %cst_22 = arith.constant dense<0.000000e+00> : vector<8xf32>
    %70 = vector.multi_reduction <add>, %69, %cst_22 [1] : vector<8x8xf32> to vector<8xf32>
    %71 = vector.shape_cast %70 : vector<8xf32> to vector<8x1xf32>
    %72 = tpu.reciprocal %71 {approx = true} : vector<8x1xf32> -> vector<8x1xf32>
    %73 = vector.broadcast %72 : vector<8x1xf32> to vector<8x8xf32>
    %74 = arith.mulf %69, %73 : vector<8x8xf32>
    %75 = arith.truncf %74 : vector<8x8xf32> to vector<8x8xbf16>
    %cst_23 = arith.constant dense<0.000000e+00> : vector<8x8xf32>
    %76 = tpu.matmul %75, %59, %cst_23 {dimension_numbers = #tpu.dot_dimension_numbers<[1], [0], [0], [1], [0, 0, 1, 1], [], []>} : vector<8x8xbf16>, vector<8x8xbf16>, vector<8x8xf32> -> vector<8x8xf32>
    %77 = vector.extract_strided_slice %1 {offsets = [0, 24], sizes = [8, 8], strides = [1, 1]} : vector<8x32xf32> to vector<8x8xf32>
    %78 = arith.truncf %77 : vector<8x8xf32> to vector<8x8xbf16>
    %79 = vector.extract_strided_slice %3 {offsets = [0, 24], sizes = [8, 8], strides = [1, 1]} : vector<8x32xf32> to vector<8x8xf32>
    %80 = arith.truncf %79 : vector<8x8xf32> to vector<8x8xbf16>
    %81 = vector.extract_strided_slice %5 {offsets = [0, 24], sizes = [8, 8], strides = [1, 1]} : vector<8x32xf32> to vector<8x8xf32>
    %82 = arith.truncf %81 : vector<8x8xf32> to vector<8x8xbf16>
    %cst_24 = arith.constant dense<0.000000e+00> : vector<8x8xf32>
    %83 = tpu.matmul %78, %80, %cst_24 {dimension_numbers = #tpu.dot_dimension_numbers<[1], [1], [0], [0], [0, 0, 1, 0], [], []>} : vector<8x8xbf16>, vector<8x8xbf16>, vector<8x8xf32> -> vector<8x8xf32>
    %cst_25 = arith.constant 0.353553385 : f32
    %84 = vector.broadcast %cst_25 : f32 to vector<8x8xf32>
    %85 = arith.mulf %83, %84 : vector<8x8xf32>
    %86 = vector.broadcast %7 : vector<1x8xf32> to vector<8x8xf32>
    %87 = arith.addf %85, %86 : vector<8x8xf32>
    %cst_26 = arith.constant dense<0xFF800000> : vector<8xf32>
    %88 = vector.multi_reduction <maximumf>, %87, %cst_26 [1] : vector<8x8xf32> to vector<8xf32>
    %89 = vector.shape_cast %88 : vector<8xf32> to vector<8x1xf32>
    %90 = vector.broadcast %89 : vector<8x1xf32> to vector<8x8xf32>
    %91 = arith.subf %87, %90 : vector<8x8xf32>
    %92 = math.exp %91 : vector<8x8xf32>
    %cst_27 = arith.constant dense<0.000000e+00> : vector<8xf32>
    %93 = vector.multi_reduction <add>, %92, %cst_27 [1] : vector<8x8xf32> to vector<8xf32>
    %94 = vector.shape_cast %93 : vector<8xf32> to vector<8x1xf32>
    %95 = tpu.reciprocal %94 {approx = true} : vector<8x1xf32> -> vector<8x1xf32>
    %96 = vector.broadcast %95 : vector<8x1xf32> to vector<8x8xf32>
    %97 = arith.mulf %92, %96 : vector<8x8xf32>
    %98 = arith.truncf %97 : vector<8x8xf32> to vector<8x8xbf16>
    %cst_28 = arith.constant dense<0.000000e+00> : vector<8x8xf32>
    %99 = tpu.matmul %98, %82, %cst_28 {dimension_numbers = #tpu.dot_dimension_numbers<[1], [0], [0], [1], [0, 0, 1, 1], [], []>} : vector<8x8xbf16>, vector<8x8xbf16>, vector<8x8xf32> -> vector<8x8xf32>
    %100 = tpu.concatenate %30, %53, %76, %99 in 1 : vector<8x8xf32>, vector<8x8xf32>, vector<8x8xf32>, vector<8x8xf32> -> vector<8x32xf32>
    %c0_29 = arith.constant 0 : index
    %c0_30 = arith.constant 0 : index
    %c0_31 = arith.constant 0 : index
    %101 = vector.load %arg3[%c0_29, %c0_30, %c0_31] : memref<1x8x32xf32, #tpu.memory_space<vmem>>, vector<1x8x32xf32>
    %102 = vector.shape_cast %101 : vector<1x8x32xf32> to vector<8x32xf32>
    %c0_32 = arith.constant 0 : index
    %c0_33 = arith.constant 0 : index
    %103 = vector.load %arg5[%c0_32, %c0_33] : memref<32x32xf32, #tpu.memory_space<vmem>>, vector<32x32xf32>
    %c0_34 = arith.constant 0 : index
    %c0_35 = arith.constant 0 : index
    %104 = vector.load %arg6[%c0_34, %c0_35] : memref<1x32xf32, #tpu.memory_space<vmem>>, vector<1x32xf32>
    %c0_36 = arith.constant 0 : index
    %c0_37 = arith.constant 0 : index
    %105 = vector.load %arg7[%c0_36, %c0_37] : memref<1x32xf32, #tpu.memory_space<vmem>>, vector<1x32xf32>
    %c0_38 = arith.constant 0 : index
    %c0_39 = arith.constant 0 : index
    %106 = vector.load %arg8[%c0_38, %c0_39] : memref<1x32xf32, #tpu.memory_space<vmem>>, vector<1x32xf32>
    %107 = arith.truncf %100 : vector<8x32xf32> to vector<8x32xbf16>
    %108 = arith.truncf %103 : vector<32x32xf32> to vector<32x32xbf16>
    %cst_40 = arith.constant dense<0.000000e+00> : vector<8x32xf32>
    %109 = tpu.matmul %107, %108, %cst_40 {dimension_numbers = #tpu.dot_dimension_numbers<[1], [0], [0], [1], [0, 0, 1, 1], [], []>} : vector<8x32xbf16>, vector<32x32xbf16>, vector<8x32xf32> -> vector<8x32xf32>
    %110 = vector.broadcast %104 : vector<1x32xf32> to vector<8x32xf32>
    %111 = arith.addf %109, %110 : vector<8x32xf32>
    %112 = arith.addf %102, %111 : vector<8x32xf32>
    %cst_41 = arith.constant dense<0.000000e+00> : vector<8xf32>
    %113 = vector.multi_reduction <add>, %112, %cst_41 [1] : vector<8x32xf32> to vector<8xf32>
    %114 = vector.shape_cast %113 : vector<8xf32> to vector<8x1xf32>
    %cst_42 = arith.constant 3.200000e+01 : f32
    %115 = vector.broadcast %cst_42 : f32 to vector<8x1xf32>
    %116 = arith.divf %114, %115 : vector<8x1xf32>
    %117 = vector.broadcast %116 : vector<8x1xf32> to vector<8x32xf32>
    %118 = arith.subf %112, %117 : vector<8x32xf32>
    %119 = arith.mulf %118, %118 : vector<8x32xf32>
    %cst_43 = arith.constant dense<0.000000e+00> : vector<8xf32>
    %120 = vector.multi_reduction <add>, %119, %cst_43 [1] : vector<8x32xf32> to vector<8xf32>
    %121 = vector.shape_cast %120 : vector<8xf32> to vector<8x1xf32>
    %cst_44 = arith.constant 3.200000e+01 : f32
    %122 = vector.broadcast %cst_44 : f32 to vector<8x1xf32>
    %123 = arith.divf %121, %122 : vector<8x1xf32>
    %cst_45 = arith.constant 9.99999974E-6 : f32
    %124 = vector.broadcast %cst_45 : f32 to vector<8x1xf32>
    %125 = arith.addf %123, %124 : vector<8x1xf32>
    %126 = math.rsqrt %125 : vector<8x1xf32>
    %127 = vector.broadcast %126 : vector<8x1xf32> to vector<8x32xf32>
    %128 = arith.mulf %118, %127 : vector<8x32xf32>
    %129 = vector.broadcast %105 : vector<1x32xf32> to vector<8x32xf32>
    %130 = arith.mulf %128, %129 : vector<8x32xf32>
    %131 = vector.broadcast %106 : vector<1x32xf32> to vector<8x32xf32>
    %132 = arith.addf %130, %131 : vector<8x32xf32>
    %c0_46 = arith.constant 0 : index
    %c0_47 = arith.constant 0 : index
    %c0_48 = arith.constant 0 : index
    %133 = vector.load %arg9[%c0_46, %c0_47, %c0_48] : memref<1x8x32xf32, #tpu.memory_space<vmem>>, vector<1x8x32xf32>
    %134 = vector.shape_cast %133 : vector<1x8x32xf32> to vector<8x32xf32>
    %135 = vector.shape_cast %132 : vector<8x32xf32> to vector<1x8x32xf32>
    tpu.vector_store %arg9[%c0_46, %c0_47, %c0_48], %135 {strides = array<i32>} : memref<1x8x32xf32, #tpu.memory_space<vmem>>, vector<1x8x32xf32>,
    return
  }
  func.func @transform_0(%arg0: i32) -> (i32, i32, i32) {
    %c0_i32 = arith.constant 0 : i32
    %c0_i32_0 = arith.constant 0 : i32
    %c0_i32_1 = arith.constant 0 : i32
    return %arg0, %c0_i32, %c0_i32_0 : i32, i32, i32
  }
  func.func @transform_1(%arg0: i32) -> (i32, i32, i32) {
    %c0_i32 = arith.constant 0 : i32
    %c0_i32_0 = arith.constant 0 : i32
    %c0_i32_1 = arith.constant 0 : i32
    return %arg0, %c0_i32, %c0_i32_0 : i32, i32, i32
  }
  func.func @transform_2(%arg0: i32) -> (i32, i32, i32) {
    %c0_i32 = arith.constant 0 : i32
    %c0_i32_0 = arith.constant 0 : i32
    %c0_i32_1 = arith.constant 0 : i32
    return %arg0, %c0_i32, %c0_i32_0 : i32, i32, i32
  }
  func.func @transform_3(%arg0: i32) -> (i32, i32, i32) {
    %c0_i32 = arith.constant 0 : i32
    %c0_i32_0 = arith.constant 0 : i32
    %c0_i32_1 = arith.constant 0 : i32
    return %arg0, %c0_i32, %c0_i32_0 : i32, i32, i32
  }
  func.func @transform_4(%arg0: i32) -> (i32, i32) {
    %c0_i32 = arith.constant 0 : i32
    %c0_i32_0 = arith.constant 0 : i32
    %c0_i32_1 = arith.constant 0 : i32
    return %c0_i32, %c0_i32_0 : i32, i32
  }
  func.func @transform_5(%arg0: i32) -> (i32, i32) {
    %c0_i32 = arith.constant 0 : i32
    %c0_i32_0 = arith.constant 0 : i32
    %c0_i32_1 = arith.constant 0 : i32
    return %c0_i32, %c0_i32_0 : i32, i32
  }
  func.func @transform_6(%arg0: i32) -> (i32, i32) {
    %c0_i32 = arith.constant 0 : i32
    %c0_i32_0 = arith.constant 0 : i32
    %c0_i32_1 = arith.constant 0 : i32
    return %c0_i32, %c0_i32_0 : i32, i32
  }
  func.func @transform_7(%arg0: i32) -> (i32, i32) {
    %c0_i32 = arith.constant 0 : i32
    %c0_i32_0 = arith.constant 0 : i32
    %c0_i32_1 = arith.constant 0 : i32
    return %c0_i32, %c0_i32_0 : i32, i32
  }
  func.func @transform_8(%arg0: i32) -> (i32, i32, i32) {
    %c0_i32 = arith.constant 0 : i32
    %c0_i32_0 = arith.constant 0 : i32
    %c0_i32_1 = arith.constant 0 : i32
    return %arg0, %c0_i32, %c0_i32_0 : i32, i32, i32
  }
}

</mosaic_0001>

<llo_original>
// kernel: transformer_forward.20
$region0: #{transformer_forward.20}
  #allocation0 [shape = 'u32[]', space=smem, size = 0x4, offset = 0x4, fixed_abs, tag = 'smem constant byte address 0x4 - core index']
  #allocation1 [shape = 'u32[144,128]{1,0:T(1,128)}', space=vmem, size = 0x12000, scoped, tag = 'internal scratch']
  #allocation2 [shape = 'f32[16,32]{1,0:T(8,128)}', space=vmem, size = 0x2000, scoped, tag = 'scratch operand']
  %s0 = inlined_call_operand.vmem [shape: f32[16,4], index: 0, kind: input, shape index: {}]
  %s1 = inlined_call_operand.vmem [shape: f32[4,32], index: 1, kind: input, shape index: {}]
  %s2 = inlined_call_operand.vmem [shape: f32[1,32], index: 2, kind: input, shape index: {}]
  %s3 = inlined_call_operand.vmem [shape: f32[16,32], index: 3, kind: output, shape index: {}]
  %s4 = sld [smem:[#allocation0]]
  $region30: #{transformer_forward.20} parent=0
    _
  %s6 = ssub.s32 1, %s4
  %s7 = scalar_select 0, %s6, %s4
  // Predicated region
  $region2: #{transformer_forward.20} parent=0 // pred_check
    _
  $region3: #{transformer_forward.20} parent=0 // pred_check_branch
    %9 = sbr.rel (0) target = $region5
  $region4: #{transformer_forward.20} parent=0 // pred_region
    _
  $region5: #{transformer_forward.20} parent=0 // pred_fallthru
    _
  // Predicated region
  $region6: #{transformer_forward.20} parent=0 // pred_check
    _
  $region7: #{transformer_forward.20} parent=0 // pred_check_branch
    %11 = sbr.rel (0) target = $region9
  $region8: #{transformer_forward.20} parent=0 // pred_region
    _
  $region9: #{transformer_forward.20} parent=0 // pred_fallthru
    _
  // Predicated region
  $region10: #{transformer_forward.20} parent=0 // pred_check
    _
  $region11: #{transformer_forward.20} parent=0 // pred_check_branch
    %13 = sbr.rel (0) target = $region13
  $region12: #{transformer_forward.20} parent=0 // pred_region
    _
  $region13: #{transformer_forward.20} parent=0 // pred_fallthru
    _
  %p15 = scmp.eq.s32.totalorder 0, 0
  // Predicated region
  $region14: #{transformer_forward.20} parent=0 // pred_check
    %p16 = pneg %p15
  $region15: #{transformer_forward.20} parent=0 // pred_check_branch
    %18 = sbr.rel (%p16) target = $region17
  $region16: #{transformer_forward.20} parent=0 // pred_region
    %vm19 = vcmask 261120
    %20 = vst.msk [vmem:[#allocation2] sm:$0xff] %vm19, 0.0
    %21 = vst.msk [vmem:[#allocation2 + $0x8] sm:$0xff] %vm19, 0.0
  $region17: #{transformer_forward.20} parent=0 // pred_fallthru
    _
  %v22 = vld [vmem:[#allocation2] sm:$0xff]
  %v23 = vld [vmem:[#allocation2 + $0x8] sm:$0xff]
  %v24 = vld [vmem:[%s0] sm:$0xff]
  %v25 = vld [vmem:[%s0 + $0x8] sm:$0xff]
  %v26 = vpack.c.bf16 %v25, %v24
  %v27 = vld [vmem:[%s1] sm:$0xf]
  %v28 = vpack.c.bf16 %v27, %v27
  %vm29 = vcmask 31744
  %v31 = vsel %vm29, %v26, 0
  %vm33 = vcmask 1041408
  %v35 = vsel %vm33, %v28, 0
  %37 = vmatprep.subr.bf16.mxu0 0
  %38 = vmatpush1.bf16.msra.mxu0 0
  %39 = vmatprep.subr.bf16.mxu0 0
  %40 = vmatpush1.bf16.msra.mxu0 0
  %41 = vmatprep.subr.bf16.mxu0 0
  %42 = vmatpush1.bf16.msra.mxu0 0
  %43 = vmatprep.subr.bf16.mxu0 0
  %44 = vmatpush1.bf16.msra.mxu0 0
  %45 = vmatprep.subr.bf16.mxu0 0
  %46 = vmatpush1.bf16.msra.mxu0 0
  %47 = vmatprep.subr.bf16.mxu0 0
  %48 = vmatpush1.bf16.msra.mxu0 0
  %49 = vmatprep.subr.bf16.mxu0 0
  %50 = vmatpush1.bf16.msra.mxu0 0
  %51 = vmatprep.subr.bf16.mxu0 0
  %52 = vmatpush1.bf16.msra.mxu0 %v35
  %53 = vmatprep.subr.bf16.mxu0 0
  %54 = vmatpush2.bf16.msra.mxu0 0
  %55 = vmatprep.subr.bf16.mxu0 0
  %56 = vmatpush2.bf16.msra.mxu0 0
  %57 = vmatprep.subr.bf16.mxu0 0
  %58 = vmatpush2.bf16.msra.mxu0 0
  %59 = vmatprep.subr.bf16.mxu0 0
  %60 = vmatpush2.bf16.msra.mxu0 0
  %61 = vmatprep.subr.bf16.mxu0 0
  %62 = vmatpush2.bf16.msra.mxu0 0
  %63 = vmatprep.subr.bf16.mxu0 0
  %64 = vmatpush2.bf16.msra.mxu0 0
  %65 = vmatprep.subr.bf16.mxu0 0
  %66 = vmatpush2.bf16.msra.mxu0 0
  %67 = vmatprep.subr.bf16.mxu0 0
  %68 = vmatpush2.bf16.msra.mxu0 0
  %69 = vmatprep.mubr.bf16.mxu0 0
  %70 = vmatmul.mubr.bf16.gmra.mxu0 %v31
  %v71 = vpop.f32.mrf.mxu0
  %v72 = vadd.f32 0.0, %v71
  %v73 = vpop.f32.mrf.mxu0
  %v74 = vpop.f32.mrf.mxu0
  %v75 = vadd.f32 0.0, %v74
  %v76 = vpop.f32.mrf.mxu0
  %77 = vdwg.mxu0
  %v78 = vadd.f32 %v22, %v72
  %v79 = vadd.f32 %v23, %v75
  %vm80 = vcmask 261120
  %81 = vst.msk [vmem:[#allocation2] sm:$0xff] %vm80, %v78
  %82 = vst.msk [vmem:[#allocation2 + $0x8] sm:$0xff] %vm80, %v79
  // Predicated region
  $region18: #{transformer_forward.20} parent=0 // pred_check
    %p83 = pneg %p15
  $region19: #{transformer_forward.20} parent=0 // pred_check_branch
    %85 = sbr.rel (%p83) target = $region21
  $region20: #{transformer_forward.20} parent=0 // pred_region
    %v86 = vld [vmem:[#allocation2] sm:$0xff]
    %v87 = vld [vmem:[#allocation2 + $0x8] sm:$0xff]
    %v88 = vld [vmem:[%s2] sm:$0x1]
    %v90 = vlaneseq
    %v91 = vshrl.u32 %v90, 7
    %v92 = vsub.s32 0, %v91
    %v93 = vrot.slane %v88, %v92
    %v95 = vadd.f32 %v86, %v93
    %v96 = vadd.f32 %v87, %v93
    %97 = vst.msk [vmem:[%s3] sm:$0xff] %vm80, %v95
    %98 = vst.msk [vmem:[%s3 + $0x8] sm:$0xff] %vm80, %v96
  $region21: #{transformer_forward.20} parent=0 // pred_fallthru
    _
  // Predicated region
  $region22: #{transformer_forward.20} parent=0 // pred_check
    _
  $region23: #{transformer_forward.20} parent=0 // pred_check_branch
    %100 = sbr.rel (0) target = $region25
  $region24: #{transformer_forward.20} parent=0 // pred_region
    _
  $region25: #{transformer_forward.20} parent=0 // pred_fallthru
    _
  // Predicated region
  $region26: #{transformer_forward.20} parent=0 // pred_check
    _
  $region27: #{transformer_forward.20} parent=0 // pred_check_branch
    %102 = sbr.rel (0) target = $region29
  $region28: #{transformer_forward.20} parent=0 // pred_region
    _
  $region29: #{transformer_forward.20} parent=0 // pred_fallthru
    _

// kernel: transformer_forward.21
$region0: #{transformer_forward.21}
  #allocation0 [shape = 'u32[]', space=smem, size = 0x4, offset = 0x4, fixed_abs, tag = 'smem constant byte address 0x4 - core index']
  #allocation1 [shape = 'u32[144,128]{1,0:T(1,128)}', space=vmem, size = 0x12000, scoped, tag = 'internal scratch']
  #allocation2 [shape = 'f32[16,96]{1,0:T(8,128)}', space=vmem, size = 0x2000, scoped, tag = 'scratch operand']
  %s0 = inlined_call_operand.vmem [shape: f32[16,32], index: 0, kind: input, shape index: {}]
  %s1 = inlined_call_operand.vmem [shape: f32[32,96], index: 1, kind: input, shape index: {}]
  %s2 = inlined_call_operand.vmem [shape: f32[1,96], index: 2, kind: input, shape index: {}]
  %s3 = inlined_call_operand.vmem [shape: f32[16,96], index: 3, kind: output, shape index: {}]
  %s4 = sld [smem:[#allocation0]]
  $region30: #{transformer_forward.21} parent=0
    _
  %s6 = ssub.s32 1, %s4
  %s7 = scalar_select 0, %s6, %s4
  // Predicated region
  $region2: #{transformer_forward.21} parent=0 // pred_check
    _
  $region3: #{transformer_forward.21} parent=0 // pred_check_branch
    %9 = sbr.rel (0) target = $region5
  $region4: #{transformer_forward.21} parent=0 // pred_region
    _
  $region5: #{transformer_forward.21} parent=0 // pred_fallthru
    _
  // Predicated region
  $region6: #{transformer_forward.21} parent=0 // pred_check
    _
  $region7: #{transformer_forward.21} parent=0 // pred_check_branch
    %11 = sbr.rel (0) target = $region9
  $region8: #{transformer_forward.21} parent=0 // pred_region
    _
  $region9: #{transformer_forward.21} parent=0 // pred_fallthru
    _
  // Predicated region
  $region10: #{transformer_forward.21} parent=0 // pred_check
    _
  $region11: #{transformer_forward.21} parent=0 // pred_check_branch
    %13 = sbr.rel (0) target = $region13
  $region12: #{transformer_forward.21} parent=0 // pred_region
    _
  $region13: #{transformer_forward.21} parent=0 // pred_fallthru
    _
  %p15 = scmp.eq.s32.totalorder 0, 0
  // Predicated region
  $region14: #{transformer_forward.21} parent=0 // pred_check
    %p16 = pneg %p15
  $region15: #{transformer_forward.21} parent=0 // pred_check_branch
    %18 = sbr.rel (%p16) target = $region17
  $region16: #{transformer_forward.21} parent=0 // pred_region
    %vm19 = vcmask 785408
    %20 = vst.msk [vmem:[#allocation2] sm:$0xff] %vm19, 0.0
    %21 = vst.msk [vmem:[#allocation2 + $0x8] sm:$0xff] %vm19, 0.0
  $region17: #{transformer_forward.21} parent=0 // pred_fallthru
    _
  %v22 = vld [vmem:[#allocation2] sm:$0xff]
  %v23 = vld [vmem:[#allocation2 + $0x8] sm:$0xff]
  %v24 = vld [vmem:[%s0] sm:$0xff]
  %v25 = vld [vmem:[%s0 + $0x8] sm:$0xff]
  %v26 = vpack.c.bf16 %v25, %v24
  %v27 = vld [vmem:[%s1] sm:$0xff]
  %v28 = vld [vmem:[%s1 + $0x8] sm:$0xff]
  %v29 = vld [vmem:[%s1 + $0x10] sm:$0xff]
  %v30 = vld [vmem:[%s1 + $0x18] sm:$0xff]
  %v31 = vpack.c.bf16 %v28, %v27
  %v32 = vpack.c.bf16 %v30, %v29
  %vm33 = vcmask 261120
  %v35 = vsel %vm33, %v26, 0
  %37 = vmatprep.subr.bf16.mxu0 0
  %38 = vmatpush1.bf16.msra.mxu0 0
  %39 = vmatprep.subr.bf16.mxu0 0
  %40 = vmatpush1.bf16.msra.mxu0 0
  %41 = vmatprep.subr.bf16.mxu0 0
  %42 = vmatpush1.bf16.msra.mxu0 0
  %43 = vmatprep.subr.bf16.mxu0 0
  %44 = vmatpush1.bf16.msra.mxu0 0
  %45 = vmatprep.subr.bf16.mxu0 0
  %46 = vmatpush1.bf16.msra.mxu0 0
  %47 = vmatprep.subr.bf16.mxu0 0
  %48 = vmatpush1.bf16.msra.mxu0 0
  %49 = vmatprep.subr.bf16.mxu0 0
  %50 = vmatpush1.bf16.msra.mxu0 %v32
  %51 = vmatprep.subr.bf16.mxu0 0
  %52 = vmatpush1.bf16.msra.mxu0 %v31
  %53 = vmatprep.subr.bf16.mxu0 0
  %54 = vmatpush2.bf16.msra.mxu0 0
  %55 = vmatprep.subr.bf16.mxu0 0
  %56 = vmatpush2.bf16.msra.mxu0 0
  %57 = vmatprep.subr.bf16.mxu0 0
  %58 = vmatpush2.bf16.msra.mxu0 0
  %59 = vmatprep.subr.bf16.mxu0 0
  %60 = vmatpush2.bf16.msra.mxu0 0
  %61 = vmatprep.subr.bf16.mxu0 0
  %62 = vmatpush2.bf16.msra.mxu0 0
  %63 = vmatprep.subr.bf16.mxu0 0
  %64 = vmatpush2.bf16.msra.mxu0 0
  %65 = vmatprep.subr.bf16.mxu0 0
  %66 = vmatpush2.bf16.msra.mxu0 0
  %67 = vmatprep.subr.bf16.mxu0 0
  %68 = vmatpush2.bf16.msra.mxu0 0
  %69 = vmatprep.mubr.bf16.mxu0 0
  %70 = vmatmul.mubr.bf16.gmra.mxu0 %v35
  %v71 = vpop.f32.mrf.mxu0
  %v72 = vadd.f32 0.0, %v71
  %v73 = vpop.f32.mrf.mxu0
  %v74 = vpop.f32.mrf.mxu0
  %v75 = vadd.f32 0.0, %v74
  %v76 = vpop.f32.mrf.mxu0
  %77 = vdwg.mxu0
  %v78 = vadd.f32 %v22, %v72
  %v79 = vadd.f32 %v23, %v75
  %vm80 = vcmask 785408
  %81 = vst.msk [vmem:[#allocation2] sm:$0xff] %vm80, %v78
  %82 = vst.msk [vmem:[#allocation2 + $0x8] sm:$0xff] %vm80, %v79
  // Predicated region
  $region18: #{transformer_forward.21} parent=0 // pred_check
    %p83 = pneg %p15
  $region19: #{transformer_forward.21} parent=0 // pred_check_branch
    %85 = sbr.rel (%p83) target = $region21
  $region20: #{transformer_forward.21} parent=0 // pred_region
    %v86 = vld [vmem:[#allocation2] sm:$0xff]
    %v87 = vld [vmem:[#allocation2 + $0x8] sm:$0xff]
    %v88 = vld [vmem:[%s2] sm:$0x1]
    %v90 = vlaneseq
    %v91 = vshrl.u32 %v90, 7
    %v92 = vsub.s32 0, %v91
    %v93 = vrot.slane %v88, %v92
    %v95 = vadd.f32 %v86, %v93
    %v96 = vadd.f32 %v87, %v93
    %97 = vst.msk [vmem:[%s3] sm:$0xff] %vm80, %v95
    %98 = vst.msk [vmem:[%s3 + $0x8] sm:$0xff] %vm80, %v96
  $region21: #{transformer_forward.21} parent=0 // pred_fallthru
    _
  // Predicated region
  $region22: #{transformer_forward.21} parent=0 // pred_check
    _
  $region23: #{transformer_forward.21} parent=0 // pred_check_branch
    %100 = sbr.rel (0) target = $region25
  $region24: #{transformer_forward.21} parent=0 // pred_region
    _
  $region25: #{transformer_forward.21} parent=0 // pred_fallthru
    _
  // Predicated region
  $region26: #{transformer_forward.21} parent=0 // pred_check
    _
  $region27: #{transformer_forward.21} parent=0 // pred_check_branch
    %102 = sbr.rel (0) target = $region29
  $region28: #{transformer_forward.21} parent=0 // pred_region
    _
  $region29: #{transformer_forward.21} parent=0 // pred_fallthru
    _

// kernel: transformer_forward.23
$region0: #{transformer_forward.23}
  #allocation0 [shape = 'u32[]', space=smem, size = 0x4, offset = 0x4, fixed_abs, tag = 'smem constant byte address 0x4 - core index']
  #allocation1 [shape = 'u32[144,128]{1,0:T(1,128)}', space=vmem, size = 0x12000, scoped, tag = 'internal scratch']
  %s0 = inlined_call_operand.vmem [shape: f32[16,32], index: 0, kind: input, shape index: {}]
  %s1 = inlined_call_operand.vmem [shape: f32[32,64], index: 1, kind: input, shape index: {}]
  %s2 = inlined_call_operand.vmem [shape: f32[1,64], index: 2, kind: input, shape index: {}]
  %s3 = inlined_call_operand.vmem [shape: f32[64,32], index: 3, kind: input, shape index: {}]
  %s4 = inlined_call_operand.vmem [shape: f32[1,32], index: 4, kind: input, shape index: {}]
  %s5 = inlined_call_operand.vmem [shape: f32[1,32], index: 5, kind: input, shape index: {}]
  %s6 = inlined_call_operand.vmem [shape: f32[1,32], index: 6, kind: input, shape index: {}]
  %s7 = inlined_call_operand.vmem [shape: f32[16,32], index: 7, kind: output, shape index: {}]
  %s8 = sld [smem:[#allocation0]]
  $region38: #{transformer_forward.23} parent=0
    _
  %s10 = ssub.s32 1, %s8
  %s11 = scalar_select 0, %s10, %s8
  // Predicated region
  $region2: #{transformer_forward.23} parent=0 // pred_check
    _
  $region3: #{transformer_forward.23} parent=0 // pred_check_branch
    %13 = sbr.rel (0) target = $region5
  $region4: #{transformer_forward.23} parent=0 // pred_region
    _
  $region5: #{transformer_forward.23} parent=0 // pred_fallthru
    _
  // Predicated region
  $region6: #{transformer_forward.23} parent=0 // pred_check
    _
  $region7: #{transformer_forward.23} parent=0 // pred_check_branch
    %15 = sbr.rel (0) target = $region9
  $region8: #{transformer_forward.23} parent=0 // pred_region
    _
  $region9: #{transformer_forward.23} parent=0 // pred_fallthru
    _
  // Predicated region
  $region10: #{transformer_forward.23} parent=0 // pred_check
    _
  $region11: #{transformer_forward.23} parent=0 // pred_check_branch
    %17 = sbr.rel (0) target = $region13
  $region12: #{transformer_forward.23} parent=0 // pred_region
    _
  $region13: #{transformer_forward.23} parent=0 // pred_fallthru
    _
  // Predicated region
  $region14: #{transformer_forward.23} parent=0 // pred_check
    _
  $region15: #{transformer_forward.23} parent=0 // pred_check_branch
    %19 = sbr.rel (0) target = $region17
  $region16: #{transformer_forward.23} parent=0 // pred_region
    _
  $region17: #{transformer_forward.23} parent=0 // pred_fallthru
    _
  // Predicated region
  $region18: #{transformer_forward.23} parent=0 // pred_check
    _
  $region19: #{transformer_forward.23} parent=0 // pred_check_branch
    %21 = sbr.rel (0) target = $region21
  $region20: #{transformer_forward.23} parent=0 // pred_region
    _
  $region21: #{transformer_forward.23} parent=0 // pred_fallthru
    _
  // Predicated region
  $region22: #{transformer_forward.23} parent=0 // pred_check
    _
  $region23: #{transformer_forward.23} parent=0 // pred_check_branch
    %23 = sbr.rel (0) target = $region25
  $region24: #{transformer_forward.23} parent=0 // pred_region
    _
  $region25: #{transformer_forward.23} parent=0 // pred_fallthru
    _
  // Predicated region
  $region26: #{transformer_forward.23} parent=0 // pred_check
    _
  $region27: #{transformer_forward.23} parent=0 // pred_check_branch
    %25 = sbr.rel (0) target = $region29
  $region28: #{transformer_forward.23} parent=0 // pred_region
    _
  $region29: #{transformer_forward.23} parent=0 // pred_fallthru
    _
  %v27 = vld [vmem:[%s0] sm:$0xff]
  %v28 = vld [vmem:[%s0 + $0x8] sm:$0xff]
  %v29 = vpack.c.bf16 %v28, %v27
  %v30 = vld [vmem:[%s1] sm:$0xff]
  %v31 = vld [vmem:[%s1 + $0x8] sm:$0xff]
  %v32 = vld [vmem:[%s1 + $0x10] sm:$0xff]
  %v33 = vld [vmem:[%s1 + $0x18] sm:$0xff]
  %v34 = vpack.c.bf16 %v31, %v30
  %v35 = vpack.c.bf16 %v33, %v32
  %v36 = vld [vmem:[%s2] sm:$0x1]
  %v38 = vlaneseq
  %v39 = vshrl.u32 %v38, 7
  %v40 = vsub.s32 0, %v39
  %v41 = vrot.slane %v36, %v40
  %vm43 = vcmask 261120
  %v45 = vsel %vm43, %v29, 0
  %47 = vmatprep.subr.bf16.mxu0 0
  %48 = vmatpush1.bf16.msra.mxu0 0
  %49 = vmatprep.subr.bf16.mxu0 0
  %50 = vmatpush1.bf16.msra.mxu0 0
  %51 = vmatprep.subr.bf16.mxu0 0
  %52 = vmatpush1.bf16.msra.mxu0 0
  %53 = vmatprep.subr.bf16.mxu0 0
  %54 = vmatpush1.bf16.msra.mxu0 0
  %55 = vmatprep.subr.bf16.mxu0 0
  %56 = vmatpush1.bf16.msra.mxu0 0
  %57 = vmatprep.subr.bf16.mxu0 0
  %58 = vmatpush1.bf16.msra.mxu0 0
  %59 = vmatprep.subr.bf16.mxu0 0
  %60 = vmatpush1.bf16.msra.mxu0 %v35
  %61 = vmatprep.subr.bf16.mxu0 0
  %62 = vmatpush1.bf16.msra.mxu0 %v34
  %63 = vmatprep.subr.bf16.mxu0 0
  %64 = vmatpush2.bf16.msra.mxu0 0
  %65 = vmatprep.subr.bf16.mxu0 0
  %66 = vmatpush2.bf16.msra.mxu0 0
  %67 = vmatprep.subr.bf16.mxu0 0
  %68 = vmatpush2.bf16.msra.mxu0 0
  %69 = vmatprep.subr.bf16.mxu0 0
  %70 = vmatpush2.bf16.msra.mxu0 0
  %71 = vmatprep.subr.bf16.mxu0 0
  %72 = vmatpush2.bf16.msra.mxu0 0
  %73 = vmatprep.subr.bf16.mxu0 0
  %74 = vmatpush2.bf16.msra.mxu0 0
  %75 = vmatprep.subr.bf16.mxu0 0
  %76 = vmatpush2.bf16.msra.mxu0 0
  %77 = vmatprep.subr.bf16.mxu0 0
  %78 = vmatpush2.bf16.msra.mxu0 0
  %79 = vmatprep.mubr.bf16.mxu0 0
  %80 = vmatmul.mubr.bf16.gmra.mxu0 %v45
  %v81 = vpop.f32.mrf.mxu0
  %v82 = vadd.f32 %v41, %v81
  %v83 = vpop.f32.mrf.mxu0
  %v84 = vpop.f32.mrf.mxu0
  %v85 = vadd.f32 %v41, %v84
  %v86 = vpop.f32.mrf.mxu0
  %87 = vdwg.mxu0
  %v88 = vmax.f32 %v82, 0.0
  %v89 = vmax.f32 %v85, 0.0
  %v90 = vpack.c.bf16 %v89, %v88
  %v91 = vld [vmem:[%s3] sm:$0xff]
  %v92 = vld [vmem:[%s3 + $0x8] sm:$0xff]
  %v93 = vld [vmem:[%s3 + $0x10] sm:$0xff]
  %v94 = vld [vmem:[%s3 + $0x18] sm:$0xff]
  %v95 = vld [vmem:[%s3 + $0x20] sm:$0xff]
  %v96 = vld [vmem:[%s3 + $0x28] sm:$0xff]
  %v97 = vld [vmem:[%s3 + $0x30] sm:$0xff]
  %v98 = vld [vmem:[%s3 + $0x38] sm:$0xff]
  %v99 = vpack.c.bf16 %v92, %v91
  %v100 = vpack.c.bf16 %v94, %v93
  %v101 = vpack.c.bf16 %v96, %v95
  %v102 = vpack.c.bf16 %v98, %v97
  %v103 = vld [vmem:[%s4] sm:$0x1]
  %v105 = vlaneseq
  %v106 = vshrl.u32 %v105, 7
  %v107 = vsub.s32 0, %v106
  %v108 = vrot.slane %v103, %v107
  %vm110 = vcmask 523264
  %v112 = vsel %vm110, %v90, 0
  %114 = vmatprep.subr.bf16.mxu0 0
  %115 = vmatpush1.bf16.msra.mxu0 0
  %116 = vmatprep.subr.bf16.mxu0 0
  %117 = vmatpush1.bf16.msra.mxu0 0
  %118 = vmatprep.subr.bf16.mxu0 0
  %119 = vmatpush1.bf16.msra.mxu0 0
  %120 = vmatprep.subr.bf16.mxu0 0
  %121 = vmatpush1.bf16.msra.mxu0 0
  %122 = vmatprep.subr.bf16.mxu0 0
  %123 = vmatpush1.bf16.msra.mxu0 %v102
  %124 = vmatprep.subr.bf16.mxu0 0
  %125 = vmatpush1.bf16.msra.mxu0 %v101
  %126 = vmatprep.subr.bf16.mxu0 0
  %127 = vmatpush1.bf16.msra.mxu0 %v100
  %128 = vmatprep.subr.bf16.mxu0 0
  %129 = vmatpush1.bf16.msra.mxu0 %v99
  %130 = vmatprep.subr.bf16.mxu0 0
  %131 = vmatpush2.bf16.msra.mxu0 0
  %132 = vmatprep.subr.bf16.mxu0 0
  %133 = vmatpush2.bf16.msra.mxu0 0
  %134 = vmatprep.subr.bf16.mxu0 0
  %135 = vmatpush2.bf16.msra.mxu0 0
  %136 = vmatprep.subr.bf16.mxu0 0
  %137 = vmatpush2.bf16.msra.mxu0 0
  %138 = vmatprep.subr.bf16.mxu0 0
  %139 = vmatpush2.bf16.msra.mxu0 0
  %140 = vmatprep.subr.bf16.mxu0 0
  %141 = vmatpush2.bf16.msra.mxu0 0
  %142 = vmatprep.subr.bf16.mxu0 0
  %143 = vmatpush2.bf16.msra.mxu0 0
  %144 = vmatprep.subr.bf16.mxu0 0
  %145 = vmatpush2.bf16.msra.mxu0 0
  %146 = vmatprep.mubr.bf16.mxu0 0
  %147 = vmatmul.mubr.bf16.gmra.mxu0 %v112
  %v148 = vpop.f32.mrf.mxu0
  %v149 = vadd.f32 %v108, %v148
  %v150 = vpop.f32.mrf.mxu0
  %v151 = vpop.f32.mrf.mxu0
  %v152 = vadd.f32 %v108, %v151
  %v153 = vpop.f32.mrf.mxu0
  %154 = vdwg.mxu0
  %v155 = vadd.f32 %v149, %v27
  %v156 = vadd.f32 %v152, %v28
  %v157 = vld [vmem:[%s5] sm:$0x1]
  %v158 = vld [vmem:[%s6] sm:$0x1]
  %v159 = vsel %vm43, %v155, 0.0
  %160 = vadd.xlane.f32.xlu0 %v159
  %v161 = vpop.xlane.xlu0 %160
  %v162 = vsel %vm43, %v156, 0.0
  %163 = vadd.xlane.f32.xlu0 %v162
  %v164 = vpop.xlane.xlu0 %163
  %v165 = vrcp.pop 32.0
  %v166 = vmul.f32 %v161, %v165
  %v167 = vmul.f32 %v164, %v165
  %v168 = vsub.f32 %v155, %v166
  %v169 = vsub.f32 %v156, %v167
  %v170 = vmul.f32 %v168, %v168
  %v171 = vmul.f32 %v169, %v169
  %v172 = vsel %vm43, %v170, 0.0
  %173 = vadd.xlane.f32.xlu0 %v172
  %v174 = vpop.xlane.xlu0 %173
  %v175 = vsel %vm43, %v171, 0.0
  %176 = vadd.xlane.f32.xlu0 %v175
  %v177 = vpop.xlane.xlu0 %176
  %v178 = vmul.f32 %v174, %v165
  %v179 = vmul.f32 %v177, %v165
  %v180 = vadd.f32 %v178, 1e-05
  %v181 = vadd.f32 %v179, 1e-05
  %v182 = vrsqrt.pop %v180
  %v183 = vrsqrt.pop %v181
  %v184 = vmul.f32 %v168, %v182
  %v185 = vmul.f32 %v169, %v183
  %v187 = vlaneseq
  %v188 = vshrl.u32 %v187, 7
  %v189 = vsub.s32 0, %v188
  %v190 = vrot.slane %v157, %v189
  %v192 = vmul.f32 %v184, %v190
  %v193 = vmul.f32 %v185, %v190
  %v195 = vlaneseq
  %v196 = vshrl.u32 %v195, 7
  %v197 = vsub.s32 0, %v196
  %v198 = vrot.slane %v158, %v197
  %v200 = vadd.f32 %v192, %v198
  %v201 = vadd.f32 %v193, %v198
  %202 = vst.msk [vmem:[%s7] sm:$0xff] %vm43, %v200
  %203 = vst.msk [vmem:[%s7 + $0x8] sm:$0xff] %vm43, %v201
  // Predicated region
  $region30: #{transformer_forward.23} parent=0 // pred_check
    _
  $region31: #{transformer_forward.23} parent=0 // pred_check_branch
    %205 = sbr.rel (0) target = $region33
  $region32: #{transformer_forward.23} parent=0 // pred_region
    _
  $region33: #{transformer_forward.23} parent=0 // pred_fallthru
    _
  // Predicated region
  $region34: #{transformer_forward.23} parent=0 // pred_check
    _
  $region35: #{transformer_forward.23} parent=0 // pred_check_branch
    %207 = sbr.rel (0) target = $region37
  $region36: #{transformer_forward.23} parent=0 // pred_region
    _
  $region37: #{transformer_forward.23} parent=0 // pred_fallthru
    _

// kernel: transformer_forward.22
$region0: #{transformer_forward.22}
  #allocation0 [shape = 'u32[]', space=smem, size = 0x4, offset = 0x4, fixed_abs, tag = 'smem constant byte address 0x4 - core index']
  #allocation1 [shape = 'u32[144,128]{1,0:T(1,128)}', space=vmem, size = 0x12000, scoped, tag = 'internal scratch']
  %s0 = inlined_call_operand.vmem [shape: f32[2,8,96], index: 0, kind: input, shape index: {}]
  %s1 = inlined_call_operand.vmem [shape: f32[2,8,32], index: 1, kind: input, shape index: {}]
  %s2 = inlined_call_operand.vmem [shape: f32[2,1,8], index: 2, kind: input, shape index: {}]
  %s3 = inlined_call_operand.vmem [shape: f32[32,32], index: 3, kind: input, shape index: {}]
  %s4 = inlined_call_operand.vmem [shape: f32[1,32], index: 4, kind: input, shape index: {}]
  %s5 = inlined_call_operand.vmem [shape: f32[1,32], index: 5, kind: input, shape index: {}]
  %s6 = inlined_call_operand.vmem [shape: f32[1,32], index: 6, kind: input, shape index: {}]
  %s7 = inlined_call_operand.vmem [shape: f32[2,8,32], index: 7, kind: output, shape index: {}]
  %s8 = sld [smem:[#allocation0]]
  $region61: #{transformer_forward.22} parent=0
    _
  %s10 = ssub.s32 1, %s8
  %s11 = scalar_select 0, %s10, %s8
  loop: start=0, step=1, limit=4
  $region2: #{transformer_forward.22} parent=0 // loop_pre_header
    _
  $region3: #{transformer_forward.22} parent=0 // loop_header
    %s13 = sphi 0, %s17
    %p14 = scmp.ge.s32.totalorder %s13, 4
    %s23 = sphi 0, %s25
    %s26 = sphi 0, %s23
    %s27 = sphi 0, %s26
    %s43 = sphi 0, %s27
    %s49 = sphi 0, %s51
    %s52 = sphi 0, %s49
    %s53 = sphi 0, %s52
    %s69 = sphi 0, %s53
    %s75 = sphi 0, %s77
    %s78 = sphi 0, %s75
    %s79 = sphi 0, %s78
    %s95 = sphi 0, %s79
    %s99 = sphi 0, %s99
    %s101 = sphi 0, %s99
    %s102 = sphi 0, %s101
    %s116 = sphi 0, %s102
    %s120 = sphi 0, %s120
    %s122 = sphi 0, %s120
    %s123 = sphi 0, %s122
    %s137 = sphi 0, %s123
    %s141 = sphi 0, %s141
    %s143 = sphi 0, %s141
    %s144 = sphi 0, %s143
    %s158 = sphi 0, %s144
    %s162 = sphi 0, %s162
    %s164 = sphi 0, %s162
    %s165 = sphi 0, %s164
    %s179 = sphi 0, %s165
    %s185 = sphi 0, %s187
    %s188 = sphi 0, %s185
    %s189 = sphi 0, %s188
    %s205 = sphi 0, %s189
  $region4: #{transformer_forward.22} parent=0 // loop_header_branch
    %16 = sbr.rel (%p14) target = $region8
  $region5: #{transformer_forward.22} parent=0 // loop_body
    %s18 = ssub.s32 %s13, 1
    %s19 = ssub.s32 %s13, 2
    %s20 = sadd.s32 %s13, 1
    %s21 = ssub.s32 %s13, %s20
    %p22 = scmp.eq.s32.totalorder %s21, 0
    %s24 = sadd.s32 %s23, 1
    %s25 = scalar_select %p22, %s23, %s24
    %p28 = pneg %p22
    %p29 = scmp.eq.s32.totalorder %s13, 1
    %p30 = por %p28, %p29
    %p31 = scmp.ne.s32.totalorder %s23, %s26
    %p32 = scmp.eq.s32.totalorder %s13, 0
    %p33 = por %p31, %p32
    %p34 = scmp.ne.s32.totalorder %s23, %s26
    %p35 = scmp.eq.s32.totalorder %s18, 1
    %p36 = por %p34, %p35
    %p37 = scmp.ne.s32.totalorder %s26, %s27
    %p38 = scmp.eq.s32.totalorder %s18, 0
    %p39 = por %p37, %p38
    %p40 = scmp.ne.s32.totalorder %s26, %s27
    %p41 = scmp.eq.s32.totalorder %s19, 1
    %p42 = por %p40, %p41
    %p44 = scmp.ne.s32.totalorder %s27, %s43
    %p45 = scmp.eq.s32.totalorder %s19, 0
    %p46 = por %p44, %p45
    %s47 = ssub.s32 %s13, %s20
    %p48 = scmp.eq.s32.totalorder %s47, 0
    %s50 = sadd.s32 %s49, 1
    %s51 = scalar_select %p48, %s49, %s50
    %p54 = pneg %p48
    %p55 = scmp.eq.s32.totalorder %s13, 1
    %p56 = por %p54, %p55
    %p57 = scmp.ne.s32.totalorder %s49, %s52
    %p58 = scmp.eq.s32.totalorder %s13, 0
    %p59 = por %p57, %p58
    %p60 = scmp.ne.s32.totalorder %s49, %s52
    %p61 = scmp.eq.s32.totalorder %s18, 1
    %p62 = por %p60, %p61
    %p63 = scmp.ne.s32.totalorder %s52, %s53
    %p64 = scmp.eq.s32.totalorder %s18, 0
    %p65 = por %p63, %p64
    %p66 = scmp.ne.s32.totalorder %s52, %s53
    %p67 = scmp.eq.s32.totalorder %s19, 1
    %p68 = por %p66, %p67
    %p70 = scmp.ne.s32.totalorder %s53, %s69
    %p71 = scmp.eq.s32.totalorder %s19, 0
    %p72 = por %p70, %p71
    %s73 = ssub.s32 %s13, %s20
    %p74 = scmp.eq.s32.totalorder %s73, 0
    %s76 = sadd.s32 %s75, 1
    %s77 = scalar_select %p74, %s75, %s76
    %p80 = pneg %p74
    %p81 = scmp.eq.s32.totalorder %s13, 1
    %p82 = por %p80, %p81
    %p83 = scmp.ne.s32.totalorder %s75, %s78
    %p84 = scmp.eq.s32.totalorder %s13, 0
    %p85 = por %p83, %p84
    %p86 = scmp.ne.s32.totalorder %s75, %s78
    %p87 = scmp.eq.s32.totalorder %s18, 1
    %p88 = por %p86, %p87
    %p89 = scmp.ne.s32.totalorder %s78, %s79
    %p90 = scmp.eq.s32.totalorder %s18, 0
    %p91 = por %p89, %p90
    %p92 = scmp.ne.s32.totalorder %s78, %s79
    %p93 = scmp.eq.s32.totalorder %s19, 1
    %p94 = por %p92, %p93
    %p96 = scmp.ne.s32.totalorder %s79, %s95
    %p97 = scmp.eq.s32.totalorder %s19, 0
    %p98 = por %p96, %p97
    %s100 = sadd.s32 %s99, 1
    %p103 = scmp.eq.s32.totalorder %s13, 1
    %p104 = scmp.ne.s32.totalorder %s99, %s101
    %p105 = scmp.eq.s32.totalorder %s13, 0
    %p106 = por %p104, %p105
    %p107 = scmp.ne.s32.totalorder %s99, %s101
    %p108 = scmp.eq.s32.totalorder %s18, 1
    %p109 = por %p107, %p108
    %p110 = scmp.ne.s32.totalorder %s101, %s102
    %p111 = scmp.eq.s32.totalorder %s18, 0
    %p112 = por %p110, %p111
    %p113 = scmp.ne.s32.totalorder %s101, %s102
    %p114 = scmp.eq.s32.totalorder %s19, 1
    %p115 = por %p113, %p114
    %p117 = scmp.ne.s32.totalorder %s102, %s116
    %p118 = scmp.eq.s32.totalorder %s19, 0
    %p119 = por %p117, %p118
    %s121 = sadd.s32 %s120, 1
    %p124 = scmp.eq.s32.totalorder %s13, 1
    %p125 = scmp.ne.s32.totalorder %s120, %s122
    %p126 = scmp.eq.s32.totalorder %s13, 0
    %p127 = por %p125, %p126
    %p128 = scmp.ne.s32.totalorder %s120, %s122
    %p129 = scmp.eq.s32.totalorder %s18, 1
    %p130 = por %p128, %p129
    %p131 = scmp.ne.s32.totalorder %s122, %s123
    %p132 = scmp.eq.s32.totalorder %s18, 0
    %p133 = por %p131, %p132
    %p134 = scmp.ne.s32.totalorder %s122, %s123
    %p135 = scmp.eq.s32.totalorder %s19, 1
    %p136 = por %p134, %p135
    %p138 = scmp.ne.s32.totalorder %s123, %s137
    %p139 = scmp.eq.s32.totalorder %s19, 0
    %p140 = por %p138, %p139
    %s142 = sadd.s32 %s141, 1
    %p145 = scmp.eq.s32.totalorder %s13, 1
    %p146 = scmp.ne.s32.totalorder %s141, %s143
    %p147 = scmp.eq.s32.totalorder %s13, 0
    %p148 = por %p146, %p147
    %p149 = scmp.ne.s32.totalorder %s141, %s143
    %p150 = scmp.eq.s32.totalorder %s18, 1
    %p151 = por %p149, %p150
    %p152 = scmp.ne.s32.totalorder %s143, %s144
    %p153 = scmp.eq.s32.totalorder %s18, 0
    %p154 = por %p152, %p153
    %p155 = scmp.ne.s32.totalorder %s143, %s144
    %p156 = scmp.eq.s32.totalorder %s19, 1
    %p157 = por %p155, %p156
    %p159 = scmp.ne.s32.totalorder %s144, %s158
    %p160 = scmp.eq.s32.totalorder %s19, 0
    %p161 = por %p159, %p160
    %s163 = sadd.s32 %s162, 1
    %p166 = scmp.eq.s32.totalorder %s13, 1
    %p167 = scmp.ne.s32.totalorder %s162, %s164
    %p168 = scmp.eq.s32.totalorder %s13, 0
    %p169 = por %p167, %p168
    %p170 = scmp.ne.s32.totalorder %s162, %s164
    %p171 = scmp.eq.s32.totalorder %s18, 1
    %p172 = por %p170, %p171
    %p173 = scmp.ne.s32.totalorder %s164, %s165
    %p174 = scmp.eq.s32.totalorder %s18, 0
    %p175 = por %p173, %p174
    %p176 = scmp.ne.s32.totalorder %s164, %s165
    %p177 = scmp.eq.s32.totalorder %s19, 1
    %p178 = por %p176, %p177
    %p180 = scmp.ne.s32.totalorder %s165, %s179
    %p181 = scmp.eq.s32.totalorder %s19, 0
    %p182 = por %p180, %p181
    %s183 = ssub.s32 %s13, %s20
    %p184 = scmp.eq.s32.totalorder %s183, 0
    %s186 = sadd.s32 %s185, 1
    %s187 = scalar_select %p184, %s185, %s186
    %p190 = pneg %p184
    %p191 = scmp.eq.s32.totalorder %s13, 1
    %p192 = por %p190, %p191
    %p193 = scmp.ne.s32.totalorder %s185, %s188
    %p194 = scmp.eq.s32.totalorder %s13, 0
    %p195 = por %p193, %p194
    %p196 = scmp.ne.s32.totalorder %s185, %s188
    %p197 = scmp.eq.s32.totalorder %s18, 1
    %p198 = por %p196, %p197
    %p199 = scmp.ne.s32.totalorder %s188, %s189
    %p200 = scmp.eq.s32.totalorder %s18, 0
    %p201 = por %p199, %p200
    %p202 = scmp.ne.s32.totalorder %s188, %s189
    %p203 = scmp.eq.s32.totalorder %s19, 1
    %p204 = por %p202, %p203
    %p206 = scmp.ne.s32.totalorder %s189, %s205
    %p207 = scmp.eq.s32.totalorder %s19, 0
    %p208 = por %p206, %p207
    %p209 = scmp.le.s32.totalorder 1, %s13
    %p210 = scmp.lt.s32.totalorder %s13, 3
    %p211 = pnand %p209, %p210
    %p212 = pneg %p211
    // Predicated region
    $region9: #{transformer_forward.22} parent=5 // pred_check
      _
    $region10: #{transformer_forward.22} parent=5 // pred_check_branch
      %214 = sbr.rel (%p211) target = $region12
    $region11: #{transformer_forward.22} parent=5 // pred_region
      %s215 = ssub.s32 %s13, 1
      // Predicated region
      $region13: #{transformer_forward.22} parent=11 // pred_check
        %p216 = pneg %p112
      $region14: #{transformer_forward.22} parent=11 // pred_check_branch
        %218 = sbr.rel (%p216) target = $region16
      $region15: #{transformer_forward.22} parent=11 // pred_region
        _
      $region16: #{transformer_forward.22} parent=11 // pred_fallthru
        _
      // Predicated region
      $region17: #{transformer_forward.22} parent=11 // pred_check
        %p219 = pneg %p133
      $region18: #{transformer_forward.22} parent=11 // pred_check_branch
        %221 = sbr.rel (%p219) target = $region20
      $region19: #{transformer_forward.22} parent=11 // pred_region
        _
      $region20: #{transformer_forward.22} parent=11 // pred_fallthru
        _
      // Predicated region
      $region21: #{transformer_forward.22} parent=11 // pred_check
        %p222 = pneg %p154
      $region22: #{transformer_forward.22} parent=11 // pred_check_branch
        %224 = sbr.rel (%p222) target = $region24
      $region23: #{transformer_forward.22} parent=11 // pred_region
        _
      $region24: #{transformer_forward.22} parent=11 // pred_fallthru
        _
      // Predicated region
      $region25: #{transformer_forward.22} parent=11 // pred_check
        %p225 = pneg %p175
      $region26: #{transformer_forward.22} parent=11 // pred_check_branch
        %227 = sbr.rel (%p225) target = $region28
      $region27: #{transformer_forward.22} parent=11 // pred_region
        _
      $region28: #{transformer_forward.22} parent=11 // pred_fallthru
        _
    $region12: #{transformer_forward.22} parent=5 // pred_fallthru
      _
    %p228 = scmp.lt.s32.totalorder %s13, 2
    // Predicated region
    $region29: #{transformer_forward.22} parent=5 // pred_check
      %p229 = pneg %p228
    $region30: #{transformer_forward.22} parent=5 // pred_check_branch
      %231 = sbr.rel (%p229) target = $region32
    $region31: #{transformer_forward.22} parent=5 // pred_region
      // Predicated region
      $region33: #{transformer_forward.22} parent=31 // pred_check
        %p232 = pneg %p33
      $region34: #{transformer_forward.22} parent=31 // pred_check_branch
        %234 = sbr.rel (%p232) target = $region36
      $region35: #{transformer_forward.22} parent=31 // pred_region
        %p235 = scmp.lt.s32.totalorder %s13, 1
        %s236 = scalar_select %p235, %s13, 1
        %s237 = smul.addr %s236, 8
        %s238 = scalar_lea.vmem %s0, %s237
      $region36: #{transformer_forward.22} parent=31 // pred_fallthru
        _
      // Predicated region
      $region37: #{transformer_forward.22} parent=31 // pred_check
        %p239 = pneg %p59
      $region38: #{transformer_forward.22} parent=31 // pred_check_branch
        %241 = sbr.rel (%p239) target = $region40
      $region39: #{transformer_forward.22} parent=31 // pred_region
        %p242 = scmp.lt.s32.totalorder %s13, 1
        %s243 = scalar_select %p242, %s13, 1
        %s244 = smul.addr %s243, 8
        %s245 = scalar_lea.vmem %s1, %s244
      $region40: #{transformer_forward.22} parent=31 // pred_fallthru
        _
      // Predicated region
      $region41: #{transformer_forward.22} parent=31 // pred_check
        %p246 = pneg %p85
      $region42: #{transformer_forward.22} parent=31 // pred_check_branch
        %248 = sbr.rel (%p246) target = $region44
      $region43: #{transformer_forward.22} parent=31 // pred_region
        %p249 = scmp.lt.s32.totalorder %s13, 1
        %s250 = scalar_select %p249, %s13, 1
        %s251 = scalar_lea.vmem %s2, %s250
      $region44: #{transformer_forward.22} parent=31 // pred_fallthru
        _
    $region32: #{transformer_forward.22} parent=5 // pred_fallthru
      _
    %p252 = scmp.le.s32.totalorder 1, %s13
    %p253 = scmp.lt.s32.totalorder %s13, 3
    %p254 = pnand %p252, %p253
    %p255 = pneg %p254
    // Predicated region
    $region45: #{transformer_forward.22} parent=5 // pred_check
      _
    $region46: #{transformer_forward.22} parent=5 // pred_check_branch
      %257 = sbr.rel (%p254) target = $region48
    $region47: #{transformer_forward.22} parent=5 // pred_region
      %s258 = ssub.s32 %s13, 1
      %p259 = scmp.lt.s32.totalorder %s18, 1
      %s260 = scalar_select %p259, %s18, 1
      %s261 = smul.addr %s260, 8
      %s262 = scalar_lea.vmem %s0, %s261
      %p263 = pneg %p39
      %p264 = pneg %p36
      %p265 = scmp.lt.s32.totalorder %s18, 1
      %s266 = scalar_select %p265, %s18, 1
      %s267 = smul.addr %s266, 8
      %s268 = scalar_lea.vmem %s1, %s267
      %p269 = pneg %p65
      %p270 = pneg %p62
      %p271 = scmp.lt.s32.totalorder %s18, 1
      %s272 = scalar_select %p271, %s18, 1
      %s273 = scalar_lea.vmem %s2, %s272
      %p274 = pneg %p91
      %p275 = pneg %p88
      %p276 = pneg %p112
      %p277 = pneg %p109
      %p278 = pneg %p133
      %p279 = pneg %p130
      %p280 = pneg %p154
      %p281 = pneg %p151
      %p282 = pneg %p175
      %p283 = pneg %p172
      %p284 = pneg %p201
      %p285 = pneg %p198
      %p286 = scmp.lt.s32.totalorder %s18, 1
      %s287 = scalar_select %p286, %s18, 1
      %s288 = smul.addr %s287, 8
      %s289 = scalar_lea.vmem %s7, %s288
      %p290 = scmp.lt.s32.totalorder %s18, 1
      %s291 = scalar_select %p290, %s18, 1
      %s292 = smul.addr %s291, 8
      %s293 = scalar_lea.vmem %s0, %s292
      %p294 = scmp.lt.s32.totalorder %s18, 1
      %s295 = scalar_select %p294, %s18, 1
      %s296 = smul.addr %s295, 8
      %s297 = scalar_lea.vmem %s1, %s296
      %p298 = scmp.lt.s32.totalorder %s18, 1
      %s299 = scalar_select %p298, %s18, 1
      %s300 = scalar_lea.vmem %s2, %s299
      %p301 = scmp.lt.s32.totalorder %s18, 1
      %s302 = scalar_select %p301, %s18, 1
      %s303 = smul.addr %s302, 8
      %s304 = scalar_lea.vmem %s7, %s303
      %v306 = vld [vmem:[%s293] sm:$0xff]
      %v307 = vld [vmem:[%s300] sm:$0x1]
      %v308 = vpack.c.bf16 %v306, %v306
      %310 = vrot.lane.b32.xlu0 %v308, 96
      %v311 = vpop.permute.xlu0 %310
      %vm312 = vcmask 64512
      %v314 = vsel %vm312, %v308, 0
      %v317 = vsel %vm312, %v311, 0
      %319 = vmatprep.subr.bf16.mxu0 0
      %320 = vmatpush1.bf16.xpose.msra.mxu0 0
      %321 = vmatprep.subr.bf16.mxu0 0
      %322 = vmatpush1.bf16.xpose.msra.mxu0 0
      %323 = vmatprep.subr.bf16.mxu0 0
      %324 = vmatpush1.bf16.xpose.msra.mxu0 0
      %325 = vmatprep.subr.bf16.mxu0 0
      %326 = vmatpush1.bf16.xpose.msra.mxu0 0
      %327 = vmatprep.subr.bf16.mxu0 0
      %328 = vmatpush1.bf16.xpose.msra.mxu0 0
      %329 = vmatprep.subr.bf16.mxu0 0
      %330 = vmatpush1.bf16.xpose.msra.mxu0 0
      %331 = vmatprep.subr.bf16.mxu0 0
      %332 = vmatpush1.bf16.xpose.msra.mxu0 0
      %333 = vmatprep.subr.bf16.mxu0 0
      %334 = vmatpush1.bf16.xpose.msra.mxu0 %v317
      %335 = vmatprep.subr.bf16.mxu0 0
      %336 = vmatpush2.bf16.xpose.msra.mxu0 0
      %337 = vmatprep.subr.bf16.mxu0 0
      %338 = vmatpush2.bf16.xpose.msra.mxu0 0
      %339 = vmatprep.subr.bf16.mxu0 0
      %340 = vmatpush2.bf16.xpose.msra.mxu0 0
      %341 = vmatprep.subr.bf16.mxu0 0
      %342 = vmatpush2.bf16.xpose.msra.mxu0 0
      %343 = vmatprep.subr.bf16.mxu0 0
      %344 = vmatpush2.bf16.xpose.msra.mxu0 0
      %345 = vmatprep.subr.bf16.mxu0 0
      %346 = vmatpush2.bf16.xpose.msra.mxu0 0
      %347 = vmatprep.subr.bf16.mxu0 0
      %348 = vmatpush2.bf16.xpose.msra.mxu0 0
      %349 = vmatprep.subr.bf16.mxu0 0
      %350 = vmatpush2.bf16.xpose.msra.mxu0 0
      %351 = vmatprep.mubr.bf16.mxu0 0
      %352 = vmatmul.mubr.bf16.gmra.mxu0 %v314
      %v353 = vpop.f32.mrf.mxu0
      %v354 = vadd.f32 0.0, %v353
      %v355 = vpop.f32.mrf.mxu0
      %v356 = vpop.f32.mrf.mxu0
      %v357 = vpop.f32.mrf.mxu0
      %358 = vdwg.mxu0
      %v359 = vmul.f32 %v354, 0.35355338
      %v361 = vlaneseq
      %v362 = vshrl.u32 %v361, 7
      %v363 = vsub.s32 0, %v362
      %v364 = vrot.slane %v307, %v363
      %v366 = vadd.f32 %v359, %v364
      %v367 = vsel %vm312, %v366, -inf
      %368 = vmax.xlane.f32.xlu0 %v367
      %v369 = vpop.xlane.xlu0 %368
      %v370 = vsub.f32 %v366, %v369
      %v371 = vmul.f32 %v370, 1.442695
      %v372 = vpow.pop %v371
      %v373 = vsel %vm312, %v372, 0.0
      %374 = vadd.xlane.f32.xlu0 %v373
      %v375 = vpop.xlane.xlu0 %374
      %v376 = vrcp.pop %v375
      %v377 = vmul.f32 %v372, %v376
      %v378 = vpack.c.bf16 %v377, %v377
      %379 = vrot.lane.b32.xlu0 %v308, 64
      %v380 = vpop.permute.xlu0 %379
      %v382 = vsel %vm312, %v378, 0
      %vm384 = vcmask 1043456
      %v386 = vsel %vm384, %v380, 0
      %388 = vmatprep.subr.bf16.mxu0 0
      %389 = vmatpush1.bf16.msra.mxu0 0
      %390 = vmatprep.subr.bf16.mxu0 0
      %391 = vmatpush1.bf16.msra.mxu0 0
      %392 = vmatprep.subr.bf16.mxu0 0
      %393 = vmatpush1.bf16.msra.mxu0 0
      %394 = vmatprep.subr.bf16.mxu0 0
      %395 = vmatpush1.bf16.msra.mxu0 0
      %396 = vmatprep.subr.bf16.mxu0 0
      %397 = vmatpush1.bf16.msra.mxu0 0
      %398 = vmatprep.subr.bf16.mxu0 0
      %399 = vmatpush1.bf16.msra.mxu0 0
      %400 = vmatprep.subr.bf16.mxu0 0
      %401 = vmatpush1.bf16.msra.mxu0 0
      %402 = vmatprep.subr.bf16.mxu0 0
      %403 = vmatpush1.bf16.msra.mxu0 %v386
      %404 = vmatprep.subr.bf16.mxu0 0
      %405 = vmatpush2.bf16.msra.mxu0 0
      %406 = vmatprep.subr.bf16.mxu0 0
      %407 = vmatpush2.bf16.msra.mxu0 0
      %408 = vmatprep.subr.bf16.mxu0 0
      %409 = vmatpush2.bf16.msra.mxu0 0
      %410 = vmatprep.subr.bf16.mxu0 0
      %411 = vmatpush2.bf16.msra.mxu0 0
      %412 = vmatprep.subr.bf16.mxu0 0
      %413 = vmatpush2.bf16.msra.mxu0 0
      %414 = vmatprep.subr.bf16.mxu0 0
      %415 = vmatpush2.bf16.msra.mxu0 0
      %416 = vmatprep.subr.bf16.mxu0 0
      %417 = vmatpush2.bf16.msra.mxu0 0
      %418 = vmatprep.subr.bf16.mxu0 0
      %419 = vmatpush2.bf16.msra.mxu0 0
      %420 = vmatprep.mubr.bf16.mxu0 0
      %421 = vmatmul.mubr.bf16.gmra.mxu0 %v382
      %v422 = vpop.f32.mrf.mxu0
      %v423 = vadd.f32 0.0, %v422
      %v424 = vpop.f32.mrf.mxu0
      %v425 = vpop.f32.mrf.mxu0
      %v426 = vpop.f32.mrf.mxu0
      %427 = vdwg.mxu0
      %428 = vrot.lane.b32.xlu0 %v308, 120
      %v429 = vpop.permute.xlu0 %428
      %430 = vrot.lane.b32.xlu0 %v308, 88
      %v431 = vpop.permute.xlu0 %430
      %v433 = vsel %vm312, %v429, 0
      %v436 = vsel %vm312, %v431, 0
      %438 = vmatprep.subr.bf16.mxu0 0
      %439 = vmatpush1.bf16.xpose.msra.mxu0 0
      %440 = vmatprep.subr.bf16.mxu0 0
      %441 = vmatpush1.bf16.xpose.msra.mxu0 0
      %442 = vmatprep.subr.bf16.mxu0 0
      %443 = vmatpush1.bf16.xpose.msra.mxu0 0
      %444 = vmatprep.subr.bf16.mxu0 0
      %445 = vmatpush1.bf16.xpose.msra.mxu0 0
      %446 = vmatprep.subr.bf16.mxu0 0
      %447 = vmatpush1.bf16.xpose.msra.mxu0 0
      %448 = vmatprep.subr.bf16.mxu0 0
      %449 = vmatpush1.bf16.xpose.msra.mxu0 0
      %450 = vmatprep.subr.bf16.mxu0 0
      %451 = vmatpush1.bf16.xpose.msra.mxu0 0
      %452 = vmatprep.subr.bf16.mxu0 0
      %453 = vmatpush1.bf16.xpose.msra.mxu0 %v436
      %454 = vmatprep.subr.bf16.mxu0 0
      %455 = vmatpush2.bf16.xpose.msra.mxu0 0
      %456 = vmatprep.subr.bf16.mxu0 0
      %457 = vmatpush2.bf16.xpose.msra.mxu0 0
      %458 = vmatprep.subr.bf16.mxu0 0
      %459 = vmatpush2.bf16.xpose.msra.mxu0 0
      %460 = vmatprep.subr.bf16.mxu0 0
      %461 = vmatpush2.bf16.xpose.msra.mxu0 0
      %462 = vmatprep.subr.bf16.mxu0 0
      %463 = vmatpush2.bf16.xpose.msra.mxu0 0
      %464 = vmatprep.subr.bf16.mxu0 0
      %465 = vmatpush2.bf16.xpose.msra.mxu0 0
      %466 = vmatprep.subr.bf16.mxu0 0
      %467 = vmatpush2.bf16.xpose.msra.mxu0 0
      %468 = vmatprep.subr.bf16.mxu0 0
      %469 = vmatpush2.bf16.xpose.msra.mxu0 0
      %470 = vmatprep.mubr.bf16.mxu0 0
      %471 = vmatmul.mubr.bf16.gmra.mxu0 %v433
      %v472 = vpop.f32.mrf.mxu0
      %v473 = vadd.f32 0.0, %v472
      %v474 = vpop.f32.mrf.mxu0
      %v475 = vpop.f32.mrf.mxu0
      %v476 = vpop.f32.mrf.mxu0
      %477 = vdwg.mxu0
      %v478 = vmul.f32 %v473, 0.35355338
      %v479 = vadd.f32 %v478, %v364
      %v480 = vsel %vm312, %v479, -inf
      %481 = vmax.xlane.f32.xlu0 %v480
      %v482 = vpop.xlane.xlu0 %481
      %v483 = vsub.f32 %v479, %v482
      %v484 = vmul.f32 %v483, 1.442695
      %v485 = vpow.pop %v484
      %v486 = vsel %vm312, %v485, 0.0
      %487 = vadd.xlane.f32.xlu0 %v486
      %v488 = vpop.xlane.xlu0 %487
      %v489 = vrcp.pop %v488
      %v490 = vmul.f32 %v485, %v489
      %v491 = vpack.c.bf16 %v490, %v490
      %492 = vrot.lane.b32.xlu0 %v308, 56
      %v493 = vpop.permute.xlu0 %492
      %v495 = vsel %vm312, %v491, 0
      %v498 = vsel %vm384, %v493, 0
      %500 = vmatprep.subr.bf16.mxu0 0
      %501 = vmatpush1.bf16.msra.mxu0 0
      %502 = vmatprep.subr.bf16.mxu0 0
      %503 = vmatpush1.bf16.msra.mxu0 0
      %504 = vmatprep.subr.bf16.mxu0 0
      %505 = vmatpush1.bf16.msra.mxu0 0
      %506 = vmatprep.subr.bf16.mxu0 0
      %507 = vmatpush1.bf16.msra.mxu0 0
      %508 = vmatprep.subr.bf16.mxu0 0
      %509 = vmatpush1.bf16.msra.mxu0 0
      %510 = vmatprep.subr.bf16.mxu0 0
      %511 = vmatpush1.bf16.msra.mxu0 0
      %512 = vmatprep.subr.bf16.mxu0 0
      %513 = vmatpush1.bf16.msra.mxu0 0
      %514 = vmatprep.subr.bf16.mxu0 0
      %515 = vmatpush1.bf16.msra.mxu0 %v498
      %516 = vmatprep.subr.bf16.mxu0 0
      %517 = vmatpush2.bf16.msra.mxu0 0
      %518 = vmatprep.subr.bf16.mxu0 0
      %519 = vmatpush2.bf16.msra.mxu0 0
      %520 = vmatprep.subr.bf16.mxu0 0
      %521 = vmatpush2.bf16.msra.mxu0 0
      %522 = vmatprep.subr.bf16.mxu0 0
      %523 = vmatpush2.bf16.msra.mxu0 0
      %524 = vmatprep.subr.bf16.mxu0 0
      %525 = vmatpush2.bf16.msra.mxu0 0
      %526 = vmatprep.subr.bf16.mxu0 0
      %527 = vmatpush2.bf16.msra.mxu0 0
      %528 = vmatprep.subr.bf16.mxu0 0
      %529 = vmatpush2.bf16.msra.mxu0 0
      %530 = vmatprep.subr.bf16.mxu0 0
      %531 = vmatpush2.bf16.msra.mxu0 0
      %532 = vmatprep.mubr.bf16.mxu0 0
      %533 = vmatmul.mubr.bf16.gmra.mxu0 %v495
      %v534 = vpop.f32.mrf.mxu0
      %v535 = vadd.f32 0.0, %v534
      %v536 = vpop.f32.mrf.mxu0
      %v537 = vpop.f32.mrf.mxu0
      %v538 = vpop.f32.mrf.mxu0
      %539 = vdwg.mxu0
      %540 = vrot.lane.b32.xlu0 %v308, 112
      %v541 = vpop.permute.xlu0 %540
      %542 = vrot.lane.b32.xlu0 %v308, 80
      %v543 = vpop.permute.xlu0 %542
      %v545 = vsel %vm312, %v541, 0
      %v548 = vsel %vm312, %v543, 0
      %550 = vmatprep.subr.bf16.mxu0 0
      %551 = vmatpush1.bf16.xpose.msra.mxu0 0
      %552 = vmatprep.subr.bf16.mxu0 0
      %553 = vmatpush1.bf16.xpose.msra.mxu0 0
      %554 = vmatprep.subr.bf16.mxu0 0
      %555 = vmatpush1.bf16.xpose.msra.mxu0 0
      %556 = vmatprep.subr.bf16.mxu0 0
      %557 = vmatpush1.bf16.xpose.msra.mxu0 0
      %558 = vmatprep.subr.bf16.mxu0 0
      %559 = vmatpush1.bf16.xpose.msra.mxu0 0
      %560 = vmatprep.subr.bf16.mxu0 0
      %561 = vmatpush1.bf16.xpose.msra.mxu0 0
      %562 = vmatprep.subr.bf16.mxu0 0
      %563 = vmatpush1.bf16.xpose.msra.mxu0 0
      %564 = vmatprep.subr.bf16.mxu0 0
      %565 = vmatpush1.bf16.xpose.msra.mxu0 %v548
      %566 = vmatprep.subr.bf16.mxu0 0
      %567 = vmatpush2.bf16.xpose.msra.mxu0 0
      %568 = vmatprep.subr.bf16.mxu0 0
      %569 = vmatpush2.bf16.xpose.msra.mxu0 0
      %570 = vmatprep.subr.bf16.mxu0 0
      %571 = vmatpush2.bf16.xpose.msra.mxu0 0
      %572 = vmatprep.subr.bf16.mxu0 0
      %573 = vmatpush2.bf16.xpose.msra.mxu0 0
      %574 = vmatprep.subr.bf16.mxu0 0
      %575 = vmatpush2.bf16.xpose.msra.mxu0 0
      %576 = vmatprep.subr.bf16.mxu0 0
      %577 = vmatpush2.bf16.xpose.msra.mxu0 0
      %578 = vmatprep.subr.bf16.mxu0 0
      %579 = vmatpush2.bf16.xpose.msra.mxu0 0
      %580 = vmatprep.subr.bf16.mxu0 0
      %581 = vmatpush2.bf16.xpose.msra.mxu0 0
      %582 = vmatprep.mubr.bf16.mxu0 0
      %583 = vmatmul.mubr.bf16.gmra.mxu0 %v545
      %v584 = vpop.f32.mrf.mxu0
      %v585 = vadd.f32 0.0, %v584
      %v586 = vpop.f32.mrf.mxu0
      %v587 = vpop.f32.mrf.mxu0
      %v588 = vpop.f32.mrf.mxu0
      %589 = vdwg.mxu0
      %v590 = vmul.f32 %v585, 0.35355338
      %v591 = vadd.f32 %v590, %v364
      %v592 = vsel %vm312, %v591, -inf
      %593 = vmax.xlane.f32.xlu0 %v592
      %v594 = vpop.xlane.xlu0 %593
      %v595 = vsub.f32 %v591, %v594
      %v596 = vmul.f32 %v595, 1.442695
      %v597 = vpow.pop %v596
      %v598 = vsel %vm312, %v597, 0.0
      %599 = vadd.xlane.f32.xlu0 %v598
      %v600 = vpop.xlane.xlu0 %599
      %v601 = vrcp.pop %v600
      %v602 = vmul.f32 %v597, %v601
      %v603 = vpack.c.bf16 %v602, %v602
      %604 = vrot.lane.b32.xlu0 %v308, 48
      %v605 = vpop.permute.xlu0 %604
      %v607 = vsel %vm312, %v603, 0
      %v610 = vsel %vm384, %v605, 0
      %612 = vmatprep.subr.bf16.mxu0 0
      %613 = vmatpush1.bf16.msra.mxu0 0
      %614 = vmatprep.subr.bf16.mxu0 0
      %615 = vmatpush1.bf16.msra.mxu0 0
      %616 = vmatprep.subr.bf16.mxu0 0
      %617 = vmatpush1.bf16.msra.mxu0 0
      %618 = vmatprep.subr.bf16.mxu0 0
      %619 = vmatpush1.bf16.msra.mxu0 0
      %620 = vmatprep.subr.bf16.mxu0 0
      %621 = vmatpush1.bf16.msra.mxu0 0
      %622 = vmatprep.subr.bf16.mxu0 0
      %623 = vmatpush1.bf16.msra.mxu0 0
      %624 = vmatprep.subr.bf16.mxu0 0
      %625 = vmatpush1.bf16.msra.mxu0 0
      %626 = vmatprep.subr.bf16.mxu0 0
      %627 = vmatpush1.bf16.msra.mxu0 %v610
      %628 = vmatprep.subr.bf16.mxu0 0
      %629 = vmatpush2.bf16.msra.mxu0 0
      %630 = vmatprep.subr.bf16.mxu0 0
      %631 = vmatpush2.bf16.msra.mxu0 0
      %632 = vmatprep.subr.bf16.mxu0 0
      %633 = vmatpush2.bf16.msra.mxu0 0
      %634 = vmatprep.subr.bf16.mxu0 0
      %635 = vmatpush2.bf16.msra.mxu0 0
      %636 = vmatprep.subr.bf16.mxu0 0
      %637 = vmatpush2.bf16.msra.mxu0 0
      %638 = vmatprep.subr.bf16.mxu0 0
      %639 = vmatpush2.bf16.msra.mxu0 0
      %640 = vmatprep.subr.bf16.mxu0 0
      %641 = vmatpush2.bf16.msra.mxu0 0
      %642 = vmatprep.subr.bf16.mxu0 0
      %643 = vmatpush2.bf16.msra.mxu0 0
      %644 = vmatprep.mubr.bf16.mxu0 0
      %645 = vmatmul.mubr.bf16.gmra.mxu0 %v607
      %v646 = vpop.f32.mrf.mxu0
      %v647 = vadd.f32 0.0, %v646
      %v648 = vpop.f32.mrf.mxu0
      %v649 = vpop.f32.mrf.mxu0
      %v650 = vpop.f32.mrf.mxu0
      %651 = vdwg.mxu0
      %652 = vrot.lane.b32.xlu0 %v308, 104
      %v653 = vpop.permute.xlu0 %652
      %654 = vrot.lane.b32.xlu0 %v308, 72
      %v655 = vpop.permute.xlu0 %654
      %v657 = vsel %vm312, %v653, 0
      %v660 = vsel %vm312, %v655, 0
      %662 = vmatprep.subr.bf16.mxu0 0
      %663 = vmatpush1.bf16.xpose.msra.mxu0 0
      %664 = vmatprep.subr.bf16.mxu0 0
      %665 = vmatpush1.bf16.xpose.msra.mxu0 0
      %666 = vmatprep.subr.bf16.mxu0 0
      %667 = vmatpush1.bf16.xpose.msra.mxu0 0
      %668 = vmatprep.subr.bf16.mxu0 0
      %669 = vmatpush1.bf16.xpose.msra.mxu0 0
      %670 = vmatprep.subr.bf16.mxu0 0
      %671 = vmatpush1.bf16.xpose.msra.mxu0 0
      %672 = vmatprep.subr.bf16.mxu0 0
      %673 = vmatpush1.bf16.xpose.msra.mxu0 0
      %674 = vmatprep.subr.bf16.mxu0 0
      %675 = vmatpush1.bf16.xpose.msra.mxu0 0
      %676 = vmatprep.subr.bf16.mxu0 0
      %677 = vmatpush1.bf16.xpose.msra.mxu0 %v660
      %678 = vmatprep.subr.bf16.mxu0 0
      %679 = vmatpush2.bf16.xpose.msra.mxu0 0
      %680 = vmatprep.subr.bf16.mxu0 0
      %681 = vmatpush2.bf16.xpose.msra.mxu0 0
      %682 = vmatprep.subr.bf16.mxu0 0
      %683 = vmatpush2.bf16.xpose.msra.mxu0 0
      %684 = vmatprep.subr.bf16.mxu0 0
      %685 = vmatpush2.bf16.xpose.msra.mxu0 0
      %686 = vmatprep.subr.bf16.mxu0 0
      %687 = vmatpush2.bf16.xpose.msra.mxu0 0
      %688 = vmatprep.subr.bf16.mxu0 0
      %689 = vmatpush2.bf16.xpose.msra.mxu0 0
      %690 = vmatprep.subr.bf16.mxu0 0
      %691 = vmatpush2.bf16.xpose.msra.mxu0 0
      %692 = vmatprep.subr.bf16.mxu0 0
      %693 = vmatpush2.bf16.xpose.msra.mxu0 0
      %694 = vmatprep.mubr.bf16.mxu0 0
      %695 = vmatmul.mubr.bf16.gmra.mxu0 %v657
      %v696 = vpop.f32.mrf.mxu0
      %v697 = vadd.f32 0.0, %v696
      %v698 = vpop.f32.mrf.mxu0
      %v699 = vpop.f32.mrf.mxu0
      %v700 = vpop.f32.mrf.mxu0
      %701 = vdwg.mxu0
      %v702 = vmul.f32 %v697, 0.35355338
      %v703 = vadd.f32 %v702, %v364
      %v704 = vsel %vm312, %v703, -inf
      %705 = vmax.xlane.f32.xlu0 %v704
      %v706 = vpop.xlane.xlu0 %705
      %v707 = vsub.f32 %v703, %v706
      %v708 = vmul.f32 %v707, 1.442695
      %v709 = vpow.pop %v708
      %v710 = vsel %vm312, %v709, 0.0
      %711 = vadd.xlane.f32.xlu0 %v710
      %v712 = vpop.xlane.xlu0 %711
      %v713 = vrcp.pop %v712
      %v714 = vmul.f32 %v709, %v713
      %v715 = vpack.c.bf16 %v714, %v714
      %716 = vrot.lane.b32.xlu0 %v308, 40
      %v717 = vpop.permute.xlu0 %716
      %v719 = vsel %vm312, %v715, 0
      %v722 = vsel %vm384, %v717, 0
      %724 = vmatprep.subr.bf16.mxu0 0
      %725 = vmatpush1.bf16.msra.mxu0 0
      %726 = vmatprep.subr.bf16.mxu0 0
      %727 = vmatpush1.bf16.msra.mxu0 0
      %728 = vmatprep.subr.bf16.mxu0 0
      %729 = vmatpush1.bf16.msra.mxu0 0
      %730 = vmatprep.subr.bf16.mxu0 0
      %731 = vmatpush1.bf16.msra.mxu0 0
      %732 = vmatprep.subr.bf16.mxu0 0
      %733 = vmatpush1.bf16.msra.mxu0 0
      %734 = vmatprep.subr.bf16.mxu0 0
      %735 = vmatpush1.bf16.msra.mxu0 0
      %736 = vmatprep.subr.bf16.mxu0 0
      %737 = vmatpush1.bf16.msra.mxu0 0
      %738 = vmatprep.subr.bf16.mxu0 0
      %739 = vmatpush1.bf16.msra.mxu0 %v722
      %740 = vmatprep.subr.bf16.mxu0 0
      %741 = vmatpush2.bf16.msra.mxu0 0
      %742 = vmatprep.subr.bf16.mxu0 0
      %743 = vmatpush2.bf16.msra.mxu0 0
      %744 = vmatprep.subr.bf16.mxu0 0
      %745 = vmatpush2.bf16.msra.mxu0 0
      %746 = vmatprep.subr.bf16.mxu0 0
      %747 = vmatpush2.bf16.msra.mxu0 0
      %748 = vmatprep.subr.bf16.mxu0 0
      %749 = vmatpush2.bf16.msra.mxu0 0
      %750 = vmatprep.subr.bf16.mxu0 0
      %751 = vmatpush2.bf16.msra.mxu0 0
      %752 = vmatprep.subr.bf16.mxu0 0
      %753 = vmatpush2.bf16.msra.mxu0 0
      %754 = vmatprep.subr.bf16.mxu0 0
      %755 = vmatpush2.bf16.msra.mxu0 0
      %756 = vmatprep.mubr.bf16.mxu0 0
      %757 = vmatmul.mubr.bf16.gmra.mxu0 %v719
      %v758 = vpop.f32.mrf.mxu0
      %v759 = vadd.f32 0.0, %v758
      %v760 = vpop.f32.mrf.mxu0
      %v761 = vpop.f32.mrf.mxu0
      %v762 = vpop.f32.mrf.mxu0
      %763 = vdwg.mxu0
      %765 = vrot.lane.b32.xlu0 %v535, 8
      %v766 = vpop.permute.xlu0 %765
      %769 = vrot.lane.b32.xlu0 %v647, 16
      %v770 = vpop.permute.xlu0 %769
      %773 = vrot.lane.b32.xlu0 %v759, 24
      %v774 = vpop.permute.xlu0 %773
      %v776 = vsel %vm312, %v423, %v766
      %vm777 = vcmask 130048
      %v778 = vsel %vm777, %v776, %v770
      %vm779 = vcmask 195584
      %v780 = vsel %vm779, %v778, %v774
      %v781 = vld [vmem:[%s297] sm:$0xff]
      %v782 = vld [vmem:[%s3] sm:$0xff]
      %v783 = vld [vmem:[%s3 + $0x8] sm:$0xff]
      %v784 = vld [vmem:[%s3 + $0x10] sm:$0xff]
      %v785 = vld [vmem:[%s3 + $0x18] sm:$0xff]
      %v786 = vld [vmem:[%s4] sm:$0x1]
      %v787 = vld [vmem:[%s5] sm:$0x1]
      %v788 = vld [vmem:[%s6] sm:$0x1]
      %v789 = vpack.c.bf16 %v780, %v780
      %v790 = vpack.c.bf16 %v783, %v782
      %v791 = vpack.c.bf16 %v785, %v784
      %v793 = vlaneseq
      %v794 = vshrl.u32 %v793, 7
      %v795 = vsub.s32 0, %v794
      %v796 = vrot.slane %v786, %v795
      %vm798 = vcmask 261120
      %v800 = vsel %vm798, %v789, 0
      %802 = vmatprep.subr.bf16.mxu0 0
      %803 = vmatpush1.bf16.msra.mxu0 0
      %804 = vmatprep.subr.bf16.mxu0 0
      %805 = vmatpush1.bf16.msra.mxu0 0
      %806 = vmatprep.subr.bf16.mxu0 0
      %807 = vmatpush1.bf16.msra.mxu0 0
      %808 = vmatprep.subr.bf16.mxu0 0
      %809 = vmatpush1.bf16.msra.mxu0 0
      %810 = vmatprep.subr.bf16.mxu0 0
      %811 = vmatpush1.bf16.msra.mxu0 0
      %812 = vmatprep.subr.bf16.mxu0 0
      %813 = vmatpush1.bf16.msra.mxu0 0
      %814 = vmatprep.subr.bf16.mxu0 0
      %815 = vmatpush1.bf16.msra.mxu0 %v791
      %816 = vmatprep.subr.bf16.mxu0 0
      %817 = vmatpush1.bf16.msra.mxu0 %v790
      %818 = vmatprep.subr.bf16.mxu0 0
      %819 = vmatpush2.bf16.msra.mxu0 0
      %820 = vmatprep.subr.bf16.mxu0 0
      %821 = vmatpush2.bf16.msra.mxu0 0
      %822 = vmatprep.subr.bf16.mxu0 0
      %823 = vmatpush2.bf16.msra.mxu0 0
      %824 = vmatprep.subr.bf16.mxu0 0
      %825 = vmatpush2.bf16.msra.mxu0 0
      %826 = vmatprep.subr.bf16.mxu0 0
      %827 = vmatpush2.bf16.msra.mxu0 0
      %828 = vmatprep.subr.bf16.mxu0 0
      %829 = vmatpush2.bf16.msra.mxu0 0
      %830 = vmatprep.subr.bf16.mxu0 0
      %831 = vmatpush2.bf16.msra.mxu0 0
      %832 = vmatprep.subr.bf16.mxu0 0
      %833 = vmatpush2.bf16.msra.mxu0 0
      %834 = vmatprep.mubr.bf16.mxu0 0
      %835 = vmatmul.mubr.bf16.gmra.mxu0 %v800
      %v836 = vpop.f32.mrf.mxu0
      %v837 = vadd.f32 %v796, %v836
      %v838 = vpop.f32.mrf.mxu0
      %v839 = vpop.f32.mrf.mxu0
      %v840 = vpop.f32.mrf.mxu0
      %841 = vdwg.mxu0
      %v842 = vadd.f32 %v781, %v837
      %v843 = vsel %vm798, %v842, 0.0
      %844 = vadd.xlane.f32.xlu0 %v843
      %v845 = vpop.xlane.xlu0 %844
      %v846 = vrcp.pop 32.0
      %v847 = vmul.f32 %v845, %v846
      %v848 = vsub.f32 %v842, %v847
      %v849 = vmul.f32 %v848, %v848
      %v850 = vsel %vm798, %v849, 0.0
      %851 = vadd.xlane.f32.xlu0 %v850
      %v852 = vpop.xlane.xlu0 %851
      %v853 = vmul.f32 %v852, %v846
      %v854 = vadd.f32 %v853, 1e-05
      %v855 = vrsqrt.pop %v854
      %v856 = vmul.f32 %v848, %v855
      %v858 = vlaneseq
      %v859 = vshrl.u32 %v858, 7
      %v860 = vsub.s32 0, %v859
      %v861 = vrot.slane %v787, %v860
      %v863 = vmul.f32 %v856, %v861
      %v865 = vlaneseq
      %v866 = vshrl.u32 %v865, 7
      %v867 = vsub.s32 0, %v866
      %v868 = vrot.slane %v788, %v867
      %v870 = vadd.f32 %v863, %v868
      %871 = vst.msk [vmem:[%s304] sm:$0xff] %vm798, %v870
      %p872 = scmp.lt.s32.totalorder %s18, 1
      %s873 = scalar_select %p872, %s18, 1
      %s874 = smul.addr %s873, 8
      %s875 = scalar_lea.vmem %s7, %s874
      // Predicated region
      $region49: #{transformer_forward.22} parent=47 // pred_check
        %p876 = pneg %p198
      $region50: #{transformer_forward.22} parent=47 // pred_check_branch
        %878 = sbr.rel (%p876) target = $region52
      $region51: #{transformer_forward.22} parent=47 // pred_region
        _
      $region52: #{transformer_forward.22} parent=47 // pred_fallthru
        _
    $region48: #{transformer_forward.22} parent=5 // pred_fallthru
      _
    %p879 = scmp.le.s32.totalorder 2, %s13
    // Predicated region
    $region53: #{transformer_forward.22} parent=5 // pred_check
      %p880 = pneg %p879
    $region54: #{transformer_forward.22} parent=5 // pred_check_branch
      %882 = sbr.rel (%p880) target = $region56
    $region55: #{transformer_forward.22} parent=5 // pred_region
      %s883 = ssub.s32 %s13, 2
      // Predicated region
      $region57: #{transformer_forward.22} parent=55 // pred_check
        %p884 = pneg %p204
      $region58: #{transformer_forward.22} parent=55 // pred_check_branch
        %886 = sbr.rel (%p884) target = $region60
      $region59: #{transformer_forward.22} parent=55 // pred_region
        %p887 = scmp.lt.s32.totalorder %s19, 1
        %s888 = scalar_select %p887, %s19, 1
        %s889 = smul.addr %s888, 8
        %s890 = scalar_lea.vmem %s7, %s889
      $region60: #{transformer_forward.22} parent=55 // pred_fallthru
        _
    $region56: #{transformer_forward.22} parent=5 // pred_fallthru
      _
  $region6: #{transformer_forward.22} parent=0 // loop_footer
    %s17 = sadd.s32 1, %s13
  $region7: #{transformer_forward.22} parent=0 // loop_footer_branch
    %12 = sbr.rel target = $region3
  $region8: #{transformer_forward.22} parent=0 // loop_exit
    _

// kernel: transformer_forward.31
$region0: #{transformer_forward.31}
  #allocation0 [shape = 'u32[]', space=smem, size = 0x4, offset = 0x4, fixed_abs, tag = 'smem constant byte address 0x4 - core index']
  #allocation1 [shape = 'u32[144,128]{1,0:T(1,128)}', space=vmem, size = 0x12000, scoped, tag = 'internal scratch']
  #allocation2 [shape = 'f32[16,64]{1,0:T(8,128)}', space=vmem, size = 0x2000, scoped, tag = 'scratch operand']
  %s0 = inlined_call_operand.vmem [shape: f32[16,32], index: 0, kind: input, shape index: {}]
  %s1 = inlined_call_operand.vmem [shape: f32[32,64], index: 1, kind: input, shape index: {}]
  %s2 = inlined_call_operand.vmem [shape: f32[1,64], index: 2, kind: input, shape index: {}]
  %s3 = inlined_call_operand.vmem [shape: f32[16,64], index: 3, kind: output, shape index: {}]
  %s4 = sld [smem:[#allocation0]]
  $region30: #{transformer_forward.31} parent=0
    _
  %s6 = ssub.s32 1, %s4
  %s7 = scalar_select 0, %s6, %s4
  // Predicated region
  $region2: #{transformer_forward.31} parent=0 // pred_check
    _
  $region3: #{transformer_forward.31} parent=0 // pred_check_branch
    %9 = sbr.rel (0) target = $region5
  $region4: #{transformer_forward.31} parent=0 // pred_region
    _
  $region5: #{transformer_forward.31} parent=0 // pred_fallthru
    _
  // Predicated region
  $region6: #{transformer_forward.31} parent=0 // pred_check
    _
  $region7: #{transformer_forward.31} parent=0 // pred_check_branch
    %11 = sbr.rel (0) target = $region9
  $region8: #{transformer_forward.31} parent=0 // pred_region
    _
  $region9: #{transformer_forward.31} parent=0 // pred_fallthru
    _
  // Predicated region
  $region10: #{transformer_forward.31} parent=0 // pred_check
    _
  $region11: #{transformer_forward.31} parent=0 // pred_check_branch
    %13 = sbr.rel (0) target = $region13
  $region12: #{transformer_forward.31} parent=0 // pred_region
    _
  $region13: #{transformer_forward.31} parent=0 // pred_fallthru
    _
  %p15 = scmp.eq.s32.totalorder 0, 0
  // Predicated region
  $region14: #{transformer_forward.31} parent=0 // pred_check
    %p16 = pneg %p15
  $region15: #{transformer_forward.31} parent=0 // pred_check_branch
    %18 = sbr.rel (%p16) target = $region17
  $region16: #{transformer_forward.31} parent=0 // pred_region
    %vm19 = vcmask 523264
    %20 = vst.msk [vmem:[#allocation2] sm:$0xff] %vm19, 0.0
    %21 = vst.msk [vmem:[#allocation2 + $0x8] sm:$0xff] %vm19, 0.0
  $region17: #{transformer_forward.31} parent=0 // pred_fallthru
    _
  %v22 = vld [vmem:[#allocation2] sm:$0xff]
  %v23 = vld [vmem:[#allocation2 + $0x8] sm:$0xff]
  %v24 = vld [vmem:[%s0] sm:$0xff]
  %v25 = vld [vmem:[%s0 + $0x8] sm:$0xff]
  %v26 = vpack.c.bf16 %v25, %v24
  %v27 = vld [vmem:[%s1] sm:$0xff]
  %v28 = vld [vmem:[%s1 + $0x8] sm:$0xff]
  %v29 = vld [vmem:[%s1 + $0x10] sm:$0xff]
  %v30 = vld [vmem:[%s1 + $0x18] sm:$0xff]
  %v31 = vpack.c.bf16 %v28, %v27
  %v32 = vpack.c.bf16 %v30, %v29
  %vm33 = vcmask 261120
  %v35 = vsel %vm33, %v26, 0
  %37 = vmatprep.subr.bf16.mxu0 0
  %38 = vmatpush1.bf16.msra.mxu0 0
  %39 = vmatprep.subr.bf16.mxu0 0
  %40 = vmatpush1.bf16.msra.mxu0 0
  %41 = vmatprep.subr.bf16.mxu0 0
  %42 = vmatpush1.bf16.msra.mxu0 0
  %43 = vmatprep.subr.bf16.mxu0 0
  %44 = vmatpush1.bf16.msra.mxu0 0
  %45 = vmatprep.subr.bf16.mxu0 0
  %46 = vmatpush1.bf16.msra.mxu0 0
  %47 = vmatprep.subr.bf16.mxu0 0
  %48 = vmatpush1.bf16.msra.mxu0 0
  %49 = vmatprep.subr.bf16.mxu0 0
  %50 = vmatpush1.bf16.msra.mxu0 %v32
  %51 = vmatprep.subr.bf16.mxu0 0
  %52 = vmatpush1.bf16.msra.mxu0 %v31
  %53 = vmatprep.subr.bf16.mxu0 0
  %54 = vmatpush2.bf16.msra.mxu0 0
  %55 = vmatprep.subr.bf16.mxu0 0
  %56 = vmatpush2.bf16.msra.mxu0 0
  %57 = vmatprep.subr.bf16.mxu0 0
  %58 = vmatpush2.bf16.msra.mxu0 0
  %59 = vmatprep.subr.bf16.mxu0 0
  %60 = vmatpush2.bf16.msra.mxu0 0
  %61 = vmatprep.subr.bf16.mxu0 0
  %62 = vmatpush2.bf16.msra.mxu0 0
  %63 = vmatprep.subr.bf16.mxu0 0
  %64 = vmatpush2.bf16.msra.mxu0 0
  %65 = vmatprep.subr.bf16.mxu0 0
  %66 = vmatpush2.bf16.msra.mxu0 0
  %67 = vmatprep.subr.bf16.mxu0 0
  %68 = vmatpush2.bf16.msra.mxu0 0
  %69 = vmatprep.mubr.bf16.mxu0 0
  %70 = vmatmul.mubr.bf16.gmra.mxu0 %v35
  %v71 = vpop.f32.mrf.mxu0
  %v72 = vadd.f32 0.0, %v71
  %v73 = vpop.f32.mrf.mxu0
  %v74 = vpop.f32.mrf.mxu0
  %v75 = vadd.f32 0.0, %v74
  %v76 = vpop.f32.mrf.mxu0
  %77 = vdwg.mxu0
  %v78 = vadd.f32 %v22, %v72
  %v79 = vadd.f32 %v23, %v75
  %vm80 = vcmask 523264
  %81 = vst.msk [vmem:[#allocation2] sm:$0xff] %vm80, %v78
  %82 = vst.msk [vmem:[#allocation2 + $0x8] sm:$0xff] %vm80, %v79
  // Predicated region
  $region18: #{transformer_forward.31} parent=0 // pred_check
    %p83 = pneg %p15
  $region19: #{transformer_forward.31} parent=0 // pred_check_branch
    %85 = sbr.rel (%p83) target = $region21
  $region20: #{transformer_forward.31} parent=0 // pred_region
    %v86 = vld [vmem:[#allocation2] sm:$0xff]
    %v87 = vld [vmem:[#allocation2 + $0x8] sm:$0xff]
    %v88 = vld [vmem:[%s2] sm:$0x1]
    %v90 = vlaneseq
    %v91 = vshrl.u32 %v90, 7
    %v92 = vsub.s32 0, %v91
    %v93 = vrot.slane %v88, %v92
    %v95 = vadd.f32 %v86, %v93
    %v96 = vadd.f32 %v87, %v93
    %97 = vst.msk [vmem:[%s3] sm:$0xff] %vm80, %v95
    %98 = vst.msk [vmem:[%s3 + $0x8] sm:$0xff] %vm80, %v96
  $region21: #{transformer_forward.31} parent=0 // pred_fallthru
    _
  // Predicated region
  $region22: #{transformer_forward.31} parent=0 // pred_check
    _
  $region23: #{transformer_forward.31} parent=0 // pred_check_branch
    %100 = sbr.rel (0) target = $region25
  $region24: #{transformer_forward.31} parent=0 // pred_region
    _
  $region25: #{transformer_forward.31} parent=0 // pred_fallthru
    _
  // Predicated region
  $region26: #{transformer_forward.31} parent=0 // pred_check
    _
  $region27: #{transformer_forward.31} parent=0 // pred_check_branch
    %102 = sbr.rel (0) target = $region29
  $region28: #{transformer_forward.31} parent=0 // pred_region
    _
  $region29: #{transformer_forward.31} parent=0 // pred_fallthru
    _

// kernel: transformer_forward.30
$region0: #{transformer_forward.30}
  #allocation0 [shape = 'u32[]', space=smem, size = 0x4, offset = 0x4, fixed_abs, tag = 'smem constant byte address 0x4 - core index']
  #allocation1 [shape = 'u32[144,128]{1,0:T(1,128)}', space=vmem, size = 0x12000, scoped, tag = 'internal scratch']
  #allocation2 [shape = 'f32[16,32]{1,0:T(8,128)}', space=vmem, size = 0x2000, scoped, tag = 'scratch operand']
  %s0 = inlined_call_operand.vmem [shape: f32[16,32], index: 0, kind: input, shape index: {}]
  %s1 = inlined_call_operand.vmem [shape: f32[32,32], index: 1, kind: input, shape index: {}]
  %s2 = inlined_call_operand.vmem [shape: f32[1,32], index: 2, kind: input, shape index: {}]
  %s3 = inlined_call_operand.vmem [shape: f32[16,32], index: 3, kind: output, shape index: {}]
  %s4 = sld [smem:[#allocation0]]
  $region30: #{transformer_forward.30} parent=0
    _
  %s6 = ssub.s32 1, %s4
  %s7 = scalar_select 0, %s6, %s4
  // Predicated region
  $region2: #{transformer_forward.30} parent=0 // pred_check
    _
  $region3: #{transformer_forward.30} parent=0 // pred_check_branch
    %9 = sbr.rel (0) target = $region5
  $region4: #{transformer_forward.30} parent=0 // pred_region
    _
  $region5: #{transformer_forward.30} parent=0 // pred_fallthru
    _
  // Predicated region
  $region6: #{transformer_forward.30} parent=0 // pred_check
    _
  $region7: #{transformer_forward.30} parent=0 // pred_check_branch
    %11 = sbr.rel (0) target = $region9
  $region8: #{transformer_forward.30} parent=0 // pred_region
    _
  $region9: #{transformer_forward.30} parent=0 // pred_fallthru
    _
  // Predicated region
  $region10: #{transformer_forward.30} parent=0 // pred_check
    _
  $region11: #{transformer_forward.30} parent=0 // pred_check_branch
    %13 = sbr.rel (0) target = $region13
  $region12: #{transformer_forward.30} parent=0 // pred_region
    _
  $region13: #{transformer_forward.30} parent=0 // pred_fallthru
    _
  %p15 = scmp.eq.s32.totalorder 0, 0
  // Predicated region
  $region14: #{transformer_forward.30} parent=0 // pred_check
    %p16 = pneg %p15
  $region15: #{transformer_forward.30} parent=0 // pred_check_branch
    %18 = sbr.rel (%p16) target = $region17
  $region16: #{transformer_forward.30} parent=0 // pred_region
    %vm19 = vcmask 261120
    %20 = vst.msk [vmem:[#allocation2] sm:$0xff] %vm19, 0.0
    %21 = vst.msk [vmem:[#allocation2 + $0x8] sm:$0xff] %vm19, 0.0
  $region17: #{transformer_forward.30} parent=0 // pred_fallthru
    _
  %v22 = vld [vmem:[#allocation2] sm:$0xff]
  %v23 = vld [vmem:[#allocation2 + $0x8] sm:$0xff]
  %v24 = vld [vmem:[%s0] sm:$0xff]
  %v25 = vld [vmem:[%s0 + $0x8] sm:$0xff]
  %v26 = vpack.c.bf16 %v25, %v24
  %v27 = vld [vmem:[%s1] sm:$0xff]
  %v28 = vld [vmem:[%s1 + $0x8] sm:$0xff]
  %v29 = vld [vmem:[%s1 + $0x10] sm:$0xff]
  %v30 = vld [vmem:[%s1 + $0x18] sm:$0xff]
  %v31 = vpack.c.bf16 %v28, %v27
  %v32 = vpack.c.bf16 %v30, %v29
  %vm33 = vcmask 261120
  %v35 = vsel %vm33, %v26, 0
  %37 = vmatprep.subr.bf16.mxu0 0
  %38 = vmatpush1.bf16.msra.mxu0 0
  %39 = vmatprep.subr.bf16.mxu0 0
  %40 = vmatpush1.bf16.msra.mxu0 0
  %41 = vmatprep.subr.bf16.mxu0 0
  %42 = vmatpush1.bf16.msra.mxu0 0
  %43 = vmatprep.subr.bf16.mxu0 0
  %44 = vmatpush1.bf16.msra.mxu0 0
  %45 = vmatprep.subr.bf16.mxu0 0
  %46 = vmatpush1.bf16.msra.mxu0 0
  %47 = vmatprep.subr.bf16.mxu0 0
  %48 = vmatpush1.bf16.msra.mxu0 0
  %49 = vmatprep.subr.bf16.mxu0 0
  %50 = vmatpush1.bf16.msra.mxu0 %v32
  %51 = vmatprep.subr.bf16.mxu0 0
  %52 = vmatpush1.bf16.msra.mxu0 %v31
  %53 = vmatprep.subr.bf16.mxu0 0
  %54 = vmatpush2.bf16.msra.mxu0 0
  %55 = vmatprep.subr.bf16.mxu0 0
  %56 = vmatpush2.bf16.msra.mxu0 0
  %57 = vmatprep.subr.bf16.mxu0 0
  %58 = vmatpush2.bf16.msra.mxu0 0
  %59 = vmatprep.subr.bf16.mxu0 0
  %60 = vmatpush2.bf16.msra.mxu0 0
  %61 = vmatprep.subr.bf16.mxu0 0
  %62 = vmatpush2.bf16.msra.mxu0 0
  %63 = vmatprep.subr.bf16.mxu0 0
  %64 = vmatpush2.bf16.msra.mxu0 0
  %65 = vmatprep.subr.bf16.mxu0 0
  %66 = vmatpush2.bf16.msra.mxu0 0
  %67 = vmatprep.subr.bf16.mxu0 0
  %68 = vmatpush2.bf16.msra.mxu0 0
  %69 = vmatprep.mubr.bf16.mxu0 0
  %70 = vmatmul.mubr.bf16.gmra.mxu0 %v35
  %v71 = vpop.f32.mrf.mxu0
  %v72 = vadd.f32 0.0, %v71
  %v73 = vpop.f32.mrf.mxu0
  %v74 = vpop.f32.mrf.mxu0
  %v75 = vadd.f32 0.0, %v74
  %v76 = vpop.f32.mrf.mxu0
  %77 = vdwg.mxu0
  %v78 = vadd.f32 %v22, %v72
  %v79 = vadd.f32 %v23, %v75
  %80 = vst.msk [vmem:[#allocation2] sm:$0xff] %vm33, %v78
  %81 = vst.msk [vmem:[#allocation2 + $0x8] sm:$0xff] %vm33, %v79
  // Predicated region
  $region18: #{transformer_forward.30} parent=0 // pred_check
    %p82 = pneg %p15
  $region19: #{transformer_forward.30} parent=0 // pred_check_branch
    %84 = sbr.rel (%p82) target = $region21
  $region20: #{transformer_forward.30} parent=0 // pred_region
    %v85 = vld [vmem:[#allocation2] sm:$0xff]
    %v86 = vld [vmem:[#allocation2 + $0x8] sm:$0xff]
    %v87 = vld [vmem:[%s2] sm:$0x1]
    %v89 = vlaneseq
    %v90 = vshrl.u32 %v89, 7
    %v91 = vsub.s32 0, %v90
    %v92 = vrot.slane %v87, %v91
    %v94 = vadd.f32 %v85, %v92
    %v95 = vadd.f32 %v86, %v92
    %96 = vst.msk [vmem:[%s3] sm:$0xff] %vm33, %v94
    %97 = vst.msk [vmem:[%s3 + $0x8] sm:$0xff] %vm33, %v95
  $region21: #{transformer_forward.30} parent=0 // pred_fallthru
    _
  // Predicated region
  $region22: #{transformer_forward.30} parent=0 // pred_check
    _
  $region23: #{transformer_forward.30} parent=0 // pred_check_branch
    %99 = sbr.rel (0) target = $region25
  $region24: #{transformer_forward.30} parent=0 // pred_region
    _
  $region25: #{transformer_forward.30} parent=0 // pred_fallthru
    _
  // Predicated region
  $region26: #{transformer_forward.30} parent=0 // pred_check
    _
  $region27: #{transformer_forward.30} parent=0 // pred_check_branch
    %101 = sbr.rel (0) target = $region29
  $region28: #{transformer_forward.30} parent=0 // pred_region
    _
  $region29: #{transformer_forward.30} parent=0 // pred_fallthru
    _

// kernel: transformer_forward.29
$region0: #{transformer_forward.29}
  #allocation0 [shape = 'u32[]', space=smem, size = 0x4, offset = 0x4, fixed_abs, tag = 'smem constant byte address 0x4 - core index']
  #allocation1 [shape = 'u32[144,128]{1,0:T(1,128)}', space=vmem, size = 0x12000, scoped, tag = 'internal scratch']
  %s0 = inlined_call_operand.vmem [shape: f32[2,8,96], index: 0, kind: input, shape index: {}]
  %s1 = inlined_call_operand.vmem [shape: f32[2,8,32], index: 1, kind: input, shape index: {}]
  %s2 = inlined_call_operand.vmem [shape: f32[2,8,8], index: 2, kind: input, shape index: {}]
  %s3 = inlined_call_operand.vmem [shape: f32[32,32], index: 3, kind: input, shape index: {}]
  %s4 = inlined_call_operand.vmem [shape: f32[1,32], index: 4, kind: input, shape index: {}]
  %s5 = inlined_call_operand.vmem [shape: f32[1,32], index: 5, kind: input, shape index: {}]
  %s6 = inlined_call_operand.vmem [shape: f32[1,32], index: 6, kind: input, shape index: {}]
  %s7 = inlined_call_operand.vmem [shape: f32[2,8,32], index: 7, kind: output, shape index: {}]
  %s8 = sld [smem:[#allocation0]]
  $region61: #{transformer_forward.29} parent=0
    _
  %s10 = ssub.s32 1, %s8
  %s11 = scalar_select 0, %s10, %s8
  loop: start=0, step=1, limit=4
  $region2: #{transformer_forward.29} parent=0 // loop_pre_header
    _
  $region3: #{transformer_forward.29} parent=0 // loop_header
    %s13 = sphi 0, %s17
    %p14 = scmp.ge.s32.totalorder %s13, 4
    %s23 = sphi 0, %s25
    %s26 = sphi 0, %s23
    %s27 = sphi 0, %s26
    %s43 = sphi 0, %s27
    %s49 = sphi 0, %s51
    %s52 = sphi 0, %s49
    %s53 = sphi 0, %s52
    %s69 = sphi 0, %s53
    %s75 = sphi 0, %s77
    %s78 = sphi 0, %s75
    %s79 = sphi 0, %s78
    %s95 = sphi 0, %s79
    %s99 = sphi 0, %s99
    %s101 = sphi 0, %s99
    %s102 = sphi 0, %s101
    %s116 = sphi 0, %s102
    %s120 = sphi 0, %s120
    %s122 = sphi 0, %s120
    %s123 = sphi 0, %s122
    %s137 = sphi 0, %s123
    %s141 = sphi 0, %s141
    %s143 = sphi 0, %s141
    %s144 = sphi 0, %s143
    %s158 = sphi 0, %s144
    %s162 = sphi 0, %s162
    %s164 = sphi 0, %s162
    %s165 = sphi 0, %s164
    %s179 = sphi 0, %s165
    %s185 = sphi 0, %s187
    %s188 = sphi 0, %s185
    %s189 = sphi 0, %s188
    %s205 = sphi 0, %s189
  $region4: #{transformer_forward.29} parent=0 // loop_header_branch
    %16 = sbr.rel (%p14) target = $region8
  $region5: #{transformer_forward.29} parent=0 // loop_body
    %s18 = ssub.s32 %s13, 1
    %s19 = ssub.s32 %s13, 2
    %s20 = sadd.s32 %s13, 1
    %s21 = ssub.s32 %s13, %s20
    %p22 = scmp.eq.s32.totalorder %s21, 0
    %s24 = sadd.s32 %s23, 1
    %s25 = scalar_select %p22, %s23, %s24
    %p28 = pneg %p22
    %p29 = scmp.eq.s32.totalorder %s13, 1
    %p30 = por %p28, %p29
    %p31 = scmp.ne.s32.totalorder %s23, %s26
    %p32 = scmp.eq.s32.totalorder %s13, 0
    %p33 = por %p31, %p32
    %p34 = scmp.ne.s32.totalorder %s23, %s26
    %p35 = scmp.eq.s32.totalorder %s18, 1
    %p36 = por %p34, %p35
    %p37 = scmp.ne.s32.totalorder %s26, %s27
    %p38 = scmp.eq.s32.totalorder %s18, 0
    %p39 = por %p37, %p38
    %p40 = scmp.ne.s32.totalorder %s26, %s27
    %p41 = scmp.eq.s32.totalorder %s19, 1
    %p42 = por %p40, %p41
    %p44 = scmp.ne.s32.totalorder %s27, %s43
    %p45 = scmp.eq.s32.totalorder %s19, 0
    %p46 = por %p44, %p45
    %s47 = ssub.s32 %s13, %s20
    %p48 = scmp.eq.s32.totalorder %s47, 0
    %s50 = sadd.s32 %s49, 1
    %s51 = scalar_select %p48, %s49, %s50
    %p54 = pneg %p48
    %p55 = scmp.eq.s32.totalorder %s13, 1
    %p56 = por %p54, %p55
    %p57 = scmp.ne.s32.totalorder %s49, %s52
    %p58 = scmp.eq.s32.totalorder %s13, 0
    %p59 = por %p57, %p58
    %p60 = scmp.ne.s32.totalorder %s49, %s52
    %p61 = scmp.eq.s32.totalorder %s18, 1
    %p62 = por %p60, %p61
    %p63 = scmp.ne.s32.totalorder %s52, %s53
    %p64 = scmp.eq.s32.totalorder %s18, 0
    %p65 = por %p63, %p64
    %p66 = scmp.ne.s32.totalorder %s52, %s53
    %p67 = scmp.eq.s32.totalorder %s19, 1
    %p68 = por %p66, %p67
    %p70 = scmp.ne.s32.totalorder %s53, %s69
    %p71 = scmp.eq.s32.totalorder %s19, 0
    %p72 = por %p70, %p71
    %s73 = ssub.s32 %s13, %s20
    %p74 = scmp.eq.s32.totalorder %s73, 0
    %s76 = sadd.s32 %s75, 1
    %s77 = scalar_select %p74, %s75, %s76
    %p80 = pneg %p74
    %p81 = scmp.eq.s32.totalorder %s13, 1
    %p82 = por %p80, %p81
    %p83 = scmp.ne.s32.totalorder %s75, %s78
    %p84 = scmp.eq.s32.totalorder %s13, 0
    %p85 = por %p83, %p84
    %p86 = scmp.ne.s32.totalorder %s75, %s78
    %p87 = scmp.eq.s32.totalorder %s18, 1
    %p88 = por %p86, %p87
    %p89 = scmp.ne.s32.totalorder %s78, %s79
    %p90 = scmp.eq.s32.totalorder %s18, 0
    %p91 = por %p89, %p90
    %p92 = scmp.ne.s32.totalorder %s78, %s79
    %p93 = scmp.eq.s32.totalorder %s19, 1
    %p94 = por %p92, %p93
    %p96 = scmp.ne.s32.totalorder %s79, %s95
    %p97 = scmp.eq.s32.totalorder %s19, 0
    %p98 = por %p96, %p97
    %s100 = sadd.s32 %s99, 1
    %p103 = scmp.eq.s32.totalorder %s13, 1
    %p104 = scmp.ne.s32.totalorder %s99, %s101
    %p105 = scmp.eq.s32.totalorder %s13, 0
    %p106 = por %p104, %p105
    %p107 = scmp.ne.s32.totalorder %s99, %s101
    %p108 = scmp.eq.s32.totalorder %s18, 1
    %p109 = por %p107, %p108
    %p110 = scmp.ne.s32.totalorder %s101, %s102
    %p111 = scmp.eq.s32.totalorder %s18, 0
    %p112 = por %p110, %p111
    %p113 = scmp.ne.s32.totalorder %s101, %s102
    %p114 = scmp.eq.s32.totalorder %s19, 1
    %p115 = por %p113, %p114
    %p117 = scmp.ne.s32.totalorder %s102, %s116
    %p118 = scmp.eq.s32.totalorder %s19, 0
    %p119 = por %p117, %p118
    %s121 = sadd.s32 %s120, 1
    %p124 = scmp.eq.s32.totalorder %s13, 1
    %p125 = scmp.ne.s32.totalorder %s120, %s122
    %p126 = scmp.eq.s32.totalorder %s13, 0
    %p127 = por %p125, %p126
    %p128 = scmp.ne.s32.totalorder %s120, %s122
    %p129 = scmp.eq.s32.totalorder %s18, 1
    %p130 = por %p128, %p129
    %p131 = scmp.ne.s32.totalorder %s122, %s123
    %p132 = scmp.eq.s32.totalorder %s18, 0
    %p133 = por %p131, %p132
    %p134 = scmp.ne.s32.totalorder %s122, %s123
    %p135 = scmp.eq.s32.totalorder %s19, 1
    %p136 = por %p134, %p135
    %p138 = scmp.ne.s32.totalorder %s123, %s137
    %p139 = scmp.eq.s32.totalorder %s19, 0
    %p140 = por %p138, %p139
    %s142 = sadd.s32 %s141, 1
    %p145 = scmp.eq.s32.totalorder %s13, 1
    %p146 = scmp.ne.s32.totalorder %s141, %s143
    %p147 = scmp.eq.s32.totalorder %s13, 0
    %p148 = por %p146, %p147
    %p149 = scmp.ne.s32.totalorder %s141, %s143
    %p150 = scmp.eq.s32.totalorder %s18, 1
    %p151 = por %p149, %p150
    %p152 = scmp.ne.s32.totalorder %s143, %s144
    %p153 = scmp.eq.s32.totalorder %s18, 0
    %p154 = por %p152, %p153
    %p155 = scmp.ne.s32.totalorder %s143, %s144
    %p156 = scmp.eq.s32.totalorder %s19, 1
    %p157 = por %p155, %p156
    %p159 = scmp.ne.s32.totalorder %s144, %s158
    %p160 = scmp.eq.s32.totalorder %s19, 0
    %p161 = por %p159, %p160
    %s163 = sadd.s32 %s162, 1
    %p166 = scmp.eq.s32.totalorder %s13, 1
    %p167 = scmp.ne.s32.totalorder %s162, %s164
    %p168 = scmp.eq.s32.totalorder %s13, 0
    %p169 = por %p167, %p168
    %p170 = scmp.ne.s32.totalorder %s162, %s164
    %p171 = scmp.eq.s32.totalorder %s18, 1
    %p172 = por %p170, %p171
    %p173 = scmp.ne.s32.totalorder %s164, %s165
    %p174 = scmp.eq.s32.totalorder %s18, 0
    %p175 = por %p173, %p174
    %p176 = scmp.ne.s32.totalorder %s164, %s165
    %p177 = scmp.eq.s32.totalorder %s19, 1
    %p178 = por %p176, %p177
    %p180 = scmp.ne.s32.totalorder %s165, %s179
    %p181 = scmp.eq.s32.totalorder %s19, 0
    %p182 = por %p180, %p181
    %s183 = ssub.s32 %s13, %s20
    %p184 = scmp.eq.s32.totalorder %s183, 0
    %s186 = sadd.s32 %s185, 1
    %s187 = scalar_select %p184, %s185, %s186
    %p190 = pneg %p184
    %p191 = scmp.eq.s32.totalorder %s13, 1
    %p192 = por %p190, %p191
    %p193 = scmp.ne.s32.totalorder %s185, %s188
    %p194 = scmp.eq.s32.totalorder %s13, 0
    %p195 = por %p193, %p194
    %p196 = scmp.ne.s32.totalorder %s185, %s188
    %p197 = scmp.eq.s32.totalorder %s18, 1
    %p198 = por %p196, %p197
    %p199 = scmp.ne.s32.totalorder %s188, %s189
    %p200 = scmp.eq.s32.totalorder %s18, 0
    %p201 = por %p199, %p200
    %p202 = scmp.ne.s32.totalorder %s188, %s189
    %p203 = scmp.eq.s32.totalorder %s19, 1
    %p204 = por %p202, %p203
    %p206 = scmp.ne.s32.totalorder %s189, %s205
    %p207 = scmp.eq.s32.totalorder %s19, 0
    %p208 = por %p206, %p207
    %p209 = scmp.le.s32.totalorder 1, %s13
    %p210 = scmp.lt.s32.totalorder %s13, 3
    %p211 = pnand %p209, %p210
    %p212 = pneg %p211
    // Predicated region
    $region9: #{transformer_forward.29} parent=5 // pred_check
      _
    $region10: #{transformer_forward.29} parent=5 // pred_check_branch
      %214 = sbr.rel (%p211) target = $region12
    $region11: #{transformer_forward.29} parent=5 // pred_region
      %s215 = ssub.s32 %s13, 1
      // Predicated region
      $region13: #{transformer_forward.29} parent=11 // pred_check
        %p216 = pneg %p112
      $region14: #{transformer_forward.29} parent=11 // pred_check_branch
        %218 = sbr.rel (%p216) target = $region16
      $region15: #{transformer_forward.29} parent=11 // pred_region
        _
      $region16: #{transformer_forward.29} parent=11 // pred_fallthru
        _
      // Predicated region
      $region17: #{transformer_forward.29} parent=11 // pred_check
        %p219 = pneg %p133
      $region18: #{transformer_forward.29} parent=11 // pred_check_branch
        %221 = sbr.rel (%p219) target = $region20
      $region19: #{transformer_forward.29} parent=11 // pred_region
        _
      $region20: #{transformer_forward.29} parent=11 // pred_fallthru
        _
      // Predicated region
      $region21: #{transformer_forward.29} parent=11 // pred_check
        %p222 = pneg %p154
      $region22: #{transformer_forward.29} parent=11 // pred_check_branch
        %224 = sbr.rel (%p222) target = $region24
      $region23: #{transformer_forward.29} parent=11 // pred_region
        _
      $region24: #{transformer_forward.29} parent=11 // pred_fallthru
        _
      // Predicated region
      $region25: #{transformer_forward.29} parent=11 // pred_check
        %p225 = pneg %p175
      $region26: #{transformer_forward.29} parent=11 // pred_check_branch
        %227 = sbr.rel (%p225) target = $region28
      $region27: #{transformer_forward.29} parent=11 // pred_region
        _
      $region28: #{transformer_forward.29} parent=11 // pred_fallthru
        _
    $region12: #{transformer_forward.29} parent=5 // pred_fallthru
      _
    %p228 = scmp.lt.s32.totalorder %s13, 2
    // Predicated region
    $region29: #{transformer_forward.29} parent=5 // pred_check
      %p229 = pneg %p228
    $region30: #{transformer_forward.29} parent=5 // pred_check_branch
      %231 = sbr.rel (%p229) target = $region32
    $region31: #{transformer_forward.29} parent=5 // pred_region
      // Predicated region
      $region33: #{transformer_forward.29} parent=31 // pred_check
        %p232 = pneg %p33
      $region34: #{transformer_forward.29} parent=31 // pred_check_branch
        %234 = sbr.rel (%p232) target = $region36
      $region35: #{transformer_forward.29} parent=31 // pred_region
        %p235 = scmp.lt.s32.totalorder %s13, 1
        %s236 = scalar_select %p235, %s13, 1
        %s237 = smul.addr %s236, 8
        %s238 = scalar_lea.vmem %s0, %s237
      $region36: #{transformer_forward.29} parent=31 // pred_fallthru
        _
      // Predicated region
      $region37: #{transformer_forward.29} parent=31 // pred_check
        %p239 = pneg %p59
      $region38: #{transformer_forward.29} parent=31 // pred_check_branch
        %241 = sbr.rel (%p239) target = $region40
      $region39: #{transformer_forward.29} parent=31 // pred_region
        %p242 = scmp.lt.s32.totalorder %s13, 1
        %s243 = scalar_select %p242, %s13, 1
        %s244 = smul.addr %s243, 8
        %s245 = scalar_lea.vmem %s1, %s244
      $region40: #{transformer_forward.29} parent=31 // pred_fallthru
        _
      // Predicated region
      $region41: #{transformer_forward.29} parent=31 // pred_check
        %p246 = pneg %p85
      $region42: #{transformer_forward.29} parent=31 // pred_check_branch
        %248 = sbr.rel (%p246) target = $region44
      $region43: #{transformer_forward.29} parent=31 // pred_region
        %p249 = scmp.lt.s32.totalorder %s13, 1
        %s250 = scalar_select %p249, %s13, 1
        %s251 = smul.addr %s250, 8
        %s252 = scalar_lea.vmem %s2, %s251
      $region44: #{transformer_forward.29} parent=31 // pred_fallthru
        _
    $region32: #{transformer_forward.29} parent=5 // pred_fallthru
      _
    %p253 = scmp.le.s32.totalorder 1, %s13
    %p254 = scmp.lt.s32.totalorder %s13, 3
    %p255 = pnand %p253, %p254
    %p256 = pneg %p255
    // Predicated region
    $region45: #{transformer_forward.29} parent=5 // pred_check
      _
    $region46: #{transformer_forward.29} parent=5 // pred_check_branch
      %258 = sbr.rel (%p255) target = $region48
    $region47: #{transformer_forward.29} parent=5 // pred_region
      %s259 = ssub.s32 %s13, 1
      %p260 = scmp.lt.s32.totalorder %s18, 1
      %s261 = scalar_select %p260, %s18, 1
      %s262 = smul.addr %s261, 8
      %s263 = scalar_lea.vmem %s0, %s262
      %p264 = pneg %p39
      %p265 = pneg %p36
      %p266 = scmp.lt.s32.totalorder %s18, 1
      %s267 = scalar_select %p266, %s18, 1
      %s268 = smul.addr %s267, 8
      %s269 = scalar_lea.vmem %s1, %s268
      %p270 = pneg %p65
      %p271 = pneg %p62
      %p272 = scmp.lt.s32.totalorder %s18, 1
      %s273 = scalar_select %p272, %s18, 1
      %s274 = smul.addr %s273, 8
      %s275 = scalar_lea.vmem %s2, %s274
      %p276 = pneg %p91
      %p277 = pneg %p88
      %p278 = pneg %p112
      %p279 = pneg %p109
      %p280 = pneg %p133
      %p281 = pneg %p130
      %p282 = pneg %p154
      %p283 = pneg %p151
      %p284 = pneg %p175
      %p285 = pneg %p172
      %p286 = pneg %p201
      %p287 = pneg %p198
      %p288 = scmp.lt.s32.totalorder %s18, 1
      %s289 = scalar_select %p288, %s18, 1
      %s290 = smul.addr %s289, 8
      %s291 = scalar_lea.vmem %s7, %s290
      %p292 = scmp.lt.s32.totalorder %s18, 1
      %s293 = scalar_select %p292, %s18, 1
      %s294 = smul.addr %s293, 8
      %s295 = scalar_lea.vmem %s0, %s294
      %p296 = scmp.lt.s32.totalorder %s18, 1
      %s297 = scalar_select %p296, %s18, 1
      %s298 = smul.addr %s297, 8
      %s299 = scalar_lea.vmem %s1, %s298
      %p300 = scmp.lt.s32.totalorder %s18, 1
      %s301 = scalar_select %p300, %s18, 1
      %s302 = smul.addr %s301, 8
      %s303 = scalar_lea.vmem %s2, %s302
      %p304 = scmp.lt.s32.totalorder %s18, 1
      %s305 = scalar_select %p304, %s18, 1
      %s306 = smul.addr %s305, 8
      %s307 = scalar_lea.vmem %s7, %s306
      %v309 = vld [vmem:[%s295] sm:$0xff]
      %v310 = vld [vmem:[%s303] sm:$0xff]
      %v311 = vpack.c.bf16 %v309, %v309
      %313 = vrot.lane.b32.xlu0 %v311, 96
      %v314 = vpop.permute.xlu0 %313
      %vm315 = vcmask 64512
      %v317 = vsel %vm315, %v311, 0
      %v320 = vsel %vm315, %v314, 0
      %322 = vmatprep.subr.bf16.mxu0 0
      %323 = vmatpush1.bf16.xpose.msra.mxu0 0
      %324 = vmatprep.subr.bf16.mxu0 0
      %325 = vmatpush1.bf16.xpose.msra.mxu0 0
      %326 = vmatprep.subr.bf16.mxu0 0
      %327 = vmatpush1.bf16.xpose.msra.mxu0 0
      %328 = vmatprep.subr.bf16.mxu0 0
      %329 = vmatpush1.bf16.xpose.msra.mxu0 0
      %330 = vmatprep.subr.bf16.mxu0 0
      %331 = vmatpush1.bf16.xpose.msra.mxu0 0
      %332 = vmatprep.subr.bf16.mxu0 0
      %333 = vmatpush1.bf16.xpose.msra.mxu0 0
      %334 = vmatprep.subr.bf16.mxu0 0
      %335 = vmatpush1.bf16.xpose.msra.mxu0 0
      %336 = vmatprep.subr.bf16.mxu0 0
      %337 = vmatpush1.bf16.xpose.msra.mxu0 %v320
      %338 = vmatprep.subr.bf16.mxu0 0
      %339 = vmatpush2.bf16.xpose.msra.mxu0 0
      %340 = vmatprep.subr.bf16.mxu0 0
      %341 = vmatpush2.bf16.xpose.msra.mxu0 0
      %342 = vmatprep.subr.bf16.mxu0 0
      %343 = vmatpush2.bf16.xpose.msra.mxu0 0
      %344 = vmatprep.subr.bf16.mxu0 0
      %345 = vmatpush2.bf16.xpose.msra.mxu0 0
      %346 = vmatprep.subr.bf16.mxu0 0
      %347 = vmatpush2.bf16.xpose.msra.mxu0 0
      %348 = vmatprep.subr.bf16.mxu0 0
      %349 = vmatpush2.bf16.xpose.msra.mxu0 0
      %350 = vmatprep.subr.bf16.mxu0 0
      %351 = vmatpush2.bf16.xpose.msra.mxu0 0
      %352 = vmatprep.subr.bf16.mxu0 0
      %353 = vmatpush2.bf16.xpose.msra.mxu0 0
      %354 = vmatprep.mubr.bf16.mxu0 0
      %355 = vmatmul.mubr.bf16.gmra.mxu0 %v317
      %v356 = vpop.f32.mrf.mxu0
      %v357 = vadd.f32 0.0, %v356
      %v358 = vpop.f32.mrf.mxu0
      %v359 = vpop.f32.mrf.mxu0
      %v360 = vpop.f32.mrf.mxu0
      %361 = vdwg.mxu0
      %v362 = vmul.f32 %v357, 0.35355338
      %v363 = vadd.f32 %v362, %v310
      %v364 = vsel %vm315, %v363, -inf
      %365 = vmax.xlane.f32.xlu0 %v364
      %v366 = vpop.xlane.xlu0 %365
      %v367 = vsub.f32 %v363, %v366
      %v368 = vmul.f32 %v367, 1.442695
      %v369 = vpow.pop %v368
      %v370 = vsel %vm315, %v369, 0.0
      %371 = vadd.xlane.f32.xlu0 %v370
      %v372 = vpop.xlane.xlu0 %371
      %v373 = vrcp.pop %v372
      %v374 = vmul.f32 %v369, %v373
      %v375 = vpack.c.bf16 %v374, %v374
      %376 = vrot.lane.b32.xlu0 %v311, 64
      %v377 = vpop.permute.xlu0 %376
      %v379 = vsel %vm315, %v375, 0
      %vm381 = vcmask 1043456
      %v383 = vsel %vm381, %v377, 0
      %385 = vmatprep.subr.bf16.mxu0 0
      %386 = vmatpush1.bf16.msra.mxu0 0
      %387 = vmatprep.subr.bf16.mxu0 0
      %388 = vmatpush1.bf16.msra.mxu0 0
      %389 = vmatprep.subr.bf16.mxu0 0
      %390 = vmatpush1.bf16.msra.mxu0 0
      %391 = vmatprep.subr.bf16.mxu0 0
      %392 = vmatpush1.bf16.msra.mxu0 0
      %393 = vmatprep.subr.bf16.mxu0 0
      %394 = vmatpush1.bf16.msra.mxu0 0
      %395 = vmatprep.subr.bf16.mxu0 0
      %396 = vmatpush1.bf16.msra.mxu0 0
      %397 = vmatprep.subr.bf16.mxu0 0
      %398 = vmatpush1.bf16.msra.mxu0 0
      %399 = vmatprep.subr.bf16.mxu0 0
      %400 = vmatpush1.bf16.msra.mxu0 %v383
      %401 = vmatprep.subr.bf16.mxu0 0
      %402 = vmatpush2.bf16.msra.mxu0 0
      %403 = vmatprep.subr.bf16.mxu0 0
      %404 = vmatpush2.bf16.msra.mxu0 0
      %405 = vmatprep.subr.bf16.mxu0 0
      %406 = vmatpush2.bf16.msra.mxu0 0
      %407 = vmatprep.subr.bf16.mxu0 0
      %408 = vmatpush2.bf16.msra.mxu0 0
      %409 = vmatprep.subr.bf16.mxu0 0
      %410 = vmatpush2.bf16.msra.mxu0 0
      %411 = vmatprep.subr.bf16.mxu0 0
      %412 = vmatpush2.bf16.msra.mxu0 0
      %413 = vmatprep.subr.bf16.mxu0 0
      %414 = vmatpush2.bf16.msra.mxu0 0
      %415 = vmatprep.subr.bf16.mxu0 0
      %416 = vmatpush2.bf16.msra.mxu0 0
      %417 = vmatprep.mubr.bf16.mxu0 0
      %418 = vmatmul.mubr.bf16.gmra.mxu0 %v379
      %v419 = vpop.f32.mrf.mxu0
      %v420 = vadd.f32 0.0, %v419
      %v421 = vpop.f32.mrf.mxu0
      %v422 = vpop.f32.mrf.mxu0
      %v423 = vpop.f32.mrf.mxu0
      %424 = vdwg.mxu0
      %425 = vrot.lane.b32.xlu0 %v311, 120
      %v426 = vpop.permute.xlu0 %425
      %427 = vrot.lane.b32.xlu0 %v311, 88
      %v428 = vpop.permute.xlu0 %427
      %v430 = vsel %vm315, %v426, 0
      %v433 = vsel %vm315, %v428, 0
      %435 = vmatprep.subr.bf16.mxu0 0
      %436 = vmatpush1.bf16.xpose.msra.mxu0 0
      %437 = vmatprep.subr.bf16.mxu0 0
      %438 = vmatpush1.bf16.xpose.msra.mxu0 0
      %439 = vmatprep.subr.bf16.mxu0 0
      %440 = vmatpush1.bf16.xpose.msra.mxu0 0
      %441 = vmatprep.subr.bf16.mxu0 0
      %442 = vmatpush1.bf16.xpose.msra.mxu0 0
      %443 = vmatprep.subr.bf16.mxu0 0
      %444 = vmatpush1.bf16.xpose.msra.mxu0 0
      %445 = vmatprep.subr.bf16.mxu0 0
      %446 = vmatpush1.bf16.xpose.msra.mxu0 0
      %447 = vmatprep.subr.bf16.mxu0 0
      %448 = vmatpush1.bf16.xpose.msra.mxu0 0
      %449 = vmatprep.subr.bf16.mxu0 0
      %450 = vmatpush1.bf16.xpose.msra.mxu0 %v433
      %451 = vmatprep.subr.bf16.mxu0 0
      %452 = vmatpush2.bf16.xpose.msra.mxu0 0
      %453 = vmatprep.subr.bf16.mxu0 0
      %454 = vmatpush2.bf16.xpose.msra.mxu0 0
      %455 = vmatprep.subr.bf16.mxu0 0
      %456 = vmatpush2.bf16.xpose.msra.mxu0 0
      %457 = vmatprep.subr.bf16.mxu0 0
      %458 = vmatpush2.bf16.xpose.msra.mxu0 0
      %459 = vmatprep.subr.bf16.mxu0 0
      %460 = vmatpush2.bf16.xpose.msra.mxu0 0
      %461 = vmatprep.subr.bf16.mxu0 0
      %462 = vmatpush2.bf16.xpose.msra.mxu0 0
      %463 = vmatprep.subr.bf16.mxu0 0
      %464 = vmatpush2.bf16.xpose.msra.mxu0 0
      %465 = vmatprep.subr.bf16.mxu0 0
      %466 = vmatpush2.bf16.xpose.msra.mxu0 0
      %467 = vmatprep.mubr.bf16.mxu0 0
      %468 = vmatmul.mubr.bf16.gmra.mxu0 %v430
      %v469 = vpop.f32.mrf.mxu0
      %v470 = vadd.f32 0.0, %v469
      %v471 = vpop.f32.mrf.mxu0
      %v472 = vpop.f32.mrf.mxu0
      %v473 = vpop.f32.mrf.mxu0
      %474 = vdwg.mxu0
      %v475 = vmul.f32 %v470, 0.35355338
      %v476 = vadd.f32 %v475, %v310
      %v477 = vsel %vm315, %v476, -inf
      %478 = vmax.xlane.f32.xlu0 %v477
      %v479 = vpop.xlane.xlu0 %478
      %v480 = vsub.f32 %v476, %v479
      %v481 = vmul.f32 %v480, 1.442695
      %v482 = vpow.pop %v481
      %v483 = vsel %vm315, %v482, 0.0
      %484 = vadd.xlane.f32.xlu0 %v483
      %v485 = vpop.xlane.xlu0 %484
      %v486 = vrcp.pop %v485
      %v487 = vmul.f32 %v482, %v486
      %v488 = vpack.c.bf16 %v487, %v487
      %489 = vrot.lane.b32.xlu0 %v311, 56
      %v490 = vpop.permute.xlu0 %489
      %v492 = vsel %vm315, %v488, 0
      %v495 = vsel %vm381, %v490, 0
      %497 = vmatprep.subr.bf16.mxu0 0
      %498 = vmatpush1.bf16.msra.mxu0 0
      %499 = vmatprep.subr.bf16.mxu0 0
      %500 = vmatpush1.bf16.msra.mxu0 0
      %501 = vmatprep.subr.bf16.mxu0 0
      %502 = vmatpush1.bf16.msra.mxu0 0
      %503 = vmatprep.subr.bf16.mxu0 0
      %504 = vmatpush1.bf16.msra.mxu0 0
      %505 = vmatprep.subr.bf16.mxu0 0
      %506 = vmatpush1.bf16.msra.mxu0 0
      %507 = vmatprep.subr.bf16.mxu0 0
      %508 = vmatpush1.bf16.msra.mxu0 0
      %509 = vmatprep.subr.bf16.mxu0 0
      %510 = vmatpush1.bf16.msra.mxu0 0
      %511 = vmatprep.subr.bf16.mxu0 0
      %512 = vmatpush1.bf16.msra.mxu0 %v495
      %513 = vmatprep.subr.bf16.mxu0 0
      %514 = vmatpush2.bf16.msra.mxu0 0
      %515 = vmatprep.subr.bf16.mxu0 0
      %516 = vmatpush2.bf16.msra.mxu0 0
      %517 = vmatprep.subr.bf16.mxu0 0
      %518 = vmatpush2.bf16.msra.mxu0 0
      %519 = vmatprep.subr.bf16.mxu0 0
      %520 = vmatpush2.bf16.msra.mxu0 0
      %521 = vmatprep.subr.bf16.mxu0 0
      %522 = vmatpush2.bf16.msra.mxu0 0
      %523 = vmatprep.subr.bf16.mxu0 0
      %524 = vmatpush2.bf16.msra.mxu0 0
      %525 = vmatprep.subr.bf16.mxu0 0
      %526 = vmatpush2.bf16.msra.mxu0 0
      %527 = vmatprep.subr.bf16.mxu0 0
      %528 = vmatpush2.bf16.msra.mxu0 0
      %529 = vmatprep.mubr.bf16.mxu0 0
      %530 = vmatmul.mubr.bf16.gmra.mxu0 %v492
      %v531 = vpop.f32.mrf.mxu0
      %v532 = vadd.f32 0.0, %v531
      %v533 = vpop.f32.mrf.mxu0
      %v534 = vpop.f32.mrf.mxu0
      %v535 = vpop.f32.mrf.mxu0
      %536 = vdwg.mxu0
      %537 = vrot.lane.b32.xlu0 %v311, 112
      %v538 = vpop.permute.xlu0 %537
      %539 = vrot.lane.b32.xlu0 %v311, 80
      %v540 = vpop.permute.xlu0 %539
      %v542 = vsel %vm315, %v538, 0
      %v545 = vsel %vm315, %v540, 0
      %547 = vmatprep.subr.bf16.mxu0 0
      %548 = vmatpush1.bf16.xpose.msra.mxu0 0
      %549 = vmatprep.subr.bf16.mxu0 0
      %550 = vmatpush1.bf16.xpose.msra.mxu0 0
      %551 = vmatprep.subr.bf16.mxu0 0
      %552 = vmatpush1.bf16.xpose.msra.mxu0 0
      %553 = vmatprep.subr.bf16.mxu0 0
      %554 = vmatpush1.bf16.xpose.msra.mxu0 0
      %555 = vmatprep.subr.bf16.mxu0 0
      %556 = vmatpush1.bf16.xpose.msra.mxu0 0
      %557 = vmatprep.subr.bf16.mxu0 0
      %558 = vmatpush1.bf16.xpose.msra.mxu0 0
      %559 = vmatprep.subr.bf16.mxu0 0
      %560 = vmatpush1.bf16.xpose.msra.mxu0 0
      %561 = vmatprep.subr.bf16.mxu0 0
      %562 = vmatpush1.bf16.xpose.msra.mxu0 %v545
      %563 = vmatprep.subr.bf16.mxu0 0
      %564 = vmatpush2.bf16.xpose.msra.mxu0 0
      %565 = vmatprep.subr.bf16.mxu0 0
      %566 = vmatpush2.bf16.xpose.msra.mxu0 0
      %567 = vmatprep.subr.bf16.mxu0 0
      %568 = vmatpush2.bf16.xpose.msra.mxu0 0
      %569 = vmatprep.subr.bf16.mxu0 0
      %570 = vmatpush2.bf16.xpose.msra.mxu0 0
      %571 = vmatprep.subr.bf16.mxu0 0
      %572 = vmatpush2.bf16.xpose.msra.mxu0 0
      %573 = vmatprep.subr.bf16.mxu0 0
      %574 = vmatpush2.bf16.xpose.msra.mxu0 0
      %575 = vmatprep.subr.bf16.mxu0 0
      %576 = vmatpush2.bf16.xpose.msra.mxu0 0
      %577 = vmatprep.subr.bf16.mxu0 0
      %578 = vmatpush2.bf16.xpose.msra.mxu0 0
      %579 = vmatprep.mubr.bf16.mxu0 0
      %580 = vmatmul.mubr.bf16.gmra.mxu0 %v542
      %v581 = vpop.f32.mrf.mxu0
      %v582 = vadd.f32 0.0, %v581
      %v583 = vpop.f32.mrf.mxu0
      %v584 = vpop.f32.mrf.mxu0
      %v585 = vpop.f32.mrf.mxu0
      %586 = vdwg.mxu0
      %v587 = vmul.f32 %v582, 0.35355338
      %v588 = vadd.f32 %v587, %v310
      %v589 = vsel %vm315, %v588, -inf
      %590 = vmax.xlane.f32.xlu0 %v589
      %v591 = vpop.xlane.xlu0 %590
      %v592 = vsub.f32 %v588, %v591
      %v593 = vmul.f32 %v592, 1.442695
      %v594 = vpow.pop %v593
      %v595 = vsel %vm315, %v594, 0.0
      %596 = vadd.xlane.f32.xlu0 %v595
      %v597 = vpop.xlane.xlu0 %596
      %v598 = vrcp.pop %v597
      %v599 = vmul.f32 %v594, %v598
      %v600 = vpack.c.bf16 %v599, %v599
      %601 = vrot.lane.b32.xlu0 %v311, 48
      %v602 = vpop.permute.xlu0 %601
      %v604 = vsel %vm315, %v600, 0
      %v607 = vsel %vm381, %v602, 0
      %609 = vmatprep.subr.bf16.mxu0 0
      %610 = vmatpush1.bf16.msra.mxu0 0
      %611 = vmatprep.subr.bf16.mxu0 0
      %612 = vmatpush1.bf16.msra.mxu0 0
      %613 = vmatprep.subr.bf16.mxu0 0
      %614 = vmatpush1.bf16.msra.mxu0 0
      %615 = vmatprep.subr.bf16.mxu0 0
      %616 = vmatpush1.bf16.msra.mxu0 0
      %617 = vmatprep.subr.bf16.mxu0 0
      %618 = vmatpush1.bf16.msra.mxu0 0
      %619 = vmatprep.subr.bf16.mxu0 0
      %620 = vmatpush1.bf16.msra.mxu0 0
      %621 = vmatprep.subr.bf16.mxu0 0
      %622 = vmatpush1.bf16.msra.mxu0 0
      %623 = vmatprep.subr.bf16.mxu0 0
      %624 = vmatpush1.bf16.msra.mxu0 %v607
      %625 = vmatprep.subr.bf16.mxu0 0
      %626 = vmatpush2.bf16.msra.mxu0 0
      %627 = vmatprep.subr.bf16.mxu0 0
      %628 = vmatpush2.bf16.msra.mxu0 0
      %629 = vmatprep.subr.bf16.mxu0 0
      %630 = vmatpush2.bf16.msra.mxu0 0
      %631 = vmatprep.subr.bf16.mxu0 0
      %632 = vmatpush2.bf16.msra.mxu0 0
      %633 = vmatprep.subr.bf16.mxu0 0
      %634 = vmatpush2.bf16.msra.mxu0 0
      %635 = vmatprep.subr.bf16.mxu0 0
      %636 = vmatpush2.bf16.msra.mxu0 0
      %637 = vmatprep.subr.bf16.mxu0 0
      %638 = vmatpush2.bf16.msra.mxu0 0
      %639 = vmatprep.subr.bf16.mxu0 0
      %640 = vmatpush2.bf16.msra.mxu0 0
      %641 = vmatprep.mubr.bf16.mxu0 0
      %642 = vmatmul.mubr.bf16.gmra.mxu0 %v604
      %v643 = vpop.f32.mrf.mxu0
      %v644 = vadd.f32 0.0, %v643
      %v645 = vpop.f32.mrf.mxu0
      %v646 = vpop.f32.mrf.mxu0
      %v647 = vpop.f32.mrf.mxu0
      %648 = vdwg.mxu0
      %649 = vrot.lane.b32.xlu0 %v311, 104
      %v650 = vpop.permute.xlu0 %649
      %651 = vrot.lane.b32.xlu0 %v311, 72
      %v652 = vpop.permute.xlu0 %651
      %v654 = vsel %vm315, %v650, 0
      %v657 = vsel %vm315, %v652, 0
      %659 = vmatprep.subr.bf16.mxu0 0
      %660 = vmatpush1.bf16.xpose.msra.mxu0 0
      %661 = vmatprep.subr.bf16.mxu0 0
      %662 = vmatpush1.bf16.xpose.msra.mxu0 0
      %663 = vmatprep.subr.bf16.mxu0 0
      %664 = vmatpush1.bf16.xpose.msra.mxu0 0
      %665 = vmatprep.subr.bf16.mxu0 0
      %666 = vmatpush1.bf16.xpose.msra.mxu0 0
      %667 = vmatprep.subr.bf16.mxu0 0
      %668 = vmatpush1.bf16.xpose.msra.mxu0 0
      %669 = vmatprep.subr.bf16.mxu0 0
      %670 = vmatpush1.bf16.xpose.msra.mxu0 0
      %671 = vmatprep.subr.bf16.mxu0 0
      %672 = vmatpush1.bf16.xpose.msra.mxu0 0
      %673 = vmatprep.subr.bf16.mxu0 0
      %674 = vmatpush1.bf16.xpose.msra.mxu0 %v657
      %675 = vmatprep.subr.bf16.mxu0 0
      %676 = vmatpush2.bf16.xpose.msra.mxu0 0
      %677 = vmatprep.subr.bf16.mxu0 0
      %678 = vmatpush2.bf16.xpose.msra.mxu0 0
      %679 = vmatprep.subr.bf16.mxu0 0
      %680 = vmatpush2.bf16.xpose.msra.mxu0 0
      %681 = vmatprep.subr.bf16.mxu0 0
      %682 = vmatpush2.bf16.xpose.msra.mxu0 0
      %683 = vmatprep.subr.bf16.mxu0 0
      %684 = vmatpush2.bf16.xpose.msra.mxu0 0
      %685 = vmatprep.subr.bf16.mxu0 0
      %686 = vmatpush2.bf16.xpose.msra.mxu0 0
      %687 = vmatprep.subr.bf16.mxu0 0
      %688 = vmatpush2.bf16.xpose.msra.mxu0 0
      %689 = vmatprep.subr.bf16.mxu0 0
      %690 = vmatpush2.bf16.xpose.msra.mxu0 0
      %691 = vmatprep.mubr.bf16.mxu0 0
      %692 = vmatmul.mubr.bf16.gmra.mxu0 %v654
      %v693 = vpop.f32.mrf.mxu0
      %v694 = vadd.f32 0.0, %v693
      %v695 = vpop.f32.mrf.mxu0
      %v696 = vpop.f32.mrf.mxu0
      %v697 = vpop.f32.mrf.mxu0
      %698 = vdwg.mxu0
      %v699 = vmul.f32 %v694, 0.35355338
      %v700 = vadd.f32 %v699, %v310
      %v701 = vsel %vm315, %v700, -inf
      %702 = vmax.xlane.f32.xlu0 %v701
      %v703 = vpop.xlane.xlu0 %702
      %v704 = vsub.f32 %v700, %v703
      %v705 = vmul.f32 %v704, 1.442695
      %v706 = vpow.pop %v705
      %v707 = vsel %vm315, %v706, 0.0
      %708 = vadd.xlane.f32.xlu0 %v707
      %v709 = vpop.xlane.xlu0 %708
      %v710 = vrcp.pop %v709
      %v711 = vmul.f32 %v706, %v710
      %v712 = vpack.c.bf16 %v711, %v711
      %713 = vrot.lane.b32.xlu0 %v311, 40
      %v714 = vpop.permute.xlu0 %713
      %v716 = vsel %vm315, %v712, 0
      %v719 = vsel %vm381, %v714, 0
      %721 = vmatprep.subr.bf16.mxu0 0
      %722 = vmatpush1.bf16.msra.mxu0 0
      %723 = vmatprep.subr.bf16.mxu0 0
      %724 = vmatpush1.bf16.msra.mxu0 0
      %725 = vmatprep.subr.bf16.mxu0 0
      %726 = vmatpush1.bf16.msra.mxu0 0
      %727 = vmatprep.subr.bf16.mxu0 0
      %728 = vmatpush1.bf16.msra.mxu0 0
      %729 = vmatprep.subr.bf16.mxu0 0
      %730 = vmatpush1.bf16.msra.mxu0 0
      %731 = vmatprep.subr.bf16.mxu0 0
      %732 = vmatpush1.bf16.msra.mxu0 0
      %733 = vmatprep.subr.bf16.mxu0 0
      %734 = vmatpush1.bf16.msra.mxu0 0
      %735 = vmatprep.subr.bf16.mxu0 0
      %736 = vmatpush1.bf16.msra.mxu0 %v719
      %737 = vmatprep.subr.bf16.mxu0 0
      %738 = vmatpush2.bf16.msra.mxu0 0
      %739 = vmatprep.subr.bf16.mxu0 0
      %740 = vmatpush2.bf16.msra.mxu0 0
      %741 = vmatprep.subr.bf16.mxu0 0
      %742 = vmatpush2.bf16.msra.mxu0 0
      %743 = vmatprep.subr.bf16.mxu0 0
      %744 = vmatpush2.bf16.msra.mxu0 0
      %745 = vmatprep.subr.bf16.mxu0 0
      %746 = vmatpush2.bf16.msra.mxu0 0
      %747 = vmatprep.subr.bf16.mxu0 0
      %748 = vmatpush2.bf16.msra.mxu0 0
      %749 = vmatprep.subr.bf16.mxu0 0
      %750 = vmatpush2.bf16.msra.mxu0 0
      %751 = vmatprep.subr.bf16.mxu0 0
      %752 = vmatpush2.bf16.msra.mxu0 0
      %753 = vmatprep.mubr.bf16.mxu0 0
      %754 = vmatmul.mubr.bf16.gmra.mxu0 %v716
      %v755 = vpop.f32.mrf.mxu0
      %v756 = vadd.f32 0.0, %v755
      %v757 = vpop.f32.mrf.mxu0
      %v758 = vpop.f32.mrf.mxu0
      %v759 = vpop.f32.mrf.mxu0
      %760 = vdwg.mxu0
      %762 = vrot.lane.b32.xlu0 %v532, 8
      %v763 = vpop.permute.xlu0 %762
      %766 = vrot.lane.b32.xlu0 %v644, 16
      %v767 = vpop.permute.xlu0 %766
      %770 = vrot.lane.b32.xlu0 %v756, 24
      %v771 = vpop.permute.xlu0 %770
      %v773 = vsel %vm315, %v420, %v763
      %vm774 = vcmask 130048
      %v775 = vsel %vm774, %v773, %v767
      %vm776 = vcmask 195584
      %v777 = vsel %vm776, %v775, %v771
      %v778 = vld [vmem:[%s299] sm:$0xff]
      %v779 = vld [vmem:[%s3] sm:$0xff]
      %v780 = vld [vmem:[%s3 + $0x8] sm:$0xff]
      %v781 = vld [vmem:[%s3 + $0x10] sm:$0xff]
      %v782 = vld [vmem:[%s3 + $0x18] sm:$0xff]
      %v783 = vld [vmem:[%s4] sm:$0x1]
      %v784 = vld [vmem:[%s5] sm:$0x1]
      %v785 = vld [vmem:[%s6] sm:$0x1]
      %v786 = vpack.c.bf16 %v777, %v777
      %v787 = vpack.c.bf16 %v780, %v779
      %v788 = vpack.c.bf16 %v782, %v781
      %v790 = vlaneseq
      %v791 = vshrl.u32 %v790, 7
      %v792 = vsub.s32 0, %v791
      %v793 = vrot.slane %v783, %v792
      %vm795 = vcmask 261120
      %v797 = vsel %vm795, %v786, 0
      %799 = vmatprep.subr.bf16.mxu0 0
      %800 = vmatpush1.bf16.msra.mxu0 0
      %801 = vmatprep.subr.bf16.mxu0 0
      %802 = vmatpush1.bf16.msra.mxu0 0
      %803 = vmatprep.subr.bf16.mxu0 0
      %804 = vmatpush1.bf16.msra.mxu0 0
      %805 = vmatprep.subr.bf16.mxu0 0
      %806 = vmatpush1.bf16.msra.mxu0 0
      %807 = vmatprep.subr.bf16.mxu0 0
      %808 = vmatpush1.bf16.msra.mxu0 0
      %809 = vmatprep.subr.bf16.mxu0 0
      %810 = vmatpush1.bf16.msra.mxu0 0
      %811 = vmatprep.subr.bf16.mxu0 0
      %812 = vmatpush1.bf16.msra.mxu0 %v788
      %813 = vmatprep.subr.bf16.mxu0 0
      %814 = vmatpush1.bf16.msra.mxu0 %v787
      %815 = vmatprep.subr.bf16.mxu0 0
      %816 = vmatpush2.bf16.msra.mxu0 0
      %817 = vmatprep.subr.bf16.mxu0 0
      %818 = vmatpush2.bf16.msra.mxu0 0
      %819 = vmatprep.subr.bf16.mxu0 0
      %820 = vmatpush2.bf16.msra.mxu0 0
      %821 = vmatprep.subr.bf16.mxu0 0
      %822 = vmatpush2.bf16.msra.mxu0 0
      %823 = vmatprep.subr.bf16.mxu0 0
      %824 = vmatpush2.bf16.msra.mxu0 0
      %825 = vmatprep.subr.bf16.mxu0 0
      %826 = vmatpush2.bf16.msra.mxu0 0
      %827 = vmatprep.subr.bf16.mxu0 0
      %828 = vmatpush2.bf16.msra.mxu0 0
      %829 = vmatprep.subr.bf16.mxu0 0
      %830 = vmatpush2.bf16.msra.mxu0 0
      %831 = vmatprep.mubr.bf16.mxu0 0
      %832 = vmatmul.mubr.bf16.gmra.mxu0 %v797
      %v833 = vpop.f32.mrf.mxu0
      %v834 = vadd.f32 %v793, %v833
      %v835 = vpop.f32.mrf.mxu0
      %v836 = vpop.f32.mrf.mxu0
      %v837 = vpop.f32.mrf.mxu0
      %838 = vdwg.mxu0
      %v839 = vadd.f32 %v778, %v834
      %v840 = vsel %vm795, %v839, 0.0
      %841 = vadd.xlane.f32.xlu0 %v840
      %v842 = vpop.xlane.xlu0 %841
      %v843 = vrcp.pop 32.0
      %v844 = vmul.f32 %v842, %v843
      %v845 = vsub.f32 %v839, %v844
      %v846 = vmul.f32 %v845, %v845
      %v847 = vsel %vm795, %v846, 0.0
      %848 = vadd.xlane.f32.xlu0 %v847
      %v849 = vpop.xlane.xlu0 %848
      %v850 = vmul.f32 %v849, %v843
      %v851 = vadd.f32 %v850, 1e-05
      %v852 = vrsqrt.pop %v851
      %v853 = vmul.f32 %v845, %v852
      %v855 = vlaneseq
      %v856 = vshrl.u32 %v855, 7
      %v857 = vsub.s32 0, %v856
      %v858 = vrot.slane %v784, %v857
      %v860 = vmul.f32 %v853, %v858
      %v862 = vlaneseq
      %v863 = vshrl.u32 %v862, 7
      %v864 = vsub.s32 0, %v863
      %v865 = vrot.slane %v785, %v864
      %v867 = vadd.f32 %v860, %v865
      %868 = vst.msk [vmem:[%s307] sm:$0xff] %vm795, %v867
      %p869 = scmp.lt.s32.totalorder %s18, 1
      %s870 = scalar_select %p869, %s18, 1
      %s871 = smul.addr %s870, 8
      %s872 = scalar_lea.vmem %s7, %s871
      // Predicated region
      $region49: #{transformer_forward.29} parent=47 // pred_check
        %p873 = pneg %p198
      $region50: #{transformer_forward.29} parent=47 // pred_check_branch
        %875 = sbr.rel (%p873) target = $region52
      $region51: #{transformer_forward.29} parent=47 // pred_region
        _
      $region52: #{transformer_forward.29} parent=47 // pred_fallthru
        _
    $region48: #{transformer_forward.29} parent=5 // pred_fallthru
      _
    %p876 = scmp.le.s32.totalorder 2, %s13
    // Predicated region
    $region53: #{transformer_forward.29} parent=5 // pred_check
      %p877 = pneg %p876
    $region54: #{transformer_forward.29} parent=5 // pred_check_branch
      %879 = sbr.rel (%p877) target = $region56
    $region55: #{transformer_forward.29} parent=5 // pred_region
      %s880 = ssub.s32 %s13, 2
      // Predicated region
      $region57: #{transformer_forward.29} parent=55 // pred_check
        %p881 = pneg %p204
      $region58: #{transformer_forward.29} parent=55 // pred_check_branch
        %883 = sbr.rel (%p881) target = $region60
      $region59: #{transformer_forward.29} parent=55 // pred_region
        %p884 = scmp.lt.s32.totalorder %s19, 1
        %s885 = scalar_select %p884, %s19, 1
        %s886 = smul.addr %s885, 8
        %s887 = scalar_lea.vmem %s7, %s886
      $region60: #{transformer_forward.29} parent=55 // pred_fallthru
        _
    $region56: #{transformer_forward.29} parent=5 // pred_fallthru
      _
  $region6: #{transformer_forward.29} parent=0 // loop_footer
    %s17 = sadd.s32 1, %s13
  $region7: #{transformer_forward.29} parent=0 // loop_footer_branch
    %12 = sbr.rel target = $region3
  $region8: #{transformer_forward.29} parent=0 // loop_exit
    _

// kernel: transformer_forward.39
$region0: #{transformer_forward.39}
  #allocation0 [shape = 'u32[]', space=smem, size = 0x4, offset = 0x4, fixed_abs, tag = 'smem constant byte address 0x4 - core index']
  #allocation1 [shape = 'u32[144,128]{1,0:T(1,128)}', space=vmem, size = 0x12000, scoped, tag = 'internal scratch']
  %s0 = inlined_call_operand.vmem [shape: f32[16,32], index: 0, kind: input, shape index: {}]
  %s1 = inlined_call_operand.vmem [shape: f32[32,64], index: 1, kind: input, shape index: {}]
  %s2 = inlined_call_operand.vmem [shape: f32[1,64], index: 2, kind: input, shape index: {}]
  %s3 = inlined_call_operand.vmem [shape: f32[64,32], index: 3, kind: input, shape index: {}]
  %s4 = inlined_call_operand.vmem [shape: f32[1,32], index: 4, kind: input, shape index: {}]
  %s5 = inlined_call_operand.vmem [shape: f32[1,32], index: 5, kind: input, shape index: {}]
  %s6 = inlined_call_operand.vmem [shape: f32[1,32], index: 6, kind: input, shape index: {}]
  %s7 = inlined_call_operand.hbm [shape: f32[16,32], index: 7, kind: output, shape index: {}]
  %s8 = sld [smem:[#allocation0]]
  $region38: #{transformer_forward.39} parent=0
    _
  %s10 = ssub.s32 1, %s8
  %s11 = scalar_select 0, %s10, %s8
  $region1: #{transformer_forward.39} parent=0
    #allocation2 [shape = 'u8[8192]{0}', space=vmem, size = 0x2000, scoped, tag = 'output window, operand 0, single buffered']
    #allocation3 [shape = 's32[1]{0}', space=sflag, size = 0x4, scoped, tag = 'scoped memory for transformer_forward.39']
    %12 = vsyncpa [#allocation3], 0
    // Predicated region
    $region2: #{transformer_forward.39} parent=1 // pred_check
      _
    $region3: #{transformer_forward.39} parent=1 // pred_check_branch
      %14 = sbr.rel (0) target = $region5
    $region4: #{transformer_forward.39} parent=1 // pred_region
      _
    $region5: #{transformer_forward.39} parent=1 // pred_fallthru
      _
    // Predicated region
    $region6: #{transformer_forward.39} parent=1 // pred_check
      _
    $region7: #{transformer_forward.39} parent=1 // pred_check_branch
      %16 = sbr.rel (0) target = $region9
    $region8: #{transformer_forward.39} parent=1 // pred_region
      _
    $region9: #{transformer_forward.39} parent=1 // pred_fallthru
      _
    // Predicated region
    $region10: #{transformer_forward.39} parent=1 // pred_check
      _
    $region11: #{transformer_forward.39} parent=1 // pred_check_branch
      %18 = sbr.rel (0) target = $region13
    $region12: #{transformer_forward.39} parent=1 // pred_region
      _
    $region13: #{transformer_forward.39} parent=1 // pred_fallthru
      _
    // Predicated region
    $region14: #{transformer_forward.39} parent=1 // pred_check
      _
    $region15: #{transformer_forward.39} parent=1 // pred_check_branch
      %20 = sbr.rel (0) target = $region17
    $region16: #{transformer_forward.39} parent=1 // pred_region
      _
    $region17: #{transformer_forward.39} parent=1 // pred_fallthru
      _
    // Predicated region
    $region18: #{transformer_forward.39} parent=1 // pred_check
      _
    $region19: #{transformer_forward.39} parent=1 // pred_check_branch
      %22 = sbr.rel (0) target = $region21
    $region20: #{transformer_forward.39} parent=1 // pred_region
      _
    $region21: #{transformer_forward.39} parent=1 // pred_fallthru
      _
    // Predicated region
    $region22: #{transformer_forward.39} parent=1 // pred_check
      _
    $region23: #{transformer_forward.39} parent=1 // pred_check_branch
      %24 = sbr.rel (0) target = $region25
    $region24: #{transformer_forward.39} parent=1 // pred_region
      _
    $region25: #{transformer_forward.39} parent=1 // pred_fallthru
      _
    // Predicated region
    $region26: #{transformer_forward.39} parent=1 // pred_check
      _
    $region27: #{transformer_forward.39} parent=1 // pred_check_branch
      %26 = sbr.rel (0) target = $region29
    $region28: #{transformer_forward.39} parent=1 // pred_region
      _
    $region29: #{transformer_forward.39} parent=1 // pred_fallthru
      _
    %v28 = vld [vmem:[%s0] sm:$0xff]
    %v29 = vld [vmem:[%s0 + $0x8] sm:$0xff]
    %v30 = vpack.c.bf16 %v29, %v28
    %v31 = vld [vmem:[%s1] sm:$0xff]
    %v32 = vld [vmem:[%s1 + $0x8] sm:$0xff]
    %v33 = vld [vmem:[%s1 + $0x10] sm:$0xff]
    %v34 = vld [vmem:[%s1 + $0x18] sm:$0xff]
    %v35 = vpack.c.bf16 %v32, %v31
    %v36 = vpack.c.bf16 %v34, %v33
    %v37 = vld [vmem:[%s2] sm:$0x1]
    %v39 = vlaneseq
    %v40 = vshrl.u32 %v39, 7
    %v41 = vsub.s32 0, %v40
    %v42 = vrot.slane %v37, %v41
    %vm44 = vcmask 261120
    %v46 = vsel %vm44, %v30, 0
    %48 = vmatprep.subr.bf16.mxu0 0
    %49 = vmatpush1.bf16.msra.mxu0 0
    %50 = vmatprep.subr.bf16.mxu0 0
    %51 = vmatpush1.bf16.msra.mxu0 0
    %52 = vmatprep.subr.bf16.mxu0 0
    %53 = vmatpush1.bf16.msra.mxu0 0
    %54 = vmatprep.subr.bf16.mxu0 0
    %55 = vmatpush1.bf16.msra.mxu0 0
    %56 = vmatprep.subr.bf16.mxu0 0
    %57 = vmatpush1.bf16.msra.mxu0 0
    %58 = vmatprep.subr.bf16.mxu0 0
    %59 = vmatpush1.bf16.msra.mxu0 0
    %60 = vmatprep.subr.bf16.mxu0 0
    %61 = vmatpush1.bf16.msra.mxu0 %v36
    %62 = vmatprep.subr.bf16.mxu0 0
    %63 = vmatpush1.bf16.msra.mxu0 %v35
    %64 = vmatprep.subr.bf16.mxu0 0
    %65 = vmatpush2.bf16.msra.mxu0 0
    %66 = vmatprep.subr.bf16.mxu0 0
    %67 = vmatpush2.bf16.msra.mxu0 0
    %68 = vmatprep.subr.bf16.mxu0 0
    %69 = vmatpush2.bf16.msra.mxu0 0
    %70 = vmatprep.subr.bf16.mxu0 0
    %71 = vmatpush2.bf16.msra.mxu0 0
    %72 = vmatprep.subr.bf16.mxu0 0
    %73 = vmatpush2.bf16.msra.mxu0 0
    %74 = vmatprep.subr.bf16.mxu0 0
    %75 = vmatpush2.bf16.msra.mxu0 0
    %76 = vmatprep.subr.bf16.mxu0 0
    %77 = vmatpush2.bf16.msra.mxu0 0
    %78 = vmatprep.subr.bf16.mxu0 0
    %79 = vmatpush2.bf16.msra.mxu0 0
    %80 = vmatprep.mubr.bf16.mxu0 0
    %81 = vmatmul.mubr.bf16.gmra.mxu0 %v46
    %v82 = vpop.f32.mrf.mxu0
    %v83 = vadd.f32 %v42, %v82
    %v84 = vpop.f32.mrf.mxu0
    %v85 = vpop.f32.mrf.mxu0
    %v86 = vadd.f32 %v42, %v85
    %v87 = vpop.f32.mrf.mxu0
    %88 = vdwg.mxu0
    %v89 = vmax.f32 %v83, 0.0
    %v90 = vmax.f32 %v86, 0.0
    %v91 = vpack.c.bf16 %v90, %v89
    %v92 = vld [vmem:[%s3] sm:$0xff]
    %v93 = vld [vmem:[%s3 + $0x8] sm:$0xff]
    %v94 = vld [vmem:[%s3 + $0x10] sm:$0xff]
    %v95 = vld [vmem:[%s3 + $0x18] sm:$0xff]
    %v96 = vld [vmem:[%s3 + $0x20] sm:$0xff]
    %v97 = vld [vmem:[%s3 + $0x28] sm:$0xff]
    %v98 = vld [vmem:[%s3 + $0x30] sm:$0xff]
    %v99 = vld [vmem:[%s3 + $0x38] sm:$0xff]
    %v100 = vpack.c.bf16 %v93, %v92
    %v101 = vpack.c.bf16 %v95, %v94
    %v102 = vpack.c.bf16 %v97, %v96
    %v103 = vpack.c.bf16 %v99, %v98
    %v104 = vld [vmem:[%s4] sm:$0x1]
    %v106 = vlaneseq
    %v107 = vshrl.u32 %v106, 7
    %v108 = vsub.s32 0, %v107
    %v109 = vrot.slane %v104, %v108
    %vm111 = vcmask 523264
    %v113 = vsel %vm111, %v91, 0
    %115 = vmatprep.subr.bf16.mxu0 0
    %116 = vmatpush1.bf16.msra.mxu0 0
    %117 = vmatprep.subr.bf16.mxu0 0
    %118 = vmatpush1.bf16.msra.mxu0 0
    %119 = vmatprep.subr.bf16.mxu0 0
    %120 = vmatpush1.bf16.msra.mxu0 0
    %121 = vmatprep.subr.bf16.mxu0 0
    %122 = vmatpush1.bf16.msra.mxu0 0
    %123 = vmatprep.subr.bf16.mxu0 0
    %124 = vmatpush1.bf16.msra.mxu0 %v103
    %125 = vmatprep.subr.bf16.mxu0 0
    %126 = vmatpush1.bf16.msra.mxu0 %v102
    %127 = vmatprep.subr.bf16.mxu0 0
    %128 = vmatpush1.bf16.msra.mxu0 %v101
    %129 = vmatprep.subr.bf16.mxu0 0
    %130 = vmatpush1.bf16.msra.mxu0 %v100
    %131 = vmatprep.subr.bf16.mxu0 0
    %132 = vmatpush2.bf16.msra.mxu0 0
    %133 = vmatprep.subr.bf16.mxu0 0
    %134 = vmatpush2.bf16.msra.mxu0 0
    %135 = vmatprep.subr.bf16.mxu0 0
    %136 = vmatpush2.bf16.msra.mxu0 0
    %137 = vmatprep.subr.bf16.mxu0 0
    %138 = vmatpush2.bf16.msra.mxu0 0
    %139 = vmatprep.subr.bf16.mxu0 0
    %140 = vmatpush2.bf16.msra.mxu0 0
    %141 = vmatprep.subr.bf16.mxu0 0
    %142 = vmatpush2.bf16.msra.mxu0 0
    %143 = vmatprep.subr.bf16.mxu0 0
    %144 = vmatpush2.bf16.msra.mxu0 0
    %145 = vmatprep.subr.bf16.mxu0 0
    %146 = vmatpush2.bf16.msra.mxu0 0
    %147 = vmatprep.mubr.bf16.mxu0 0
    %148 = vmatmul.mubr.bf16.gmra.mxu0 %v113
    %v149 = vpop.f32.mrf.mxu0
    %v150 = vadd.f32 %v109, %v149
    %v151 = vpop.f32.mrf.mxu0
    %v152 = vpop.f32.mrf.mxu0
    %v153 = vadd.f32 %v109, %v152
    %v154 = vpop.f32.mrf.mxu0
    %155 = vdwg.mxu0
    %v156 = vadd.f32 %v150, %v28
    %v157 = vadd.f32 %v153, %v29
    %v158 = vld [vmem:[%s5] sm:$0x1]
    %v159 = vld [vmem:[%s6] sm:$0x1]
    %v160 = vsel %vm44, %v156, 0.0
    %161 = vadd.xlane.f32.xlu0 %v160
    %v162 = vpop.xlane.xlu0 %161
    %v163 = vsel %vm44, %v157, 0.0
    %164 = vadd.xlane.f32.xlu0 %v163
    %v165 = vpop.xlane.xlu0 %164
    %v166 = vrcp.pop 32.0
    %v167 = vmul.f32 %v162, %v166
    %v168 = vmul.f32 %v165, %v166
    %v169 = vsub.f32 %v156, %v167
    %v170 = vsub.f32 %v157, %v168
    %v171 = vmul.f32 %v169, %v169
    %v172 = vmul.f32 %v170, %v170
    %v173 = vsel %vm44, %v171, 0.0
    %174 = vadd.xlane.f32.xlu0 %v173
    %v175 = vpop.xlane.xlu0 %174
    %v176 = vsel %vm44, %v172, 0.0
    %177 = vadd.xlane.f32.xlu0 %v176
    %v178 = vpop.xlane.xlu0 %177
    %v179 = vmul.f32 %v175, %v166
    %v180 = vmul.f32 %v178, %v166
    %v181 = vadd.f32 %v179, 1e-05
    %v182 = vadd.f32 %v180, 1e-05
    %v183 = vrsqrt.pop %v181
    %v184 = vrsqrt.pop %v182
    %v185 = vmul.f32 %v169, %v183
    %v186 = vmul.f32 %v170, %v184
    %v188 = vlaneseq
    %v189 = vshrl.u32 %v188, 7
    %v190 = vsub.s32 0, %v189
    %v191 = vrot.slane %v158, %v190
    %v193 = vmul.f32 %v185, %v191
    %v194 = vmul.f32 %v186, %v191
    %v196 = vlaneseq
    %v197 = vshrl.u32 %v196, 7
    %v198 = vsub.s32 0, %v197
    %v199 = vrot.slane %v159, %v198
    %v201 = vadd.f32 %v193, %v199
    %v202 = vadd.f32 %v194, %v199
    %203 = vst.msk [vmem:[#allocation2] sm:$0xff] %vm44, %v201
    %204 = vst.msk [vmem:[#allocation2 + $0x8] sm:$0xff] %vm44, %v202
    // Predicated region
    $region30: #{transformer_forward.39} parent=1 // pred_check
      _
    $region31: #{transformer_forward.39} parent=1 // pred_check_branch
      %206 = sbr.rel (0) target = $region33
    $region32: #{transformer_forward.39} parent=1 // pred_region
      %s208 = ssub.s32 256, 256
      %209 = vsyncadd [#allocation3], %s208
      %s210 = sshll.u32 [#allocation2], 4
      %s211 = int_to_ptr.vmem [resolvable:$true] %s210
      %216 = dma.vmem_to_hbm [thread:$0]  %s211, 256, %s7, [#allocation3], 128, 128, 8
    $region33: #{transformer_forward.39} parent=1 // pred_fallthru
      _
    // Predicated region
    $region34: #{transformer_forward.39} parent=1 // pred_check
      _
    $region35: #{transformer_forward.39} parent=1 // pred_check_branch
      %218 = sbr.rel (0) target = $region37
    $region36: #{transformer_forward.39} parent=1 // pred_region
      %219 = dma.done [#allocation3], 256
    $region37: #{transformer_forward.39} parent=1 // pred_fallthru
      _
    %220 = vsyncpa [#allocation3], 1

// kernel: transformer_forward.32
$region0: #{transformer_forward.32}
  #allocation0 [shape = 'u32[]', space=smem, size = 0x4, offset = 0x4, fixed_abs, tag = 'smem constant byte address 0x4 - core index']
  #allocation1 [shape = 'u32[144,128]{1,0:T(1,128)}', space=vmem, size = 0x12000, scoped, tag = 'internal scratch']
  %s0 = inlined_call_operand.vmem [shape: f32[2,8,32], index: 0, kind: input, shape index: {}]
  %s1 = inlined_call_operand.vmem [shape: f32[2,8,64], index: 1, kind: input, shape index: {}]
  %s2 = inlined_call_operand.vmem [shape: f32[2,8,32], index: 2, kind: input, shape index: {}]
  %s3 = inlined_call_operand.vmem [shape: f32[2,1,8], index: 3, kind: input, shape index: {}]
  %s4 = inlined_call_operand.vmem [shape: f32[32,32], index: 4, kind: input, shape index: {}]
  %s5 = inlined_call_operand.vmem [shape: f32[1,32], index: 5, kind: input, shape index: {}]
  %s6 = inlined_call_operand.vmem [shape: f32[1,32], index: 6, kind: input, shape index: {}]
  %s7 = inlined_call_operand.vmem [shape: f32[1,32], index: 7, kind: input, shape index: {}]
  %s8 = inlined_call_operand.vmem [shape: f32[2,8,32], index: 8, kind: output, shape index: {}]
  %s9 = sld [smem:[#allocation0]]
  $region65: #{transformer_forward.32} parent=0
    _
  %s11 = ssub.s32 1, %s9
  %s12 = scalar_select 0, %s11, %s9
  loop: start=0, step=1, limit=4
  $region2: #{transformer_forward.32} parent=0 // loop_pre_header
    _
  $region3: #{transformer_forward.32} parent=0 // loop_header
    %s14 = sphi 0, %s18
    %p15 = scmp.ge.s32.totalorder %s14, 4
    %s24 = sphi 0, %s26
    %s27 = sphi 0, %s24
    %s28 = sphi 0, %s27
    %s44 = sphi 0, %s28
    %s50 = sphi 0, %s52
    %s53 = sphi 0, %s50
    %s54 = sphi 0, %s53
    %s70 = sphi 0, %s54
    %s76 = sphi 0, %s78
    %s79 = sphi 0, %s76
    %s80 = sphi 0, %s79
    %s96 = sphi 0, %s80
    %s102 = sphi 0, %s104
    %s105 = sphi 0, %s102
    %s106 = sphi 0, %s105
    %s122 = sphi 0, %s106
    %s126 = sphi 0, %s126
    %s128 = sphi 0, %s126
    %s129 = sphi 0, %s128
    %s143 = sphi 0, %s129
    %s147 = sphi 0, %s147
    %s149 = sphi 0, %s147
    %s150 = sphi 0, %s149
    %s164 = sphi 0, %s150
    %s168 = sphi 0, %s168
    %s170 = sphi 0, %s168
    %s171 = sphi 0, %s170
    %s185 = sphi 0, %s171
    %s189 = sphi 0, %s189
    %s191 = sphi 0, %s189
    %s192 = sphi 0, %s191
    %s206 = sphi 0, %s192
    %s212 = sphi 0, %s214
    %s215 = sphi 0, %s212
    %s216 = sphi 0, %s215
    %s232 = sphi 0, %s216
  $region4: #{transformer_forward.32} parent=0 // loop_header_branch
    %17 = sbr.rel (%p15) target = $region8
  $region5: #{transformer_forward.32} parent=0 // loop_body
    %s19 = ssub.s32 %s14, 1
    %s20 = ssub.s32 %s14, 2
    %s21 = sadd.s32 %s14, 1
    %s22 = ssub.s32 %s14, %s21
    %p23 = scmp.eq.s32.totalorder %s22, 0
    %s25 = sadd.s32 %s24, 1
    %s26 = scalar_select %p23, %s24, %s25
    %p29 = pneg %p23
    %p30 = scmp.eq.s32.totalorder %s14, 1
    %p31 = por %p29, %p30
    %p32 = scmp.ne.s32.totalorder %s24, %s27
    %p33 = scmp.eq.s32.totalorder %s14, 0
    %p34 = por %p32, %p33
    %p35 = scmp.ne.s32.totalorder %s24, %s27
    %p36 = scmp.eq.s32.totalorder %s19, 1
    %p37 = por %p35, %p36
    %p38 = scmp.ne.s32.totalorder %s27, %s28
    %p39 = scmp.eq.s32.totalorder %s19, 0
    %p40 = por %p38, %p39
    %p41 = scmp.ne.s32.totalorder %s27, %s28
    %p42 = scmp.eq.s32.totalorder %s20, 1
    %p43 = por %p41, %p42
    %p45 = scmp.ne.s32.totalorder %s28, %s44
    %p46 = scmp.eq.s32.totalorder %s20, 0
    %p47 = por %p45, %p46
    %s48 = ssub.s32 %s14, %s21
    %p49 = scmp.eq.s32.totalorder %s48, 0
    %s51 = sadd.s32 %s50, 1
    %s52 = scalar_select %p49, %s50, %s51
    %p55 = pneg %p49
    %p56 = scmp.eq.s32.totalorder %s14, 1
    %p57 = por %p55, %p56
    %p58 = scmp.ne.s32.totalorder %s50, %s53
    %p59 = scmp.eq.s32.totalorder %s14, 0
    %p60 = por %p58, %p59
    %p61 = scmp.ne.s32.totalorder %s50, %s53
    %p62 = scmp.eq.s32.totalorder %s19, 1
    %p63 = por %p61, %p62
    %p64 = scmp.ne.s32.totalorder %s53, %s54
    %p65 = scmp.eq.s32.totalorder %s19, 0
    %p66 = por %p64, %p65
    %p67 = scmp.ne.s32.totalorder %s53, %s54
    %p68 = scmp.eq.s32.totalorder %s20, 1
    %p69 = por %p67, %p68
    %p71 = scmp.ne.s32.totalorder %s54, %s70
    %p72 = scmp.eq.s32.totalorder %s20, 0
    %p73 = por %p71, %p72
    %s74 = ssub.s32 %s14, %s21
    %p75 = scmp.eq.s32.totalorder %s74, 0
    %s77 = sadd.s32 %s76, 1
    %s78 = scalar_select %p75, %s76, %s77
    %p81 = pneg %p75
    %p82 = scmp.eq.s32.totalorder %s14, 1
    %p83 = por %p81, %p82
    %p84 = scmp.ne.s32.totalorder %s76, %s79
    %p85 = scmp.eq.s32.totalorder %s14, 0
    %p86 = por %p84, %p85
    %p87 = scmp.ne.s32.totalorder %s76, %s79
    %p88 = scmp.eq.s32.totalorder %s19, 1
    %p89 = por %p87, %p88
    %p90 = scmp.ne.s32.totalorder %s79, %s80
    %p91 = scmp.eq.s32.totalorder %s19, 0
    %p92 = por %p90, %p91
    %p93 = scmp.ne.s32.totalorder %s79, %s80
    %p94 = scmp.eq.s32.totalorder %s20, 1
    %p95 = por %p93, %p94
    %p97 = scmp.ne.s32.totalorder %s80, %s96
    %p98 = scmp.eq.s32.totalorder %s20, 0
    %p99 = por %p97, %p98
    %s100 = ssub.s32 %s14, %s21
    %p101 = scmp.eq.s32.totalorder %s100, 0
    %s103 = sadd.s32 %s102, 1
    %s104 = scalar_select %p101, %s102, %s103
    %p107 = pneg %p101
    %p108 = scmp.eq.s32.totalorder %s14, 1
    %p109 = por %p107, %p108
    %p110 = scmp.ne.s32.totalorder %s102, %s105
    %p111 = scmp.eq.s32.totalorder %s14, 0
    %p112 = por %p110, %p111
    %p113 = scmp.ne.s32.totalorder %s102, %s105
    %p114 = scmp.eq.s32.totalorder %s19, 1
    %p115 = por %p113, %p114
    %p116 = scmp.ne.s32.totalorder %s105, %s106
    %p117 = scmp.eq.s32.totalorder %s19, 0
    %p118 = por %p116, %p117
    %p119 = scmp.ne.s32.totalorder %s105, %s106
    %p120 = scmp.eq.s32.totalorder %s20, 1
    %p121 = por %p119, %p120
    %p123 = scmp.ne.s32.totalorder %s106, %s122
    %p124 = scmp.eq.s32.totalorder %s20, 0
    %p125 = por %p123, %p124
    %s127 = sadd.s32 %s126, 1
    %p130 = scmp.eq.s32.totalorder %s14, 1
    %p131 = scmp.ne.s32.totalorder %s126, %s128
    %p132 = scmp.eq.s32.totalorder %s14, 0
    %p133 = por %p131, %p132
    %p134 = scmp.ne.s32.totalorder %s126, %s128
    %p135 = scmp.eq.s32.totalorder %s19, 1
    %p136 = por %p134, %p135
    %p137 = scmp.ne.s32.totalorder %s128, %s129
    %p138 = scmp.eq.s32.totalorder %s19, 0
    %p139 = por %p137, %p138
    %p140 = scmp.ne.s32.totalorder %s128, %s129
    %p141 = scmp.eq.s32.totalorder %s20, 1
    %p142 = por %p140, %p141
    %p144 = scmp.ne.s32.totalorder %s129, %s143
    %p145 = scmp.eq.s32.totalorder %s20, 0
    %p146 = por %p144, %p145
    %s148 = sadd.s32 %s147, 1
    %p151 = scmp.eq.s32.totalorder %s14, 1
    %p152 = scmp.ne.s32.totalorder %s147, %s149
    %p153 = scmp.eq.s32.totalorder %s14, 0
    %p154 = por %p152, %p153
    %p155 = scmp.ne.s32.totalorder %s147, %s149
    %p156 = scmp.eq.s32.totalorder %s19, 1
    %p157 = por %p155, %p156
    %p158 = scmp.ne.s32.totalorder %s149, %s150
    %p159 = scmp.eq.s32.totalorder %s19, 0
    %p160 = por %p158, %p159
    %p161 = scmp.ne.s32.totalorder %s149, %s150
    %p162 = scmp.eq.s32.totalorder %s20, 1
    %p163 = por %p161, %p162
    %p165 = scmp.ne.s32.totalorder %s150, %s164
    %p166 = scmp.eq.s32.totalorder %s20, 0
    %p167 = por %p165, %p166
    %s169 = sadd.s32 %s168, 1
    %p172 = scmp.eq.s32.totalorder %s14, 1
    %p173 = scmp.ne.s32.totalorder %s168, %s170
    %p174 = scmp.eq.s32.totalorder %s14, 0
    %p175 = por %p173, %p174
    %p176 = scmp.ne.s32.totalorder %s168, %s170
    %p177 = scmp.eq.s32.totalorder %s19, 1
    %p178 = por %p176, %p177
    %p179 = scmp.ne.s32.totalorder %s170, %s171
    %p180 = scmp.eq.s32.totalorder %s19, 0
    %p181 = por %p179, %p180
    %p182 = scmp.ne.s32.totalorder %s170, %s171
    %p183 = scmp.eq.s32.totalorder %s20, 1
    %p184 = por %p182, %p183
    %p186 = scmp.ne.s32.totalorder %s171, %s185
    %p187 = scmp.eq.s32.totalorder %s20, 0
    %p188 = por %p186, %p187
    %s190 = sadd.s32 %s189, 1
    %p193 = scmp.eq.s32.totalorder %s14, 1
    %p194 = scmp.ne.s32.totalorder %s189, %s191
    %p195 = scmp.eq.s32.totalorder %s14, 0
    %p196 = por %p194, %p195
    %p197 = scmp.ne.s32.totalorder %s189, %s191
    %p198 = scmp.eq.s32.totalorder %s19, 1
    %p199 = por %p197, %p198
    %p200 = scmp.ne.s32.totalorder %s191, %s192
    %p201 = scmp.eq.s32.totalorder %s19, 0
    %p202 = por %p200, %p201
    %p203 = scmp.ne.s32.totalorder %s191, %s192
    %p204 = scmp.eq.s32.totalorder %s20, 1
    %p205 = por %p203, %p204
    %p207 = scmp.ne.s32.totalorder %s192, %s206
    %p208 = scmp.eq.s32.totalorder %s20, 0
    %p209 = por %p207, %p208
    %s210 = ssub.s32 %s14, %s21
    %p211 = scmp.eq.s32.totalorder %s210, 0
    %s213 = sadd.s32 %s212, 1
    %s214 = scalar_select %p211, %s212, %s213
    %p217 = pneg %p211
    %p218 = scmp.eq.s32.totalorder %s14, 1
    %p219 = por %p217, %p218
    %p220 = scmp.ne.s32.totalorder %s212, %s215
    %p221 = scmp.eq.s32.totalorder %s14, 0
    %p222 = por %p220, %p221
    %p223 = scmp.ne.s32.totalorder %s212, %s215
    %p224 = scmp.eq.s32.totalorder %s19, 1
    %p225 = por %p223, %p224
    %p226 = scmp.ne.s32.totalorder %s215, %s216
    %p227 = scmp.eq.s32.totalorder %s19, 0
    %p228 = por %p226, %p227
    %p229 = scmp.ne.s32.totalorder %s215, %s216
    %p230 = scmp.eq.s32.totalorder %s20, 1
    %p231 = por %p229, %p230
    %p233 = scmp.ne.s32.totalorder %s216, %s232
    %p234 = scmp.eq.s32.totalorder %s20, 0
    %p235 = por %p233, %p234
    %p236 = scmp.le.s32.totalorder 1, %s14
    %p237 = scmp.lt.s32.totalorder %s14, 3
    %p238 = pnand %p236, %p237
    %p239 = pneg %p238
    // Predicated region
    $region9: #{transformer_forward.32} parent=5 // pred_check
      _
    $region10: #{transformer_forward.32} parent=5 // pred_check_branch
      %241 = sbr.rel (%p238) target = $region12
    $region11: #{transformer_forward.32} parent=5 // pred_region
      %s242 = ssub.s32 %s14, 1
      // Predicated region
      $region13: #{transformer_forward.32} parent=11 // pred_check
        %p243 = pneg %p139
      $region14: #{transformer_forward.32} parent=11 // pred_check_branch
        %245 = sbr.rel (%p243) target = $region16
      $region15: #{transformer_forward.32} parent=11 // pred_region
        _
      $region16: #{transformer_forward.32} parent=11 // pred_fallthru
        _
      // Predicated region
      $region17: #{transformer_forward.32} parent=11 // pred_check
        %p246 = pneg %p160
      $region18: #{transformer_forward.32} parent=11 // pred_check_branch
        %248 = sbr.rel (%p246) target = $region20
      $region19: #{transformer_forward.32} parent=11 // pred_region
        _
      $region20: #{transformer_forward.32} parent=11 // pred_fallthru
        _
      // Predicated region
      $region21: #{transformer_forward.32} parent=11 // pred_check
        %p249 = pneg %p181
      $region22: #{transformer_forward.32} parent=11 // pred_check_branch
        %251 = sbr.rel (%p249) target = $region24
      $region23: #{transformer_forward.32} parent=11 // pred_region
        _
      $region24: #{transformer_forward.32} parent=11 // pred_fallthru
        _
      // Predicated region
      $region25: #{transformer_forward.32} parent=11 // pred_check
        %p252 = pneg %p202
      $region26: #{transformer_forward.32} parent=11 // pred_check_branch
        %254 = sbr.rel (%p252) target = $region28
      $region27: #{transformer_forward.32} parent=11 // pred_region
        _
      $region28: #{transformer_forward.32} parent=11 // pred_fallthru
        _
    $region12: #{transformer_forward.32} parent=5 // pred_fallthru
      _
    %p255 = scmp.lt.s32.totalorder %s14, 2
    // Predicated region
    $region29: #{transformer_forward.32} parent=5 // pred_check
      %p256 = pneg %p255
    $region30: #{transformer_forward.32} parent=5 // pred_check_branch
      %258 = sbr.rel (%p256) target = $region32
    $region31: #{transformer_forward.32} parent=5 // pred_region
      // Predicated region
      $region33: #{transformer_forward.32} parent=31 // pred_check
        %p259 = pneg %p34
      $region34: #{transformer_forward.32} parent=31 // pred_check_branch
        %261 = sbr.rel (%p259) target = $region36
      $region35: #{transformer_forward.32} parent=31 // pred_region
        %p262 = scmp.lt.s32.totalorder %s14, 1
        %s263 = scalar_select %p262, %s14, 1
        %s264 = smul.addr %s263, 8
        %s265 = scalar_lea.vmem %s0, %s264
      $region36: #{transformer_forward.32} parent=31 // pred_fallthru
        _
      // Predicated region
      $region37: #{transformer_forward.32} parent=31 // pred_check
        %p266 = pneg %p60
      $region38: #{transformer_forward.32} parent=31 // pred_check_branch
        %268 = sbr.rel (%p266) target = $region40
      $region39: #{transformer_forward.32} parent=31 // pred_region
        %p269 = scmp.lt.s32.totalorder %s14, 1
        %s270 = scalar_select %p269, %s14, 1
        %s271 = smul.addr %s270, 8
        %s272 = scalar_lea.vmem %s1, %s271
      $region40: #{transformer_forward.32} parent=31 // pred_fallthru
        _
      // Predicated region
      $region41: #{transformer_forward.32} parent=31 // pred_check
        %p273 = pneg %p86
      $region42: #{transformer_forward.32} parent=31 // pred_check_branch
        %275 = sbr.rel (%p273) target = $region44
      $region43: #{transformer_forward.32} parent=31 // pred_region
        %p276 = scmp.lt.s32.totalorder %s14, 1
        %s277 = scalar_select %p276, %s14, 1
        %s278 = smul.addr %s277, 8
        %s279 = scalar_lea.vmem %s2, %s278
      $region44: #{transformer_forward.32} parent=31 // pred_fallthru
        _
      // Predicated region
      $region45: #{transformer_forward.32} parent=31 // pred_check
        %p280 = pneg %p112
      $region46: #{transformer_forward.32} parent=31 // pred_check_branch
        %282 = sbr.rel (%p280) target = $region48
      $region47: #{transformer_forward.32} parent=31 // pred_region
        %p283 = scmp.lt.s32.totalorder %s14, 1
        %s284 = scalar_select %p283, %s14, 1
        %s285 = scalar_lea.vmem %s3, %s284
      $region48: #{transformer_forward.32} parent=31 // pred_fallthru
        _
    $region32: #{transformer_forward.32} parent=5 // pred_fallthru
      _
    %p286 = scmp.le.s32.totalorder 1, %s14
    %p287 = scmp.lt.s32.totalorder %s14, 3
    %p288 = pnand %p286, %p287
    %p289 = pneg %p288
    // Predicated region
    $region49: #{transformer_forward.32} parent=5 // pred_check
      _
    $region50: #{transformer_forward.32} parent=5 // pred_check_branch
      %291 = sbr.rel (%p288) target = $region52
    $region51: #{transformer_forward.32} parent=5 // pred_region
      %s292 = ssub.s32 %s14, 1
      %p293 = scmp.lt.s32.totalorder %s19, 1
      %s294 = scalar_select %p293, %s19, 1
      %s295 = smul.addr %s294, 8
      %s296 = scalar_lea.vmem %s0, %s295
      %p297 = pneg %p40
      %p298 = pneg %p37
      %p299 = scmp.lt.s32.totalorder %s19, 1
      %s300 = scalar_select %p299, %s19, 1
      %s301 = smul.addr %s300, 8
      %s302 = scalar_lea.vmem %s1, %s301
      %p303 = pneg %p66
      %p304 = pneg %p63
      %p305 = scmp.lt.s32.totalorder %s19, 1
      %s306 = scalar_select %p305, %s19, 1
      %s307 = smul.addr %s306, 8
      %s308 = scalar_lea.vmem %s2, %s307
      %p309 = pneg %p92
      %p310 = pneg %p89
      %p311 = scmp.lt.s32.totalorder %s19, 1
      %s312 = scalar_select %p311, %s19, 1
      %s313 = scalar_lea.vmem %s3, %s312
      %p314 = pneg %p118
      %p315 = pneg %p115
      %p316 = pneg %p139
      %p317 = pneg %p136
      %p318 = pneg %p160
      %p319 = pneg %p157
      %p320 = pneg %p181
      %p321 = pneg %p178
      %p322 = pneg %p202
      %p323 = pneg %p199
      %p324 = pneg %p228
      %p325 = pneg %p225
      %p326 = scmp.lt.s32.totalorder %s19, 1
      %s327 = scalar_select %p326, %s19, 1
      %s328 = smul.addr %s327, 8
      %s329 = scalar_lea.vmem %s8, %s328
      %p330 = scmp.lt.s32.totalorder %s19, 1
      %s331 = scalar_select %p330, %s19, 1
      %s332 = smul.addr %s331, 8
      %s333 = scalar_lea.vmem %s0, %s332
      %p334 = scmp.lt.s32.totalorder %s19, 1
      %s335 = scalar_select %p334, %s19, 1
      %s336 = smul.addr %s335, 8
      %s337 = scalar_lea.vmem %s1, %s336
      %p338 = scmp.lt.s32.totalorder %s19, 1
      %s339 = scalar_select %p338, %s19, 1
      %s340 = smul.addr %s339, 8
      %s341 = scalar_lea.vmem %s2, %s340
      %p342 = scmp.lt.s32.totalorder %s19, 1
      %s343 = scalar_select %p342, %s19, 1
      %s344 = scalar_lea.vmem %s3, %s343
      %p345 = scmp.lt.s32.totalorder %s19, 1
      %s346 = scalar_select %p345, %s19, 1
      %s347 = smul.addr %s346, 8
      %s348 = scalar_lea.vmem %s8, %s347
      %v350 = vld [vmem:[%s333] sm:$0xff]
      %v351 = vld [vmem:[%s337] sm:$0xff]
      %v352 = vld [vmem:[%s344] sm:$0x1]
      %v353 = vpack.c.bf16 %v350, %v350
      %v354 = vpack.c.bf16 %v351, %v351
      %vm355 = vcmask 64512
      %v357 = vsel %vm355, %v353, 0
      %v360 = vsel %vm355, %v354, 0
      %362 = vmatprep.subr.bf16.mxu0 0
      %363 = vmatpush1.bf16.xpose.msra.mxu0 0
      %364 = vmatprep.subr.bf16.mxu0 0
      %365 = vmatpush1.bf16.xpose.msra.mxu0 0
      %366 = vmatprep.subr.bf16.mxu0 0
      %367 = vmatpush1.bf16.xpose.msra.mxu0 0
      %368 = vmatprep.subr.bf16.mxu0 0
      %369 = vmatpush1.bf16.xpose.msra.mxu0 0
      %370 = vmatprep.subr.bf16.mxu0 0
      %371 = vmatpush1.bf16.xpose.msra.mxu0 0
      %372 = vmatprep.subr.bf16.mxu0 0
      %373 = vmatpush1.bf16.xpose.msra.mxu0 0
      %374 = vmatprep.subr.bf16.mxu0 0
      %375 = vmatpush1.bf16.xpose.msra.mxu0 0
      %376 = vmatprep.subr.bf16.mxu0 0
      %377 = vmatpush1.bf16.xpose.msra.mxu0 %v360
      %378 = vmatprep.subr.bf16.mxu0 0
      %379 = vmatpush2.bf16.xpose.msra.mxu0 0
      %380 = vmatprep.subr.bf16.mxu0 0
      %381 = vmatpush2.bf16.xpose.msra.mxu0 0
      %382 = vmatprep.subr.bf16.mxu0 0
      %383 = vmatpush2.bf16.xpose.msra.mxu0 0
      %384 = vmatprep.subr.bf16.mxu0 0
      %385 = vmatpush2.bf16.xpose.msra.mxu0 0
      %386 = vmatprep.subr.bf16.mxu0 0
      %387 = vmatpush2.bf16.xpose.msra.mxu0 0
      %388 = vmatprep.subr.bf16.mxu0 0
      %389 = vmatpush2.bf16.xpose.msra.mxu0 0
      %390 = vmatprep.subr.bf16.mxu0 0
      %391 = vmatpush2.bf16.xpose.msra.mxu0 0
      %392 = vmatprep.subr.bf16.mxu0 0
      %393 = vmatpush2.bf16.xpose.msra.mxu0 0
      %394 = vmatprep.mubr.bf16.mxu0 0
      %395 = vmatmul.mubr.bf16.gmra.mxu0 %v357
      %v396 = vpop.f32.mrf.mxu0
      %v397 = vadd.f32 0.0, %v396
      %v398 = vpop.f32.mrf.mxu0
      %v399 = vpop.f32.mrf.mxu0
      %v400 = vpop.f32.mrf.mxu0
      %401 = vdwg.mxu0
      %v402 = vmul.f32 %v397, 0.35355338
      %v404 = vlaneseq
      %v405 = vshrl.u32 %v404, 7
      %v406 = vsub.s32 0, %v405
      %v407 = vrot.slane %v352, %v406
      %v409 = vadd.f32 %v402, %v407
      %v410 = vsel %vm355, %v409, -inf
      %411 = vmax.xlane.f32.xlu0 %v410
      %v412 = vpop.xlane.xlu0 %411
      %v413 = vsub.f32 %v409, %v412
      %v414 = vmul.f32 %v413, 1.442695
      %v415 = vpow.pop %v414
      %v416 = vsel %vm355, %v415, 0.0
      %417 = vadd.xlane.f32.xlu0 %v416
      %v418 = vpop.xlane.xlu0 %417
      %v419 = vrcp.pop %v418
      %v420 = vmul.f32 %v415, %v419
      %v421 = vpack.c.bf16 %v420, %v420
      %423 = vrot.lane.b32.xlu0 %v354, 96
      %v424 = vpop.permute.xlu0 %423
      %v426 = vsel %vm355, %v421, 0
      %vm428 = vcmask 1043456
      %v430 = vsel %vm428, %v424, 0
      %432 = vmatprep.subr.bf16.mxu0 0
      %433 = vmatpush1.bf16.msra.mxu0 0
      %434 = vmatprep.subr.bf16.mxu0 0
      %435 = vmatpush1.bf16.msra.mxu0 0
      %436 = vmatprep.subr.bf16.mxu0 0
      %437 = vmatpush1.bf16.msra.mxu0 0
      %438 = vmatprep.subr.bf16.mxu0 0
      %439 = vmatpush1.bf16.msra.mxu0 0
      %440 = vmatprep.subr.bf16.mxu0 0
      %441 = vmatpush1.bf16.msra.mxu0 0
      %442 = vmatprep.subr.bf16.mxu0 0
      %443 = vmatpush1.bf16.msra.mxu0 0
      %444 = vmatprep.subr.bf16.mxu0 0
      %445 = vmatpush1.bf16.msra.mxu0 0
      %446 = vmatprep.subr.bf16.mxu0 0
      %447 = vmatpush1.bf16.msra.mxu0 %v430
      %448 = vmatprep.subr.bf16.mxu0 0
      %449 = vmatpush2.bf16.msra.mxu0 0
      %450 = vmatprep.subr.bf16.mxu0 0
      %451 = vmatpush2.bf16.msra.mxu0 0
      %452 = vmatprep.subr.bf16.mxu0 0
      %453 = vmatpush2.bf16.msra.mxu0 0
      %454 = vmatprep.subr.bf16.mxu0 0
      %455 = vmatpush2.bf16.msra.mxu0 0
      %456 = vmatprep.subr.bf16.mxu0 0
      %457 = vmatpush2.bf16.msra.mxu0 0
      %458 = vmatprep.subr.bf16.mxu0 0
      %459 = vmatpush2.bf16.msra.mxu0 0
      %460 = vmatprep.subr.bf16.mxu0 0
      %461 = vmatpush2.bf16.msra.mxu0 0
      %462 = vmatprep.subr.bf16.mxu0 0
      %463 = vmatpush2.bf16.msra.mxu0 0
      %464 = vmatprep.mubr.bf16.mxu0 0
      %465 = vmatmul.mubr.bf16.gmra.mxu0 %v426
      %v466 = vpop.f32.mrf.mxu0
      %v467 = vadd.f32 0.0, %v466
      %v468 = vpop.f32.mrf.mxu0
      %v469 = vpop.f32.mrf.mxu0
      %v470 = vpop.f32.mrf.mxu0
      %471 = vdwg.mxu0
      %473 = vrot.lane.b32.xlu0 %v353, 120
      %v474 = vpop.permute.xlu0 %473
      %475 = vrot.lane.b32.xlu0 %v354, 120
      %v476 = vpop.permute.xlu0 %475
      %v478 = vsel %vm355, %v474, 0
      %v481 = vsel %vm355, %v476, 0
      %483 = vmatprep.subr.bf16.mxu0 0
      %484 = vmatpush1.bf16.xpose.msra.mxu0 0
      %485 = vmatprep.subr.bf16.mxu0 0
      %486 = vmatpush1.bf16.xpose.msra.mxu0 0
      %487 = vmatprep.subr.bf16.mxu0 0
      %488 = vmatpush1.bf16.xpose.msra.mxu0 0
      %489 = vmatprep.subr.bf16.mxu0 0
      %490 = vmatpush1.bf16.xpose.msra.mxu0 0
      %491 = vmatprep.subr.bf16.mxu0 0
      %492 = vmatpush1.bf16.xpose.msra.mxu0 0
      %493 = vmatprep.subr.bf16.mxu0 0
      %494 = vmatpush1.bf16.xpose.msra.mxu0 0
      %495 = vmatprep.subr.bf16.mxu0 0
      %496 = vmatpush1.bf16.xpose.msra.mxu0 0
      %497 = vmatprep.subr.bf16.mxu0 0
      %498 = vmatpush1.bf16.xpose.msra.mxu0 %v481
      %499 = vmatprep.subr.bf16.mxu0 0
      %500 = vmatpush2.bf16.xpose.msra.mxu0 0
      %501 = vmatprep.subr.bf16.mxu0 0
      %502 = vmatpush2.bf16.xpose.msra.mxu0 0
      %503 = vmatprep.subr.bf16.mxu0 0
      %504 = vmatpush2.bf16.xpose.msra.mxu0 0
      %505 = vmatprep.subr.bf16.mxu0 0
      %506 = vmatpush2.bf16.xpose.msra.mxu0 0
      %507 = vmatprep.subr.bf16.mxu0 0
      %508 = vmatpush2.bf16.xpose.msra.mxu0 0
      %509 = vmatprep.subr.bf16.mxu0 0
      %510 = vmatpush2.bf16.xpose.msra.mxu0 0
      %511 = vmatprep.subr.bf16.mxu0 0
      %512 = vmatpush2.bf16.xpose.msra.mxu0 0
      %513 = vmatprep.subr.bf16.mxu0 0
      %514 = vmatpush2.bf16.xpose.msra.mxu0 0
      %515 = vmatprep.mubr.bf16.mxu0 0
      %516 = vmatmul.mubr.bf16.gmra.mxu0 %v478
      %v517 = vpop.f32.mrf.mxu0
      %v518 = vadd.f32 0.0, %v517
      %v519 = vpop.f32.mrf.mxu0
      %v520 = vpop.f32.mrf.mxu0
      %v521 = vpop.f32.mrf.mxu0
      %522 = vdwg.mxu0
      %v523 = vmul.f32 %v518, 0.35355338
      %v524 = vadd.f32 %v523, %v407
      %v525 = vsel %vm355, %v524, -inf
      %526 = vmax.xlane.f32.xlu0 %v525
      %v527 = vpop.xlane.xlu0 %526
      %v528 = vsub.f32 %v524, %v527
      %v529 = vmul.f32 %v528, 1.442695
      %v530 = vpow.pop %v529
      %v531 = vsel %vm355, %v530, 0.0
      %532 = vadd.xlane.f32.xlu0 %v531
      %v533 = vpop.xlane.xlu0 %532
      %v534 = vrcp.pop %v533
      %v535 = vmul.f32 %v530, %v534
      %v536 = vpack.c.bf16 %v535, %v535
      %537 = vrot.lane.b32.xlu0 %v354, 88
      %v538 = vpop.permute.xlu0 %537
      %v540 = vsel %vm355, %v536, 0
      %v543 = vsel %vm428, %v538, 0
      %545 = vmatprep.subr.bf16.mxu0 0
      %546 = vmatpush1.bf16.msra.mxu0 0
      %547 = vmatprep.subr.bf16.mxu0 0
      %548 = vmatpush1.bf16.msra.mxu0 0
      %549 = vmatprep.subr.bf16.mxu0 0
      %550 = vmatpush1.bf16.msra.mxu0 0
      %551 = vmatprep.subr.bf16.mxu0 0
      %552 = vmatpush1.bf16.msra.mxu0 0
      %553 = vmatprep.subr.bf16.mxu0 0
      %554 = vmatpush1.bf16.msra.mxu0 0
      %555 = vmatprep.subr.bf16.mxu0 0
      %556 = vmatpush1.bf16.msra.mxu0 0
      %557 = vmatprep.subr.bf16.mxu0 0
      %558 = vmatpush1.bf16.msra.mxu0 0
      %559 = vmatprep.subr.bf16.mxu0 0
      %560 = vmatpush1.bf16.msra.mxu0 %v543
      %561 = vmatprep.subr.bf16.mxu0 0
      %562 = vmatpush2.bf16.msra.mxu0 0
      %563 = vmatprep.subr.bf16.mxu0 0
      %564 = vmatpush2.bf16.msra.mxu0 0
      %565 = vmatprep.subr.bf16.mxu0 0
      %566 = vmatpush2.bf16.msra.mxu0 0
      %567 = vmatprep.subr.bf16.mxu0 0
      %568 = vmatpush2.bf16.msra.mxu0 0
      %569 = vmatprep.subr.bf16.mxu0 0
      %570 = vmatpush2.bf16.msra.mxu0 0
      %571 = vmatprep.subr.bf16.mxu0 0
      %572 = vmatpush2.bf16.msra.mxu0 0
      %573 = vmatprep.subr.bf16.mxu0 0
      %574 = vmatpush2.bf16.msra.mxu0 0
      %575 = vmatprep.subr.bf16.mxu0 0
      %576 = vmatpush2.bf16.msra.mxu0 0
      %577 = vmatprep.mubr.bf16.mxu0 0
      %578 = vmatmul.mubr.bf16.gmra.mxu0 %v540
      %v579 = vpop.f32.mrf.mxu0
      %v580 = vadd.f32 0.0, %v579
      %v581 = vpop.f32.mrf.mxu0
      %v582 = vpop.f32.mrf.mxu0
      %v583 = vpop.f32.mrf.mxu0
      %584 = vdwg.mxu0
      %585 = vrot.lane.b32.xlu0 %v353, 112
      %v586 = vpop.permute.xlu0 %585
      %587 = vrot.lane.b32.xlu0 %v354, 112
      %v588 = vpop.permute.xlu0 %587
      %v590 = vsel %vm355, %v586, 0
      %v593 = vsel %vm355, %v588, 0
      %595 = vmatprep.subr.bf16.mxu0 0
      %596 = vmatpush1.bf16.xpose.msra.mxu0 0
      %597 = vmatprep.subr.bf16.mxu0 0
      %598 = vmatpush1.bf16.xpose.msra.mxu0 0
      %599 = vmatprep.subr.bf16.mxu0 0
      %600 = vmatpush1.bf16.xpose.msra.mxu0 0
      %601 = vmatprep.subr.bf16.mxu0 0
      %602 = vmatpush1.bf16.xpose.msra.mxu0 0
      %603 = vmatprep.subr.bf16.mxu0 0
      %604 = vmatpush1.bf16.xpose.msra.mxu0 0
      %605 = vmatprep.subr.bf16.mxu0 0
      %606 = vmatpush1.bf16.xpose.msra.mxu0 0
      %607 = vmatprep.subr.bf16.mxu0 0
      %608 = vmatpush1.bf16.xpose.msra.mxu0 0
      %609 = vmatprep.subr.bf16.mxu0 0
      %610 = vmatpush1.bf16.xpose.msra.mxu0 %v593
      %611 = vmatprep.subr.bf16.mxu0 0
      %612 = vmatpush2.bf16.xpose.msra.mxu0 0
      %613 = vmatprep.subr.bf16.mxu0 0
      %614 = vmatpush2.bf16.xpose.msra.mxu0 0
      %615 = vmatprep.subr.bf16.mxu0 0
      %616 = vmatpush2.bf16.xpose.msra.mxu0 0
      %617 = vmatprep.subr.bf16.mxu0 0
      %618 = vmatpush2.bf16.xpose.msra.mxu0 0
      %619 = vmatprep.subr.bf16.mxu0 0
      %620 = vmatpush2.bf16.xpose.msra.mxu0 0
      %621 = vmatprep.subr.bf16.mxu0 0
      %622 = vmatpush2.bf16.xpose.msra.mxu0 0
      %623 = vmatprep.subr.bf16.mxu0 0
      %624 = vmatpush2.bf16.xpose.msra.mxu0 0
      %625 = vmatprep.subr.bf16.mxu0 0
      %626 = vmatpush2.bf16.xpose.msra.mxu0 0
      %627 = vmatprep.mubr.bf16.mxu0 0
      %628 = vmatmul.mubr.bf16.gmra.mxu0 %v590
      %v629 = vpop.f32.mrf.mxu0
      %v630 = vadd.f32 0.0, %v629
      %v631 = vpop.f32.mrf.mxu0
      %v632 = vpop.f32.mrf.mxu0
      %v633 = vpop.f32.mrf.mxu0
      %634 = vdwg.mxu0
      %v635 = vmul.f32 %v630, 0.35355338
      %v636 = vadd.f32 %v635, %v407
      %v637 = vsel %vm355, %v636, -inf
      %638 = vmax.xlane.f32.xlu0 %v637
      %v639 = vpop.xlane.xlu0 %638
      %v640 = vsub.f32 %v636, %v639
      %v641 = vmul.f32 %v640, 1.442695
      %v642 = vpow.pop %v641
      %v643 = vsel %vm355, %v642, 0.0
      %644 = vadd.xlane.f32.xlu0 %v643
      %v645 = vpop.xlane.xlu0 %644
      %v646 = vrcp.pop %v645
      %v647 = vmul.f32 %v642, %v646
      %v648 = vpack.c.bf16 %v647, %v647
      %649 = vrot.lane.b32.xlu0 %v354, 80
      %v650 = vpop.permute.xlu0 %649
      %v652 = vsel %vm355, %v648, 0
      %v655 = vsel %vm428, %v650, 0
      %657 = vmatprep.subr.bf16.mxu0 0
      %658 = vmatpush1.bf16.msra.mxu0 0
      %659 = vmatprep.subr.bf16.mxu0 0
      %660 = vmatpush1.bf16.msra.mxu0 0
      %661 = vmatprep.subr.bf16.mxu0 0
      %662 = vmatpush1.bf16.msra.mxu0 0
      %663 = vmatprep.subr.bf16.mxu0 0
      %664 = vmatpush1.bf16.msra.mxu0 0
      %665 = vmatprep.subr.bf16.mxu0 0
      %666 = vmatpush1.bf16.msra.mxu0 0
      %667 = vmatprep.subr.bf16.mxu0 0
      %668 = vmatpush1.bf16.msra.mxu0 0
      %669 = vmatprep.subr.bf16.mxu0 0
      %670 = vmatpush1.bf16.msra.mxu0 0
      %671 = vmatprep.subr.bf16.mxu0 0
      %672 = vmatpush1.bf16.msra.mxu0 %v655
      %673 = vmatprep.subr.bf16.mxu0 0
      %674 = vmatpush2.bf16.msra.mxu0 0
      %675 = vmatprep.subr.bf16.mxu0 0
      %676 = vmatpush2.bf16.msra.mxu0 0
      %677 = vmatprep.subr.bf16.mxu0 0
      %678 = vmatpush2.bf16.msra.mxu0 0
      %679 = vmatprep.subr.bf16.mxu0 0
      %680 = vmatpush2.bf16.msra.mxu0 0
      %681 = vmatprep.subr.bf16.mxu0 0
      %682 = vmatpush2.bf16.msra.mxu0 0
      %683 = vmatprep.subr.bf16.mxu0 0
      %684 = vmatpush2.bf16.msra.mxu0 0
      %685 = vmatprep.subr.bf16.mxu0 0
      %686 = vmatpush2.bf16.msra.mxu0 0
      %687 = vmatprep.subr.bf16.mxu0 0
      %688 = vmatpush2.bf16.msra.mxu0 0
      %689 = vmatprep.mubr.bf16.mxu0 0
      %690 = vmatmul.mubr.bf16.gmra.mxu0 %v652
      %v691 = vpop.f32.mrf.mxu0
      %v692 = vadd.f32 0.0, %v691
      %v693 = vpop.f32.mrf.mxu0
      %v694 = vpop.f32.mrf.mxu0
      %v695 = vpop.f32.mrf.mxu0
      %696 = vdwg.mxu0
      %697 = vrot.lane.b32.xlu0 %v353, 104
      %v698 = vpop.permute.xlu0 %697
      %699 = vrot.lane.b32.xlu0 %v354, 104
      %v700 = vpop.permute.xlu0 %699
      %v702 = vsel %vm355, %v698, 0
      %v705 = vsel %vm355, %v700, 0
      %707 = vmatprep.subr.bf16.mxu0 0
      %708 = vmatpush1.bf16.xpose.msra.mxu0 0
      %709 = vmatprep.subr.bf16.mxu0 0
      %710 = vmatpush1.bf16.xpose.msra.mxu0 0
      %711 = vmatprep.subr.bf16.mxu0 0
      %712 = vmatpush1.bf16.xpose.msra.mxu0 0
      %713 = vmatprep.subr.bf16.mxu0 0
      %714 = vmatpush1.bf16.xpose.msra.mxu0 0
      %715 = vmatprep.subr.bf16.mxu0 0
      %716 = vmatpush1.bf16.xpose.msra.mxu0 0
      %717 = vmatprep.subr.bf16.mxu0 0
      %718 = vmatpush1.bf16.xpose.msra.mxu0 0
      %719 = vmatprep.subr.bf16.mxu0 0
      %720 = vmatpush1.bf16.xpose.msra.mxu0 0
      %721 = vmatprep.subr.bf16.mxu0 0
      %722 = vmatpush1.bf16.xpose.msra.mxu0 %v705
      %723 = vmatprep.subr.bf16.mxu0 0
      %724 = vmatpush2.bf16.xpose.msra.mxu0 0
      %725 = vmatprep.subr.bf16.mxu0 0
      %726 = vmatpush2.bf16.xpose.msra.mxu0 0
      %727 = vmatprep.subr.bf16.mxu0 0
      %728 = vmatpush2.bf16.xpose.msra.mxu0 0
      %729 = vmatprep.subr.bf16.mxu0 0
      %730 = vmatpush2.bf16.xpose.msra.mxu0 0
      %731 = vmatprep.subr.bf16.mxu0 0
      %732 = vmatpush2.bf16.xpose.msra.mxu0 0
      %733 = vmatprep.subr.bf16.mxu0 0
      %734 = vmatpush2.bf16.xpose.msra.mxu0 0
      %735 = vmatprep.subr.bf16.mxu0 0
      %736 = vmatpush2.bf16.xpose.msra.mxu0 0
      %737 = vmatprep.subr.bf16.mxu0 0
      %738 = vmatpush2.bf16.xpose.msra.mxu0 0
      %739 = vmatprep.mubr.bf16.mxu0 0
      %740 = vmatmul.mubr.bf16.gmra.mxu0 %v702
      %v741 = vpop.f32.mrf.mxu0
      %v742 = vadd.f32 0.0, %v741
      %v743 = vpop.f32.mrf.mxu0
      %v744 = vpop.f32.mrf.mxu0
      %v745 = vpop.f32.mrf.mxu0
      %746 = vdwg.mxu0
      %v747 = vmul.f32 %v742, 0.35355338
      %v748 = vadd.f32 %v747, %v407
      %v749 = vsel %vm355, %v748, -inf
      %750 = vmax.xlane.f32.xlu0 %v749
      %v751 = vpop.xlane.xlu0 %750
      %v752 = vsub.f32 %v748, %v751
      %v753 = vmul.f32 %v752, 1.442695
      %v754 = vpow.pop %v753
      %v755 = vsel %vm355, %v754, 0.0
      %756 = vadd.xlane.f32.xlu0 %v755
      %v757 = vpop.xlane.xlu0 %756
      %v758 = vrcp.pop %v757
      %v759 = vmul.f32 %v754, %v758
      %v760 = vpack.c.bf16 %v759, %v759
      %761 = vrot.lane.b32.xlu0 %v354, 72
      %v762 = vpop.permute.xlu0 %761
      %v764 = vsel %vm355, %v760, 0
      %v767 = vsel %vm428, %v762, 0
      %769 = vmatprep.subr.bf16.mxu0 0
      %770 = vmatpush1.bf16.msra.mxu0 0
      %771 = vmatprep.subr.bf16.mxu0 0
      %772 = vmatpush1.bf16.msra.mxu0 0
      %773 = vmatprep.subr.bf16.mxu0 0
      %774 = vmatpush1.bf16.msra.mxu0 0
      %775 = vmatprep.subr.bf16.mxu0 0
      %776 = vmatpush1.bf16.msra.mxu0 0
      %777 = vmatprep.subr.bf16.mxu0 0
      %778 = vmatpush1.bf16.msra.mxu0 0
      %779 = vmatprep.subr.bf16.mxu0 0
      %780 = vmatpush1.bf16.msra.mxu0 0
      %781 = vmatprep.subr.bf16.mxu0 0
      %782 = vmatpush1.bf16.msra.mxu0 0
      %783 = vmatprep.subr.bf16.mxu0 0
      %784 = vmatpush1.bf16.msra.mxu0 %v767
      %785 = vmatprep.subr.bf16.mxu0 0
      %786 = vmatpush2.bf16.msra.mxu0 0
      %787 = vmatprep.subr.bf16.mxu0 0
      %788 = vmatpush2.bf16.msra.mxu0 0
      %789 = vmatprep.subr.bf16.mxu0 0
      %790 = vmatpush2.bf16.msra.mxu0 0
      %791 = vmatprep.subr.bf16.mxu0 0
      %792 = vmatpush2.bf16.msra.mxu0 0
      %793 = vmatprep.subr.bf16.mxu0 0
      %794 = vmatpush2.bf16.msra.mxu0 0
      %795 = vmatprep.subr.bf16.mxu0 0
      %796 = vmatpush2.bf16.msra.mxu0 0
      %797 = vmatprep.subr.bf16.mxu0 0
      %798 = vmatpush2.bf16.msra.mxu0 0
      %799 = vmatprep.subr.bf16.mxu0 0
      %800 = vmatpush2.bf16.msra.mxu0 0
      %801 = vmatprep.mubr.bf16.mxu0 0
      %802 = vmatmul.mubr.bf16.gmra.mxu0 %v764
      %v803 = vpop.f32.mrf.mxu0
      %v804 = vadd.f32 0.0, %v803
      %v805 = vpop.f32.mrf.mxu0
      %v806 = vpop.f32.mrf.mxu0
      %v807 = vpop.f32.mrf.mxu0
      %808 = vdwg.mxu0
      %810 = vrot.lane.b32.xlu0 %v580, 8
      %v811 = vpop.permute.xlu0 %810
      %814 = vrot.lane.b32.xlu0 %v692, 16
      %v815 = vpop.permute.xlu0 %814
      %818 = vrot.lane.b32.xlu0 %v804, 24
      %v819 = vpop.permute.xlu0 %818
      %v821 = vsel %vm355, %v467, %v811
      %vm822 = vcmask 130048
      %v823 = vsel %vm822, %v821, %v815
      %vm824 = vcmask 195584
      %v825 = vsel %vm824, %v823, %v819
      %v826 = vld [vmem:[%s341] sm:$0xff]
      %v827 = vld [vmem:[%s4] sm:$0xff]
      %v828 = vld [vmem:[%s4 + $0x8] sm:$0xff]
      %v829 = vld [vmem:[%s4 + $0x10] sm:$0xff]
      %v830 = vld [vmem:[%s4 + $0x18] sm:$0xff]
      %v831 = vld [vmem:[%s5] sm:$0x1]
      %v832 = vld [vmem:[%s6] sm:$0x1]
      %v833 = vld [vmem:[%s7] sm:$0x1]
      %v834 = vpack.c.bf16 %v825, %v825
      %v835 = vpack.c.bf16 %v828, %v827
      %v836 = vpack.c.bf16 %v830, %v829
      %v838 = vlaneseq
      %v839 = vshrl.u32 %v838, 7
      %v840 = vsub.s32 0, %v839
      %v841 = vrot.slane %v831, %v840
      %vm843 = vcmask 261120
      %v845 = vsel %vm843, %v834, 0
      %847 = vmatprep.subr.bf16.mxu0 0
      %848 = vmatpush1.bf16.msra.mxu0 0
      %849 = vmatprep.subr.bf16.mxu0 0
      %850 = vmatpush1.bf16.msra.mxu0 0
      %851 = vmatprep.subr.bf16.mxu0 0
      %852 = vmatpush1.bf16.msra.mxu0 0
      %853 = vmatprep.subr.bf16.mxu0 0
      %854 = vmatpush1.bf16.msra.mxu0 0
      %855 = vmatprep.subr.bf16.mxu0 0
      %856 = vmatpush1.bf16.msra.mxu0 0
      %857 = vmatprep.subr.bf16.mxu0 0
      %858 = vmatpush1.bf16.msra.mxu0 0
      %859 = vmatprep.subr.bf16.mxu0 0
      %860 = vmatpush1.bf16.msra.mxu0 %v836
      %861 = vmatprep.subr.bf16.mxu0 0
      %862 = vmatpush1.bf16.msra.mxu0 %v835
      %863 = vmatprep.subr.bf16.mxu0 0
      %864 = vmatpush2.bf16.msra.mxu0 0
      %865 = vmatprep.subr.bf16.mxu0 0
      %866 = vmatpush2.bf16.msra.mxu0 0
      %867 = vmatprep.subr.bf16.mxu0 0
      %868 = vmatpush2.bf16.msra.mxu0 0
      %869 = vmatprep.subr.bf16.mxu0 0
      %870 = vmatpush2.bf16.msra.mxu0 0
      %871 = vmatprep.subr.bf16.mxu0 0
      %872 = vmatpush2.bf16.msra.mxu0 0
      %873 = vmatprep.subr.bf16.mxu0 0
      %874 = vmatpush2.bf16.msra.mxu0 0
      %875 = vmatprep.subr.bf16.mxu0 0
      %876 = vmatpush2.bf16.msra.mxu0 0
      %877 = vmatprep.subr.bf16.mxu0 0
      %878 = vmatpush2.bf16.msra.mxu0 0
      %879 = vmatprep.mubr.bf16.mxu0 0
      %880 = vmatmul.mubr.bf16.gmra.mxu0 %v845
      %v881 = vpop.f32.mrf.mxu0
      %v882 = vadd.f32 %v841, %v881
      %v883 = vpop.f32.mrf.mxu0
      %v884 = vpop.f32.mrf.mxu0
      %v885 = vpop.f32.mrf.mxu0
      %886 = vdwg.mxu0
      %v887 = vadd.f32 %v826, %v882
      %v888 = vsel %vm843, %v887, 0.0
      %889 = vadd.xlane.f32.xlu0 %v888
      %v890 = vpop.xlane.xlu0 %889
      %v891 = vrcp.pop 32.0
      %v892 = vmul.f32 %v890, %v891
      %v893 = vsub.f32 %v887, %v892
      %v894 = vmul.f32 %v893, %v893
      %v895 = vsel %vm843, %v894, 0.0
      %896 = vadd.xlane.f32.xlu0 %v895
      %v897 = vpop.xlane.xlu0 %896
      %v898 = vmul.f32 %v897, %v891
      %v899 = vadd.f32 %v898, 1e-05
      %v900 = vrsqrt.pop %v899
      %v901 = vmul.f32 %v893, %v900
      %v903 = vlaneseq
      %v904 = vshrl.u32 %v903, 7
      %v905 = vsub.s32 0, %v904
      %v906 = vrot.slane %v832, %v905
      %v908 = vmul.f32 %v901, %v906
      %v910 = vlaneseq
      %v911 = vshrl.u32 %v910, 7
      %v912 = vsub.s32 0, %v911
      %v913 = vrot.slane %v833, %v912
      %v915 = vadd.f32 %v908, %v913
      %916 = vst.msk [vmem:[%s348] sm:$0xff] %vm843, %v915
      %p917 = scmp.lt.s32.totalorder %s19, 1
      %s918 = scalar_select %p917, %s19, 1
      %s919 = smul.addr %s918, 8
      %s920 = scalar_lea.vmem %s8, %s919
      // Predicated region
      $region53: #{transformer_forward.32} parent=51 // pred_check
        %p921 = pneg %p225
      $region54: #{transformer_forward.32} parent=51 // pred_check_branch
        %923 = sbr.rel (%p921) target = $region56
      $region55: #{transformer_forward.32} parent=51 // pred_region
        _
      $region56: #{transformer_forward.32} parent=51 // pred_fallthru
        _
    $region52: #{transformer_forward.32} parent=5 // pred_fallthru
      _
    %p924 = scmp.le.s32.totalorder 2, %s14
    // Predicated region
    $region57: #{transformer_forward.32} parent=5 // pred_check
      %p925 = pneg %p924
    $region58: #{transformer_forward.32} parent=5 // pred_check_branch
      %927 = sbr.rel (%p925) target = $region60
    $region59: #{transformer_forward.32} parent=5 // pred_region
      %s928 = ssub.s32 %s14, 2
      // Predicated region
      $region61: #{transformer_forward.32} parent=59 // pred_check
        %p929 = pneg %p231
      $region62: #{transformer_forward.32} parent=59 // pred_check_branch
        %931 = sbr.rel (%p929) target = $region64
      $region63: #{transformer_forward.32} parent=59 // pred_region
        %p932 = scmp.lt.s32.totalorder %s20, 1
        %s933 = scalar_select %p932, %s20, 1
        %s934 = smul.addr %s933, 8
        %s935 = scalar_lea.vmem %s8, %s934
      $region64: #{transformer_forward.32} parent=59 // pred_fallthru
        _
    $region60: #{transformer_forward.32} parent=5 // pred_fallthru
      _
  $region6: #{transformer_forward.32} parent=0 // loop_footer
    %s18 = sadd.s32 1, %s14
  $region7: #{transformer_forward.32} parent=0 // loop_footer_branch
    %13 = sbr.rel target = $region3
  $region8: #{transformer_forward.32} parent=0 // loop_exit
    _

</llo_original>
